<compile_context>
chip_gen: v7x
topology: tpu7x:2x2x1
jax: 0.10.0
libtpu: 0.0.40
codegen_flags: <defaults>
</compile_context>

<pallas_src>
import functools
import math

import jax
import jax.numpy as jnp
import numpy as np
from jax import lax
from jax.experimental import pallas as pl
from jax.experimental.pallas import tpu as pltpu


def _round_up(x, m):
    return (x + m - 1) // m * m


# ----------------------------------------------------------------------------
# Device-generation helpers
# ----------------------------------------------------------------------------

@functools.lru_cache(maxsize=1)
def _device_kind():
    try:
        return jax.devices()[0].device_kind.lower()
    except Exception:
        return ""


def _mxu_256():
    # v6e / v7x have a 256-wide/deep MXU; v5e and older are 128.
    k = _device_kind()
    return any(t in k for t in ("v6", "v7", "7x"))


def _multi_tc():
    # v7x has 2 TensorCores per chip (and only 64 MiB VMEM per core).
    k = _device_kind()
    return any(t in k for t in ("v7", "7x"))


def _vmem_limit():
    if _multi_tc():
        return 48 << 20          # v7x: 64 MiB physical per TC
    k = _device_kind()
    if any(t in k for t in ("v5", "v6")):
        return 96 << 20          # 128 MiB physical
    return 64 << 20


def _rows_budget():
    # Output-tile element budget (tm = rows * wo); halved on v7x (smaller VMEM).
    return 2048 if _multi_tc() else 4096


def _pick_ntile(cout):
    if _mxu_256() and cout % 256 == 0:
        return 256
    if cout % 128 == 0:
        return 128
    return cout                  # full-dim block (legal); never hit after padding


def _pick_ctile(c):
    # Reduction (Cin) tile: 256 feeds the full 256-deep MXU contraction on
    # v6e/v7x and halves the f32-accumulator RMW steps; keep 128 on v5e.
    if _mxu_256() and c % 256 == 0:
        return 256
    if c % 128 == 0:
        return 128
    return c


def _pick_rows(ho, wo, max_elems):
    if ho * wo <= max_elems:
        return ho
    for r in range(ho - 1, 0, -1):
        if ho % r == 0 and r * wo <= max_elems and (r * wo) % 8 == 0:
            return r
    # Full-extent tile is always layout-legal; only hit for odd spatial sizes.
    return ho


# ----------------------------------------------------------------------------
# The single fused Pallas kernel (conv-as-matmul, two x-blocking modes)
# ----------------------------------------------------------------------------

def _conv_kernel(*refs, taps, rows, wo, relu, img_mode, has_res):
    if has_res:
        x_ref, w_ref, b_ref, r_ref, o_ref, acc_ref = refs
    else:
        x_ref, w_ref, b_ref, o_ref, acc_ref = refs
        r_ref = None

    k = pl.program_id(3)

    @pl.when(k == 0)
    def _():
        acc_ref[...] = jnp.zeros_like(acc_ref)

    if img_mode:
        # x_ref: (band_h, Wp, tc) row-band of one image / one Cin tile.  Taps
        # are unrolled; each tap is a statically shifted window sliced in VMEM,
        # so no im2col patches ever hit HBM.
        tc = x_ref.shape[-1]
        sub = 16 if x_ref.dtype == jnp.bfloat16 else 8
        for t, (dy, dx) in enumerate(taps):
            xs = x_ref[dy:dy + rows, dx:dx + wo, :]
            if wo % sub == 0:
                # (rows, wo, tc) -> (rows*wo, tc) is a layout no-op: no casts.
                xs = xs.reshape(rows * wo, tc)
            else:
                # Misaligned widths (toy sizes only): collapse via f32 tiles.
                xs = xs.astype(jnp.float32).reshape(rows * wo, tc)
                xs = xs.astype(jnp.bfloat16)
            acc_ref[...] += jnp.dot(xs, w_ref[t],
                                    preferred_element_type=jnp.float32)
    else:
        # x_ref: (tm, tc) plain matmul tile (1x1 convs, im2col leftovers).
        acc_ref[...] += jnp.dot(x_ref[...], w_ref[0],
                                preferred_element_type=jnp.float32)

    @pl.when(k == pl.num_programs(3) - 1)
    def _():
        y = acc_ref[...] + b_ref[...]
        if has_res:
            y = y + r_ref[...].astype(jnp.float32)
        if relu:
            y = jnp.maximum(y, 0.0)
        o_ref[...] = y.astype(o_ref.dtype)


def conv_taps_img(xp, w, b, taps, ho, wo, residual=None, relu=False,
                  cin_tile=None):
    """Fused KxK (dilated) stride-1 conv, im2col-free.

    xp: (N, Hp, Wp, Cin) bf16 (already spatially padded)
    w:  (n_taps, Cin, Coutp) bf16
    b:  (1 | N, Coutp) f32   (per-image bias supported -> GAP fold)
    Returns (N, ho*wo, Coutp) bf16.
    """
    n, hp, wp, cin = xp.shape
    n_taps, _, coutp = w.shape
    tc = cin_tile if cin_tile is not None else _pick_ctile(cin)
    tn = _pick_ntile(coutp)
    rows = _pick_rows(ho, wo, _rows_budget())

    # v7x: make sure at least one parallel grid axis has extent >= 2 so both
    # TensorCores get work.
    if _multi_tc() and n * (ho // rows) * (coutp // tn) < 2:
        for r in range(rows - 1, 0, -1):
            if ho % r == 0 and (r * wo) % 8 == 0:
                rows = r
                break

    tm = rows * wo
    n_bands = ho // rows
    halo = max(dy for dy, _ in taps)
    band_h = rows + halo

    # Overlapping row-bands materialized once (XLA slice+stack) so each grid
    # step DMAs only rows+halo instead of the full padded slab.  When
    # n_bands == 1 this is just an expand_dims (no copy of consequence).
    if n_bands == 1:
        xb = xp[:, None]                                    # (N, 1, Hp, Wp, C)
    else:
        xb = jnp.stack([xp[:, i * rows:i * rows + band_h]
                        for i in range(n_bands)], axis=1)   # (N, nb, bh, Wp, C)

    grid = (n, n_bands, coutp // tn, cin // tc)
    per_image_bias = b.shape[0] != 1
    bias_map = ((lambda bi, mi, ji, ki: (bi, ji)) if per_image_bias
                else (lambda bi, mi, ji, ki: (0, ji)))

    in_specs = [
        pl.BlockSpec((None, None, band_h, wp, tc),
                     lambda bi, mi, ji, ki: (bi, mi, 0, 0, ki)),
        pl.BlockSpec((n_taps, tc, tn), lambda bi, mi, ji, ki: (0, ki, ji)),
        pl.BlockSpec((1, tn), bias_map),
    ]
    args = [xb, w, b]
    if residual is not None:
        in_specs.append(pl.BlockSpec((None, tm, tn),
                                     lambda bi, mi, ji, ki: (bi, mi, ji)))
        args.append(residual)

    kernel = functools.partial(_conv_kernel, taps=tuple(taps), rows=rows, wo=wo,
                               relu=relu, img_mode=True,
                               has_res=residual is not None)
    cost = pl.CostEstimate(
        flops=2 * n * ho * wo * coutp * cin * n_taps,
        transcendentals=0,
        bytes_accessed=int(xb.size) * 2 + int(w.size) * 2 + int(b.size) * 4
                       + n * ho * wo * coutp * 2)
    return pl.pallas_call(
        kernel,
        out_shape=jax.ShapeDtypeStruct((n, ho * wo, coutp), jnp.bfloat16),
        grid_spec=pltpu.PrefetchScalarGridSpec(
            num_scalar_prefetch=0,
            grid=grid,
            in_specs=in_specs,
            out_specs=pl.BlockSpec((None, tm, tn),
                                   lambda bi, mi, ji, ki: (bi, mi, ji)),
            scratch_shapes=[pltpu.VMEM((tm, tn), jnp.float32)]),
        compiler_params=pltpu.CompilerParams(
            dimension_semantics=("parallel", "parallel", "parallel",
                                 "arbitrary"),
            vmem_limit_bytes=_vmem_limit()),
        cost_estimate=cost,
    )(*args)


def pallas_matmul(x2d, w, b, residual=None, relu=False):
    """y = act(x @ w[0] + b [+ residual]).  x2d: (M, K) bf16, w: (1, Kp, Np)
    bf16, b: (1, Np) f32.  Handles K / M padding; returns (M, Np) bf16."""
    m, k = x2d.shape
    _, kp, coutp = w.shape
    if k < kp:
        x2d = jnp.pad(x2d, ((0, 0), (0, kp - k)))
    kpad = _round_up(kp, 128)
    if kpad != kp:
        x2d = jnp.pad(x2d, ((0, 0), (0, kpad - kp)))
        w = jnp.pad(w, ((0, 0), (0, kpad - kp), (0, 0)))

    mp = _round_up(m, 8)
    tm = mp if mp <= 4096 else 2048
    mp = _round_up(mp, tm)
    if mp != m:
        x2d = jnp.pad(x2d, ((0, mp - m), (0, 0)))
        if residual is not None:
            residual = jnp.pad(residual, ((0, mp - m), (0, 0)))

    tc = _pick_ctile(kpad)
    tn = _pick_ntile(coutp)
    # v7x (2 TensorCores): split the M tile if no parallel axis has extent >= 2.
    if (_multi_tc() and (mp // tm) * (coutp // tn) < 2
            and tm >= 16 and (tm // 2) % 8 == 0):
        tm //= 2

    x3 = x2d.reshape(1, mp, kpad)
    r3 = None if residual is None else residual.reshape(1, mp, coutp)
    grid = (1, mp // tm, coutp // tn, kpad // tc)

    in_specs = [
        pl.BlockSpec((None, tm, tc), lambda bi, mi, ji, ki: (bi, mi, ki)),
        pl.BlockSpec((1, tc, tn), lambda bi, mi, ji, ki: (0, ki, ji)),
        pl.BlockSpec((1, tn), lambda bi, mi, ji, ki: (0, ji)),
    ]
    args = [x3, w, b]
    if r3 is not None:
        in_specs.append(pl.BlockSpec((None, tm, tn),
                                     lambda bi, mi, ji, ki: (bi, mi, ji)))
        args.append(r3)

    kernel = functools.partial(_conv_kernel, taps=((0, 0),), rows=1, wo=1,
                               relu=relu, img_mode=False,
                               has_res=residual is not None)
    cost = pl.CostEstimate(
        flops=2 * mp * kpad * coutp,
        transcendentals=0,
        bytes_accessed=mp * kpad * 2 + kpad * coutp * 2 + mp * coutp * 2)
    out = pl.pallas_call(
        kernel,
        out_shape=jax.ShapeDtypeStruct((1, mp, coutp), jnp.bfloat16),
        grid_spec=pltpu.PrefetchScalarGridSpec(
            num_scalar_prefetch=0,
            grid=grid,
            in_specs=in_specs,
            out_specs=pl.BlockSpec((None, tm, tn),
                                   lambda bi, mi, ji, ki: (bi, mi, ji)),
            scratch_shapes=[pltpu.VMEM((tm, tn), jnp.float32)]),
        compiler_params=pltpu.CompilerParams(
            dimension_semantics=("parallel", "parallel", "parallel",
                                 "arbitrary"),
            vmem_limit_bytes=_vmem_limit()),
        cost_estimate=cost,
    )(*args)
    return out[0, :m]


# ----------------------------------------------------------------------------
# Conv wrapper (layout glue only; all FLOPs run in the Pallas kernels)
# ----------------------------------------------------------------------------

def conv2d(x, p, stride=1, padding=0, dilation=1, relu=False, residual=None):
    # x: (N, H, W, Cin) bf16 ; p["w"]: (KH*KW, Cin, Coutp) bf16 ; p["b"]: (1, Coutp) f32
    w, b = p["w"], p["b"]
    n, h, wd, cin = x.shape
    n_taps, _, coutp = w.shape
    kh = kw = int(round(math.sqrt(n_taps)))
    ho = (h + 2 * padding - dilation * (kh - 1) - 1) // stride + 1
    wo = (wd + 2 * padding - dilation * (kw - 1) - 1) // stride + 1

    if n_taps == 1:                                   # 1x1 conv -> plain matmul
        xs = (x if stride == 1 else x[:, ::stride, ::stride, :])
        xs = xs.reshape(n * ho * wo, cin)
        r = None if residual is None else residual.reshape(n * ho * wo, coutp)
        y = pallas_matmul(xs, w, b, residual=r, relu=relu)
        return y.reshape(n, ho, wo, coutp)

    xp = jnp.pad(x, ((0, 0), (padding, padding), (padding, padding), (0, 0)))

    if stride == 1:                                   # im2col-free fused taps
        taps = tuple((ky * dilation, kx * dilation)
                     for ky in range(kh) for kx in range(kw))
        r = None if residual is None else residual.reshape(n, ho * wo, coutp)
        y = conv_taps_img(xp, w, b, taps, ho, wo, residual=r, relu=relu)
        return y.reshape(n, ho, wo, coutp)

    # Strided KxK conv: only conv1 (7x7/2) and layer2.0.conv2 (3x3/2).
    # A small one-off im2col is acceptable here (tiny Cin / single layer).
    cols = []
    for ky in range(kh):
        for kx in range(kw):
            y0, x0 = ky * dilation, kx * dilation
            cols.append(xp[:, y0:y0 + (ho - 1) * stride + 1:stride,
                           x0:x0 + (wo - 1) * stride + 1:stride, :])
    patches = jnp.concatenate(cols, axis=-1).reshape(n * ho * wo, n_taps * cin)
    r = None if residual is None else residual.reshape(n * ho * wo, coutp)
    y = pallas_matmul(patches, w.reshape(1, n_taps * cin, coutp), b,
                      residual=r, relu=relu)
    return y.reshape(n, ho, wo, coutp)


# ----------------------------------------------------------------------------
# Deterministic synthetic parameters (He init; BN folded w/ identity stats).
# Weights are stored pre-reshaped (taps, Cin_pad, Cout_pad) in bf16, biases f32.
# 64-channel tensors are zero-padded to 128 so every tile is lane-dense.
# ----------------------------------------------------------------------------

class ParamGen:
    def __init__(self, seed=0):
        self.base = jax.random.PRNGKey(seed)
        self.count = 0

    def next(self):
        k = jax.random.fold_in(self.base, self.count)
        self.count += 1
        return k


_BN_SCALE = 1.0 / math.sqrt(1.0 + 1e-5)   # gamma=1, beta=0, mean=0, var=1


def conv_bn(pg, kh, kw, cin, cout, cin_pad=None, cout_pad=None):
    cin_pad = cin if cin_pad is None else cin_pad
    cout_pad = cout if cout_pad is None else cout_pad
    w = jax.random.normal(pg.next(), (kh, kw, cin, cout), jnp.float32)
    w = w * np.float32(math.sqrt(2.0 / (kh * kw * cin)) * _BN_SCALE)
    w = jnp.pad(w.reshape(kh * kw, cin, cout),
                ((0, 0), (0, cin_pad - cin), (0, cout_pad - cout)))
    return {"w": w.astype(jnp.bfloat16),
            "b": jnp.zeros((1, cout_pad), jnp.float32)}


def conv_bias(pg, kh, kw, cin, cout, cout_pad):
    w = jax.random.normal(pg.next(), (kh, kw, cin, cout), jnp.float32)
    w = w * np.float32(math.sqrt(2.0 / (kh * kw * cin)))
    b = 0.01 * jax.random.normal(pg.next(), (cout,), jnp.float32)
    wp = jnp.pad(w.reshape(kh * kw, cin, cout),
                 ((0, 0), (0, 0), (0, cout_pad - cout))).astype(jnp.bfloat16)
    bp = jnp.pad(b, (0, cout_pad - cout)).reshape(1, cout_pad)
    return {"w": wp, "b": bp}


def make_bottleneck(pg, inplanes, planes, has_downsample, in_pad, mid_pad):
    p = {"conv1": conv_bn(pg, 1, 1, inplanes, planes,
                          cin_pad=in_pad, cout_pad=mid_pad),
         "conv2": conv_bn(pg, 3, 3, planes, planes,
                          cin_pad=mid_pad, cout_pad=mid_pad),
         "conv3": conv_bn(pg, 1, 1, planes, planes * 4, cin_pad=mid_pad)}
    if has_downsample:
        p["downsample"] = conv_bn(pg, 1, 1, inplanes, planes * 4, cin_pad=in_pad)
    return p


def make_layer(pg, inplanes, planes, blocks, in_pad):
    mid_pad = max(planes, 128)            # never expose 64-wide tiles (review)
    params = [make_bottleneck(pg, inplanes, planes, True, in_pad, mid_pad)]
    for _ in range(blocks - 1):
        params.append(make_bottleneck(pg, planes * 4, planes, False,
                                      planes * 4, mid_pad))
    return params


def make_deeplab_params(num_classes, seed=0):
    pg = ParamGen(seed)
    ncp = _round_up(num_classes, 128)       # lane-dense padded head width
    params = {
        "conv1": conv_bn(pg, 7, 7, 3, 64, cout_pad=128),   # stem out 64 -> 128
        "layer1": make_layer(pg, 64, 64, 3, in_pad=128),
        "layer2": make_layer(pg, 256, 128, 4, in_pad=256),
        "layer3": make_layer(pg, 512, 256, 23, in_pad=512),   # ResNet-101
        "layer4": make_layer(pg, 1024, 512, 3, in_pad=1024),
    }
    aspp = [conv_bias(pg, 1, 1, 2048, num_classes, ncp),
            conv_bias(pg, 3, 3, 2048, num_classes, ncp),
            conv_bias(pg, 3, 3, 2048, num_classes, ncp),
            conv_bias(pg, 3, 3, 2048, num_classes, ncp)]
    params["gap"] = conv_bias(pg, 1, 1, 2048, num_classes, ncp)
    # Fuse the four ASPP branches into a single 28-tap conv (outputs are summed).
    params["aspp"] = {"w": jnp.concatenate([a["w"] for a in aspp], axis=0),
                      "b": sum(a["b"] for a in aspp)}
    return params


# Per-tap (dy, dx) offsets of the fused ASPP conv inside a pad-18 frame:
#   aspp1: 1x1                           -> (18, 18)
#   aspp2/3/4: 3x3, d=6/12/18, padding=d -> (18-d) + k*d
_ASPP_TAPS = tuple([(18, 18)] + [(18 - d + ky * d, 18 - d + kx * d)
                                 for d in (6, 12, 18)
                                 for ky in range(3) for kx in range(3)])


def _bilinear_resize_ac(x, out_h, out_w):
    """align_corners=True bilinear resize of (N, H, W, C) f32 -> (N, out_h, out_w, C).
    Memory-bound 2-tap lerp in XLA (per perf review) - no MXU, no transposes."""
    def axis_interp(v, size, out, axis):
        if size == 1:
            return jnp.repeat(v, out, axis=axis)
        pos = jnp.arange(out, dtype=jnp.float32) * ((size - 1) / (out - 1))
        lo = jnp.clip(jnp.floor(pos).astype(jnp.int32), 0, size - 2)
        frac = pos - lo.astype(jnp.float32)
        lo_v = jnp.take(v, lo, axis=axis)
        hi_v = jnp.take(v, lo + 1, axis=axis)
        shp = [1] * v.ndim
        shp[axis] = out
        frac = frac.reshape(shp)
        return lo_v * (1.0 - frac) + hi_v * frac

    x = axis_interp(x, x.shape[1], out_h, axis=1)
    x = axis_interp(x, x.shape[2], out_w, axis=2)
    return x


# ----------------------------------------------------------------------------
# Forward pass (stage-level jit: glue ops fused by XLA, kernels reused across
# identically shaped bottlenecks via jit's compilation cache)
# ----------------------------------------------------------------------------

@jax.jit
def stem_forward(x_nchw, p):
    x = jnp.transpose(x_nchw, (0, 2, 3, 1)).astype(jnp.bfloat16)   # NCHW->NHWC
    h = conv2d(x, p, stride=2, padding=3, relu=True)               # 7x7/2 + BN + ReLU
    # MaxPool 3x3/2 pad 1 (ceil_mode=False, matching torchvision resnet):
    # overlapping strided windows -> lax.reduce_window (reviewer-endorsed).
    h = lax.reduce_window(h, jnp.array(-jnp.inf, h.dtype), lax.max,
                          (1, 3, 3, 1), (1, 2, 2, 1),
                          ((0, 0), (1, 1), (1, 1), (0, 0)))
    return h


@functools.partial(jax.jit, static_argnames=("stride", "dilation"))
def bottleneck_forward(x, p, stride, dilation):
    out = conv2d(x, p["conv1"], relu=True)
    out = conv2d(out, p["conv2"], stride=stride, padding=dilation,
                 dilation=dilation, relu=True)
    identity = (conv2d(x, p["downsample"], stride=stride)
                if "downsample" in p else x)
    # residual add + final ReLU fused into the conv3 Pallas kernel
    return conv2d(out, p["conv3"], residual=identity, relu=True)


@functools.partial(jax.jit, static_argnames=("num_classes",))
def head_forward(h, aspp_p, gap_p, num_classes):
    n, fh, fw, _ = h.shape
    ncp = gap_p["w"].shape[-1]

    # Global-average-pool branch; upsampling a 1x1 map with align_corners=True
    # bilinear is an exact broadcast, so the GAP logits fold straight into the
    # (per-image) bias of the fused ASPP kernel - no residual stream needed.
    gap = jnp.mean(h.astype(jnp.float32), axis=(1, 2)).astype(jnp.bfloat16)
    gap = pallas_matmul(gap, gap_p["w"], gap_p["b"])               # (N, ncp)
    b_img = aspp_p["b"] + gap.astype(jnp.float32)                  # (N, ncp)

    # Fused ASPP: all 28 taps of the four branches accumulate into one output;
    # the 2048-channel feature map is streamed once per Cout tile.
    hp = jnp.pad(h, ((0, 0), (18, 18), (18, 18), (0, 0)))
    s = conv_taps_img(hp, aspp_p["w"], b_img, _ASPP_TAPS, fh, fw, relu=False)
    s = s.reshape(n, fh, fw, ncp)[..., :num_classes].astype(jnp.float32)

    # Final align_corners=True bilinear resize to (512, 1024) in f32.
    out = _bilinear_resize_ac(s, 512, 1024)                        # (N, 512, 1024, nc)
    return jnp.transpose(out, (0, 3, 1, 2))


def deeplab_v2_forward(params, x_nchw, num_classes):
    h = stem_forward(x_nchw, params["conv1"])
    for blk in params["layer1"]:
        h = bottleneck_forward(h, blk, stride=1, dilation=1)
    for i, blk in enumerate(params["layer2"]):
        h = bottleneck_forward(h, blk, stride=2 if i == 0 else 1, dilation=1)
    # DeepLab modifications: stride 1 + dilation 2 / 4 in layer3 / layer4
    for blk in params["layer3"]:
        h = bottleneck_forward(h, blk, stride=1, dilation=2)
    for blk in params["layer4"]:
        h = bottleneck_forward(h, blk, stride=1, dilation=4)
    return head_forward(h, params["aspp"], params["gap"],
                        num_classes=num_classes)


if __name__ == "__main__":
    num_classes = 4
    params = make_deeplab_params(num_classes, seed=0)
    x = jax.random.normal(jax.random.PRNGKey(0), (1, 3, 64, 64), jnp.float32)
    out = deeplab_v2_forward(params, x, num_classes)
    out = jax.block_until_ready(out)
    assert out.shape == (1, num_classes, 512, 1024), out.shape
    assert bool(jnp.all(jnp.isfinite(out)))
    print("KERNEL_OK")
</pallas_src>

<mosaic_0001>
module attributes {stable_mosaic.version = 11 : i64} {
  func.func @_conv_kernel(%arg0: i32, %arg1: i32, %arg2: i32, %arg3: i32, %arg4: memref<1x1024x128xbf16, #tpu.memory_space<vmem>>, %arg5: memref<1x128x128xbf16, #tpu.memory_space<vmem>>, %arg6: memref<1x128xf32, #tpu.memory_space<vmem>>, %arg7: memref<1x1024x128xbf16, #tpu.memory_space<vmem>>, %arg8: memref<1024x128xf32, #tpu.memory_space<vmem>>) attributes {dimension_semantics = [#tpu.dimension_semantics<parallel>, #tpu.dimension_semantics<parallel>, #tpu.dimension_semantics<parallel>, #tpu.dimension_semantics<arbitrary>], iteration_bounds = array<i64: 1, 1, 1, 2>, scalar_prefetch = 0 : i64, scratch_operands = 1 : i64, tpu.core_type = #tpu.core_type<tc>, window_params = [{transform_indices = @transform_0, window_bounds = array<i64: 1, 1024, 128>}, {transform_indices = @transform_1, window_bounds = array<i64: 1, 128, 128>}, {transform_indices = @transform_2, window_bounds = array<i64: 1, 128>}, {transform_indices = @transform_3, window_bounds = array<i64: 1, 1024, 128>}]} {
    %c0_i32 = arith.constant 0 : i32
    %0 = arith.cmpi eq, %arg3, %c0_i32 : i32
    %1 = arith.extui %0 : i1 to i32
    %c0_i32_0 = arith.constant 0 : i32
    %2 = arith.cmpi ne, %1, %c0_i32_0 : i32
    scf.if %2 {
      %cst_11 = arith.constant 0.000000e+00 : f32
      %14 = vector.broadcast %cst_11 : f32 to vector<1024x128xf32>
      %c0_12 = arith.constant 0 : index
      %c0_13 = arith.constant 0 : index
      %15 = vector.load %arg8[%c0_12, %c0_13] : memref<1024x128xf32, #tpu.memory_space<vmem>>, vector<1024x128xf32>
      tpu.vector_store %arg8[%c0_12, %c0_13], %14 {strides = array<i32>} : memref<1024x128xf32, #tpu.memory_space<vmem>>, vector<1024x128xf32>,
    } else {
    }
    %c0 = arith.constant 0 : index
    %c0_1 = arith.constant 0 : index
    %3 = vector.load %arg8[%c0, %c0_1] : memref<1024x128xf32, #tpu.memory_space<vmem>>, vector<1024x128xf32>
    %c0_2 = arith.constant 0 : index
    %c0_3 = arith.constant 0 : index
    %c0_4 = arith.constant 0 : index
    %4 = vector.load %arg4[%c0_2, %c0_3, %c0_4] : memref<1x1024x128xbf16, #tpu.memory_space<vmem>>, vector<1x1024x128xbf16>
    %5 = vector.shape_cast %4 : vector<1x1024x128xbf16> to vector<1024x128xbf16>
    %c0_5 = arith.constant 0 : index
    %c0_6 = arith.constant 0 : index
    %c0_7 = arith.constant 0 : index
    %6 = vector.load %arg5[%c0_5, %c0_6, %c0_7] : memref<1x128x128xbf16, #tpu.memory_space<vmem>>, vector<1x128x128xbf16>
    %7 = vector.shape_cast %6 : vector<1x128x128xbf16> to vector<128x128xbf16>
    %cst = arith.constant dense<0.000000e+00> : vector<1024x128xf32>
    %8 = tpu.matmul %5, %7, %cst {dimension_numbers = #tpu.dot_dimension_numbers<[1], [0], [0], [1], [0, 0, 1, 1], [], []>} : vector<1024x128xbf16>, vector<128x128xbf16>, vector<1024x128xf32> -> vector<1024x128xf32>
    %9 = arith.addf %3, %8 : vector<1024x128xf32>
    %c0_8 = arith.constant 0 : index
    %c0_9 = arith.constant 0 : index
    %10 = vector.load %arg8[%c0_8, %c0_9] : memref<1024x128xf32, #tpu.memory_space<vmem>>, vector<1024x128xf32>
    tpu.vector_store %arg8[%c0_8, %c0_9], %9 {strides = array<i32>} : memref<1024x128xf32, #tpu.memory_space<vmem>>, vector<1024x128xf32>,
    %c1_i32 = arith.constant 1 : i32
    %11 = arith.cmpi eq, %arg3, %c1_i32 : i32
    %12 = arith.extui %11 : i1 to i32
    %c0_i32_10 = arith.constant 0 : i32
    %13 = arith.cmpi ne, %12, %c0_i32_10 : i32
    scf.if %13 {
      %c0_11 = arith.constant 0 : index
      %c0_12 = arith.constant 0 : index
      %14 = vector.load %arg8[%c0_11, %c0_12] : memref<1024x128xf32, #tpu.memory_space<vmem>>, vector<1024x128xf32>
      %c0_13 = arith.constant 0 : index
      %c0_14 = arith.constant 0 : index
      %15 = vector.load %arg6[%c0_13, %c0_14] : memref<1x128xf32, #tpu.memory_space<vmem>>, vector<1x128xf32>
      %16 = vector.broadcast %15 : vector<1x128xf32> to vector<1024x128xf32>
      %17 = arith.addf %14, %16 : vector<1024x128xf32>
      %cst_15 = arith.constant 0.000000e+00 : f32
      %18 = vector.broadcast %cst_15 : f32 to vector<1024x128xf32>
      %19 = arith.maximumf %17, %18 : vector<1024x128xf32>
      %20 = arith.truncf %19 : vector<1024x128xf32> to vector<1024x128xbf16>
      %c0_16 = arith.constant 0 : index
      %c0_17 = arith.constant 0 : index
      %c0_18 = arith.constant 0 : index
      %21 = vector.load %arg7[%c0_16, %c0_17, %c0_18] : memref<1x1024x128xbf16, #tpu.memory_space<vmem>>, vector<1x1024x128xbf16>
      %22 = vector.shape_cast %21 : vector<1x1024x128xbf16> to vector<1024x128xbf16>
      %23 = vector.shape_cast %20 : vector<1024x128xbf16> to vector<1x1024x128xbf16>
      tpu.vector_store %arg7[%c0_16, %c0_17, %c0_18], %23 {strides = array<i32>} : memref<1x1024x128xbf16, #tpu.memory_space<vmem>>, vector<1x1024x128xbf16>,
    } else {
    }
    return
  }
  func.func @transform_0(%arg0: i32, %arg1: i32, %arg2: i32, %arg3: i32) -> (i32, i32, i32) {
    %c0_i32 = arith.constant 0 : i32
    return %arg0, %arg1, %arg3 : i32, i32, i32
  }
  func.func @transform_1(%arg0: i32, %arg1: i32, %arg2: i32, %arg3: i32) -> (i32, i32, i32) {
    %c0_i32 = arith.constant 0 : i32
    %c0_i32_0 = arith.constant 0 : i32
    return %c0_i32, %arg3, %arg2 : i32, i32, i32
  }
  func.func @transform_2(%arg0: i32, %arg1: i32, %arg2: i32, %arg3: i32) -> (i32, i32) {
    %c0_i32 = arith.constant 0 : i32
    %c0_i32_0 = arith.constant 0 : i32
    return %c0_i32, %arg2 : i32, i32
  }
  func.func @transform_3(%arg0: i32, %arg1: i32, %arg2: i32, %arg3: i32) -> (i32, i32, i32) {
    %c0_i32 = arith.constant 0 : i32
    return %arg0, %arg1, %arg2 : i32, i32, i32
  }
}

</mosaic_0001>

<llo_original>
// kernel: stem_forward.1
$region0: #{stem_forward.1}
  #allocation0 [shape = 'u32[]', space=smem, size = 0x4, offset = 0x4, fixed_abs, tag = 'smem constant byte address 0x4 - core index']
  #allocation1 [shape = 'u32[144,128]{1,0:T(1,128)}', space=vmem, size = 0x12000, scoped, tag = 'internal scratch']
  #allocation2 [shape = 'f32[1024,128]{1,0:T(8,128)}', space=vmem, size = 0x80000, scoped, tag = 'scratch operand']
  %s0 = inlined_call_operand.hbm [shape: bf16[1,1024,256], index: 0, kind: input, shape index: {}]
  %s1 = inlined_call_operand.hbm [shape: bf16[1,256,128], index: 1, kind: input, shape index: {}]
  %s2 = inlined_call_operand.hbm [shape: f32[1,128], index: 2, kind: input, shape index: {}]
  %s3 = inlined_call_operand.hbm [shape: bf16[1,1024,128], index: 3, kind: output, shape index: {}]
  %s4 = sld [smem:[#allocation0]]
  $region65: #{stem_forward.1} parent=0
    _
  %s6 = ssub.s32 1, %s4
  %s7 = scalar_select 0, %s6, %s4
  $region1: #{stem_forward.1} parent=0
    #allocation3 [shape = 'u8[524288]{0}', space=vmem, size = 0x80000, scoped, tag = 'input window, operand 0']
    #allocation4 [shape = 's32[2]{0}', space=sflag, size = 0x8, scoped, tag = 'scoped memory for stem_forward.1']
    #allocation5 [shape = 's32[2]{0}', space=sflag, size = 0x8, scoped, tag = 'scoped memory for stem_forward.1']
    #allocation6 [shape = 'u8[65536]{0}', space=vmem, size = 0x10000, scoped, tag = 'input window, operand 1']
    #allocation7 [shape = 's32[2]{0}', space=sflag, size = 0x8, scoped, tag = 'scoped memory for stem_forward.1']
    #allocation8 [shape = 'u8[512]{0}', space=vmem, size = 0x400, scoped, tag = 'input window, operand 2, single buffered']
    #allocation9 [shape = 'u8[262144]{0}', space=vmem, size = 0x40000, scoped, tag = 'output window, operand 0, single buffered']
    %8 = vsyncpa [#allocation4], 0
    %s9 = scalar_lea.sflag [#allocation4], 1
    %10 = vsyncpa %s9, 0
    %11 = vsyncpa [#allocation7], 0
    %s12 = scalar_lea.sflag [#allocation7], 1
    %13 = vsyncpa %s12, 0
    %14 = vsyncpa [#allocation5], 0
    loop: start=0, step=1, limit=4
    $region2: #{stem_forward.1} parent=1 // loop_pre_header
      _
    $region3: #{stem_forward.1} parent=1 // loop_header
      %s16 = sphi 0, %s20
      %p17 = scmp.ge.s32.totalorder %s16, 4
      %s23 = sphi 0, %s49
      %s24 = sphi 0, %s45
      %s25 = sphi 0, %s41
      %s26 = sphi 0, %s37
      %s27 = sphi 0, %s23
      %s28 = sphi 0, %s24
      %s29 = sphi 0, %s25
      %s30 = sphi 0, %s26
      %s31 = sphi 0, %s27
      %s32 = sphi 0, %s28
      %s33 = sphi 0, %s29
      %s34 = sphi 0, %s30
      %s56 = sphi 0, %s58
      %s59 = sphi 0, %s56
      %s60 = sphi 0, %s59
      %s76 = sphi 0, %s60
      %s84 = sphi 0, %s86
      %s87 = sphi 0, %s84
      %s88 = sphi 0, %s87
      %s104 = sphi 0, %s88
      %s110 = sphi 0, %s112
      %s113 = sphi 0, %s110
      %s114 = sphi 0, %s113
      %s130 = sphi 0, %s114
      %s140 = sphi 0, %s142
      %s143 = sphi 0, %s140
      %s144 = sphi 0, %s143
      %s160 = sphi 0, %s144
    $region4: #{stem_forward.1} parent=1 // loop_header_branch
      %19 = sbr.rel (%p17) target = $region8
    $region5: #{stem_forward.1} parent=1 // loop_body
      %s21 = ssub.s32 %s16, 1
      %s22 = ssub.s32 %s16, 2
      %s35 = sadd.s32 1, %s26
      %p36 = scmp.ge.s32.totalorder %s35, 2
      %s37 = scalar_select %p36, 0, %s35
      %s38 = sadd.s32 1, %s25
      %s39 = scalar_select %p36, %s38, %s25
      %p40 = scmp.ge.s32.totalorder %s39, 1
      %s41 = scalar_select %p40, 0, %s39
      %s42 = sadd.s32 1, %s24
      %s43 = scalar_select %p40, %s42, %s24
      %p44 = scmp.ge.s32.totalorder %s43, 1
      %s45 = scalar_select %p44, 0, %s43
      %s46 = sadd.s32 1, %s23
      %s47 = scalar_select %p44, %s46, %s23
      %p48 = scmp.ge.s32.totalorder %s47, 1
      %s49 = scalar_select %p48, 0, %s47
      %s50 = ssub.s32 %s23, %s49
      %s51 = ssub.s32 %s24, %s45
      %s52 = sor.u32 %s50, %s51
      %s53 = ssub.s32 %s26, %s37
      %s54 = sor.u32 %s52, %s53
      %p55 = scmp.eq.s32.totalorder %s54, 0
      %s57 = sadd.s32 %s56, 1
      %s58 = scalar_select %p55, %s56, %s57
      %p61 = pneg %p55
      %p62 = scmp.eq.s32.totalorder %s16, 1
      %p63 = por %p61, %p62
      %p64 = scmp.ne.s32.totalorder %s56, %s59
      %p65 = scmp.eq.s32.totalorder %s16, 0
      %p66 = por %p64, %p65
      %p67 = scmp.ne.s32.totalorder %s56, %s59
      %p68 = scmp.eq.s32.totalorder %s21, 1
      %p69 = por %p67, %p68
      %p70 = scmp.ne.s32.totalorder %s59, %s60
      %p71 = scmp.eq.s32.totalorder %s21, 0
      %p72 = por %p70, %p71
      %p73 = scmp.ne.s32.totalorder %s59, %s60
      %p74 = scmp.eq.s32.totalorder %s22, 1
      %p75 = por %p73, %p74
      %p77 = scmp.ne.s32.totalorder %s60, %s76
      %p78 = scmp.eq.s32.totalorder %s22, 0
      %p79 = por %p77, %p78
      %s80 = ssub.s32 %s26, %s37
      %s81 = ssub.s32 %s25, %s41
      %s82 = sor.u32 %s80, %s81
      %p83 = scmp.eq.s32.totalorder %s82, 0
      %s85 = sadd.s32 %s84, 1
      %s86 = scalar_select %p83, %s84, %s85
      %p89 = pneg %p83
      %p90 = scmp.eq.s32.totalorder %s16, 1
      %p91 = por %p89, %p90
      %p92 = scmp.ne.s32.totalorder %s84, %s87
      %p93 = scmp.eq.s32.totalorder %s16, 0
      %p94 = por %p92, %p93
      %p95 = scmp.ne.s32.totalorder %s84, %s87
      %p96 = scmp.eq.s32.totalorder %s21, 1
      %p97 = por %p95, %p96
      %p98 = scmp.ne.s32.totalorder %s87, %s88
      %p99 = scmp.eq.s32.totalorder %s21, 0
      %p100 = por %p98, %p99
      %p101 = scmp.ne.s32.totalorder %s87, %s88
      %p102 = scmp.eq.s32.totalorder %s22, 1
      %p103 = por %p101, %p102
      %p105 = scmp.ne.s32.totalorder %s88, %s104
      %p106 = scmp.eq.s32.totalorder %s22, 0
      %p107 = por %p105, %p106
      %s108 = ssub.s32 %s25, %s41
      %p109 = scmp.eq.s32.totalorder %s108, 0
      %s111 = sadd.s32 %s110, 1
      %s112 = scalar_select %p109, %s110, %s111
      %p115 = pneg %p109
      %p116 = scmp.eq.s32.totalorder %s16, 1
      %p117 = por %p115, %p116
      %p118 = scmp.ne.s32.totalorder %s110, %s113
      %p119 = scmp.eq.s32.totalorder %s16, 0
      %p120 = por %p118, %p119
      %p121 = scmp.ne.s32.totalorder %s110, %s113
      %p122 = scmp.eq.s32.totalorder %s21, 1
      %p123 = por %p121, %p122
      %p124 = scmp.ne.s32.totalorder %s113, %s114
      %p125 = scmp.eq.s32.totalorder %s21, 0
      %p126 = por %p124, %p125
      %p127 = scmp.ne.s32.totalorder %s113, %s114
      %p128 = scmp.eq.s32.totalorder %s22, 1
      %p129 = por %p127, %p128
      %p131 = scmp.ne.s32.totalorder %s114, %s130
      %p132 = scmp.eq.s32.totalorder %s22, 0
      %p133 = por %p131, %p132
      %s134 = ssub.s32 %s23, %s49
      %s135 = ssub.s32 %s24, %s45
      %s136 = sor.u32 %s134, %s135
      %s137 = ssub.s32 %s25, %s41
      %s138 = sor.u32 %s136, %s137
      %p139 = scmp.eq.s32.totalorder %s138, 0
      %s141 = sadd.s32 %s140, 1
      %s142 = scalar_select %p139, %s140, %s141
      %p145 = pneg %p139
      %p146 = scmp.eq.s32.totalorder %s16, 1
      %p147 = por %p145, %p146
      %p148 = scmp.ne.s32.totalorder %s140, %s143
      %p149 = scmp.eq.s32.totalorder %s16, 0
      %p150 = por %p148, %p149
      %p151 = scmp.ne.s32.totalorder %s140, %s143
      %p152 = scmp.eq.s32.totalorder %s21, 1
      %p153 = por %p151, %p152
      %p154 = scmp.ne.s32.totalorder %s143, %s144
      %p155 = scmp.eq.s32.totalorder %s21, 0
      %p156 = por %p154, %p155
      %p157 = scmp.ne.s32.totalorder %s143, %s144
      %p158 = scmp.eq.s32.totalorder %s22, 1
      %p159 = por %p157, %p158
      %p161 = scmp.ne.s32.totalorder %s144, %s160
      %p162 = scmp.eq.s32.totalorder %s22, 0
      %p163 = por %p161, %p162
      %p164 = scmp.le.s32.totalorder 1, %s16
      %p165 = scmp.lt.s32.totalorder %s16, 3
      %p166 = pnand %p164, %p165
      %p167 = pneg %p166
      // Predicated region
      $region9: #{stem_forward.1} parent=5 // pred_check
        _
      $region10: #{stem_forward.1} parent=5 // pred_check_branch
        %169 = sbr.rel (%p166) target = $region12
      $region11: #{stem_forward.1} parent=5 // pred_region
        %s170 = ssub.s32 %s16, 1
        // Predicated region
        $region13: #{stem_forward.1} parent=11 // pred_check
          %p171 = pneg %p126
        $region14: #{stem_forward.1} parent=11 // pred_check_branch
          %173 = sbr.rel (%p171) target = $region16
        $region15: #{stem_forward.1} parent=11 // pred_region
          %s175 = ssub.s32 16, 16
          %176 = vsyncadd [#allocation7], %s175
          %s177 = smul.addr %s29, 16
          %s178 = scalar_lea.hbm %s2, %s177
          %s180 = sshll.u32 [#allocation8], 4
          %s181 = int_to_ptr.vmem [resolvable:$true] %s180
          %183 = dma.hbm_to_vmem [thread:$0]  %s178, 16, %s181, [#allocation7]
        $region16: #{stem_forward.1} parent=11 // pred_fallthru
          _
      $region12: #{stem_forward.1} parent=5 // pred_fallthru
        _
      %p184 = scmp.lt.s32.totalorder %s16, 2
      // Predicated region
      $region17: #{stem_forward.1} parent=5 // pred_check
        %p185 = pneg %p184
      $region18: #{stem_forward.1} parent=5 // pred_check_branch
        %187 = sbr.rel (%p185) target = $region20
      $region19: #{stem_forward.1} parent=5 // pred_region
        // Predicated region
        $region21: #{stem_forward.1} parent=19 // pred_check
          %p188 = pneg %p66
        $region22: #{stem_forward.1} parent=19 // pred_check_branch
          %190 = sbr.rel (%p188) target = $region24
        $region23: #{stem_forward.1} parent=19 // pred_region
          %s191 = sand.u32 %s56, 1
          %s192 = scalar_lea.sflag [#allocation4], %s191
          %s193 = sand.u32 %s56, 1
          %s194 = smul.addr %s193, 512
          %s195 = scalar_lea.vmem [#allocation3], %s194
          %s196 = smul.u32 128, %s24
          %s198 = ssub.s32 8192, 8192
          %199 = vsyncadd %s192, %s198
          %s200 = smul.addr %s196, 2
          %s201 = sadd.s32 %s26, %s200
          %s202 = smul.addr %s23, 256
          %s203 = sadd.s32 %s201, %s202
          %s204 = smul.addr %s203, 64
          %s205 = scalar_lea.hbm %s0, %s204
          %s206 = sshll.u32 %s195, 4
          %s207 = int_to_ptr.vmem [resolvable:$true] %s206
          %212 = dma.hbm_to_vmem [thread:$0]  %s205, 8192, %s207, %s192, 128, 64, 4
        $region24: #{stem_forward.1} parent=19 // pred_fallthru
          _
        // Predicated region
        $region25: #{stem_forward.1} parent=19 // pred_check
          %p213 = pneg %p94
        $region26: #{stem_forward.1} parent=19 // pred_check_branch
          %215 = sbr.rel (%p213) target = $region28
        $region27: #{stem_forward.1} parent=19 // pred_region
          %s216 = sand.u32 %s16, 1
          %s217 = scalar_lea.sflag [#allocation7], %s216
          %s218 = sand.u32 %s84, 1
          %s219 = smul.addr %s218, 64
          %s220 = scalar_lea.vmem [#allocation6], %s219
          %s221 = smul.u32 16, %s26
          %s223 = ssub.s32 1024, 1024
          %224 = vsyncadd %s217, %s223
          %s225 = sadd.s32 %s25, %s221
          %s226 = smul.addr %s225, 64
          %s227 = scalar_lea.hbm %s1, %s226
          %s228 = sshll.u32 %s220, 4
          %s229 = int_to_ptr.vmem [resolvable:$true] %s228
          %234 = dma.hbm_to_vmem [thread:$0]  %s227, 1024, %s229, %s217, 64, 64, 4
        $region28: #{stem_forward.1} parent=19 // pred_fallthru
          _
      $region20: #{stem_forward.1} parent=5 // pred_fallthru
        _
      %p235 = scmp.le.s32.totalorder 1, %s16
      %p236 = scmp.lt.s32.totalorder %s16, 3
      %p237 = pnand %p235, %p236
      %p238 = pneg %p237
      // Predicated region
      $region29: #{stem_forward.1} parent=5 // pred_check
        _
      $region30: #{stem_forward.1} parent=5 // pred_check_branch
        %240 = sbr.rel (%p237) target = $region32
      $region31: #{stem_forward.1} parent=5 // pred_region
        %s241 = ssub.s32 %s16, 1
        %s242 = sand.u32 %s59, 1
        %s243 = scalar_lea.sflag [#allocation4], %s242
        %s244 = sand.u32 %s59, 1
        %s245 = smul.addr %s244, 512
        %s246 = scalar_lea.vmem [#allocation3], %s245
        // Predicated region
        $region33: #{stem_forward.1} parent=31 // pred_check
          %p247 = pneg %p72
        $region34: #{stem_forward.1} parent=31 // pred_check_branch
          %249 = sbr.rel (%p247) target = $region36
        $region35: #{stem_forward.1} parent=31 // pred_region
          %250 = dma.done %s243, 8192
        $region36: #{stem_forward.1} parent=31 // pred_fallthru
          _
        %s251 = sand.u32 %s21, 1
        %s252 = scalar_lea.sflag [#allocation7], %s251
        %s253 = sand.u32 %s87, 1
        %s254 = smul.addr %s253, 64
        %s255 = scalar_lea.vmem [#allocation6], %s254
        // Predicated region
        $region37: #{stem_forward.1} parent=31 // pred_check
          %p256 = pneg %p100
        $region38: #{stem_forward.1} parent=31 // pred_check_branch
          %258 = sbr.rel (%p256) target = $region40
        $region39: #{stem_forward.1} parent=31 // pred_region
          %259 = dma.done %s252, 1024
        $region40: #{stem_forward.1} parent=31 // pred_fallthru
          _
        // Predicated region
        $region41: #{stem_forward.1} parent=31 // pred_check
          %p260 = pneg %p126
        $region42: #{stem_forward.1} parent=31 // pred_check_branch
          %262 = sbr.rel (%p260) target = $region44
        $region43: #{stem_forward.1} parent=31 // pred_region
          %263 = dma.done [#allocation7], 16
        $region44: #{stem_forward.1} parent=31 // pred_fallthru
          _
        %s264 = sand.u32 %s59, 1
        %s265 = scalar_lea.sflag [#allocation4], %s264
        %s266 = sand.u32 %s59, 1
        %s267 = smul.addr %s266, 512
        %s268 = scalar_lea.vmem [#allocation3], %s267
        %p269 = pneg %p72
        %p270 = pneg %p69
        %s271 = sand.u32 %s21, 1
        %s272 = scalar_lea.sflag [#allocation7], %s271
        %s273 = sand.u32 %s87, 1
        %s274 = smul.addr %s273, 64
        %s275 = scalar_lea.vmem [#allocation6], %s274
        %p276 = pneg %p100
        %p277 = pneg %p97
        %p278 = pneg %p126
        %p279 = pneg %p123
        %p280 = pneg %p156
        %p281 = pneg %p153
        %s282 = smul.u32 128, %s28
        %s283 = smul.u32 16, %s30
        %s284 = smul.u32 128, %s28
        %p286 = scmp.eq.s32.totalorder %s30, 0
        // Predicated region
        $region45: #{stem_forward.1} parent=31 // pred_check
          %p287 = pneg %p286
        $region46: #{stem_forward.1} parent=31 // pred_check_branch
          %289 = sbr.rel (%p287) target = $region48
        $region47: #{stem_forward.1} parent=31 // pred_region
          %290 = vst [vmem:[#allocation2] sm:$0xff] 0.0
          %291 = vst [vmem:[#allocation2 + $0x8] sm:$0xff] 0.0
          %292 = vst [vmem:[#allocation2 + $0x10] sm:$0xff] 0.0
          %293 = vst [vmem:[#allocation2 + $0x18] sm:$0xff] 0.0
          %294 = vst [vmem:[#allocation2 + $0x20] sm:$0xff] 0.0
          %295 = vst [vmem:[#allocation2 + $0x28] sm:$0xff] 0.0
          %296 = vst [vmem:[#allocation2 + $0x30] sm:$0xff] 0.0
          %297 = vst [vmem:[#allocation2 + $0x38] sm:$0xff] 0.0
          %298 = vst [vmem:[#allocation2 + $0x40] sm:$0xff] 0.0
          %299 = vst [vmem:[#allocation2 + $0x48] sm:$0xff] 0.0
          %300 = vst [vmem:[#allocation2 + $0x50] sm:$0xff] 0.0
          %301 = vst [vmem:[#allocation2 + $0x58] sm:$0xff] 0.0
          %302 = vst [vmem:[#allocation2 + $0x60] sm:$0xff] 0.0
          %303 = vst [vmem:[#allocation2 + $0x68] sm:$0xff] 0.0
          %304 = vst [vmem:[#allocation2 + $0x70] sm:$0xff] 0.0
          %305 = vst [vmem:[#allocation2 + $0x78] sm:$0xff] 0.0
          %306 = vst [vmem:[#allocation2 + $0x80] sm:$0xff] 0.0
          %307 = vst [vmem:[#allocation2 + $0x88] sm:$0xff] 0.0
          %308 = vst [vmem:[#allocation2 + $0x90] sm:$0xff] 0.0
          %309 = vst [vmem:[#allocation2 + $0x98] sm:$0xff] 0.0
          %310 = vst [vmem:[#allocation2 + $0xa0] sm:$0xff] 0.0
          %311 = vst [vmem:[#allocation2 + $0xa8] sm:$0xff] 0.0
          %312 = vst [vmem:[#allocation2 + $0xb0] sm:$0xff] 0.0
          %313 = vst [vmem:[#allocation2 + $0xb8] sm:$0xff] 0.0
          %314 = vst [vmem:[#allocation2 + $0xc0] sm:$0xff] 0.0
          %315 = vst [vmem:[#allocation2 + $0xc8] sm:$0xff] 0.0
          %316 = vst [vmem:[#allocation2 + $0xd0] sm:$0xff] 0.0
          %317 = vst [vmem:[#allocation2 + $0xd8] sm:$0xff] 0.0
          %318 = vst [vmem:[#allocation2 + $0xe0] sm:$0xff] 0.0
          %319 = vst [vmem:[#allocation2 + $0xe8] sm:$0xff] 0.0
          %320 = vst [vmem:[#allocation2 + $0xf0] sm:$0xff] 0.0
          %321 = vst [vmem:[#allocation2 + $0xf8] sm:$0xff] 0.0
          %322 = vst [vmem:[#allocation2 + $0x100] sm:$0xff] 0.0
          %323 = vst [vmem:[#allocation2 + $0x108] sm:$0xff] 0.0
          %324 = vst [vmem:[#allocation2 + $0x110] sm:$0xff] 0.0
          %325 = vst [vmem:[#allocation2 + $0x118] sm:$0xff] 0.0
          %326 = vst [vmem:[#allocation2 + $0x120] sm:$0xff] 0.0
          %327 = vst [vmem:[#allocation2 + $0x128] sm:$0xff] 0.0
          %328 = vst [vmem:[#allocation2 + $0x130] sm:$0xff] 0.0
          %329 = vst [vmem:[#allocation2 + $0x138] sm:$0xff] 0.0
          %330 = vst [vmem:[#allocation2 + $0x140] sm:$0xff] 0.0
          %331 = vst [vmem:[#allocation2 + $0x148] sm:$0xff] 0.0
          %332 = vst [vmem:[#allocation2 + $0x150] sm:$0xff] 0.0
          %333 = vst [vmem:[#allocation2 + $0x158] sm:$0xff] 0.0
          %334 = vst [vmem:[#allocation2 + $0x160] sm:$0xff] 0.0
          %335 = vst [vmem:[#allocation2 + $0x168] sm:$0xff] 0.0
          %336 = vst [vmem:[#allocation2 + $0x170] sm:$0xff] 0.0
          %337 = vst [vmem:[#allocation2 + $0x178] sm:$0xff] 0.0
          %338 = vst [vmem:[#allocation2 + $0x180] sm:$0xff] 0.0
          %339 = vst [vmem:[#allocation2 + $0x188] sm:$0xff] 0.0
          %340 = vst [vmem:[#allocation2 + $0x190] sm:$0xff] 0.0
          %341 = vst [vmem:[#allocation2 + $0x198] sm:$0xff] 0.0
          %342 = vst [vmem:[#allocation2 + $0x1a0] sm:$0xff] 0.0
          %343 = vst [vmem:[#allocation2 + $0x1a8] sm:$0xff] 0.0
          %344 = vst [vmem:[#allocation2 + $0x1b0] sm:$0xff] 0.0
          %345 = vst [vmem:[#allocation2 + $0x1b8] sm:$0xff] 0.0
          %346 = vst [vmem:[#allocation2 + $0x1c0] sm:$0xff] 0.0
          %347 = vst [vmem:[#allocation2 + $0x1c8] sm:$0xff] 0.0
          %348 = vst [vmem:[#allocation2 + $0x1d0] sm:$0xff] 0.0
          %349 = vst [vmem:[#allocation2 + $0x1d8] sm:$0xff] 0.0
          %350 = vst [vmem:[#allocation2 + $0x1e0] sm:$0xff] 0.0
          %351 = vst [vmem:[#allocation2 + $0x1e8] sm:$0xff] 0.0
          %352 = vst [vmem:[#allocation2 + $0x1f0] sm:$0xff] 0.0
          %353 = vst [vmem:[#allocation2 + $0x1f8] sm:$0xff] 0.0
          %354 = vst [vmem:[#allocation2 + $0x200] sm:$0xff] 0.0
          %355 = vst [vmem:[#allocation2 + $0x208] sm:$0xff] 0.0
          %356 = vst [vmem:[#allocation2 + $0x210] sm:$0xff] 0.0
          %357 = vst [vmem:[#allocation2 + $0x218] sm:$0xff] 0.0
          %358 = vst [vmem:[#allocation2 + $0x220] sm:$0xff] 0.0
          %359 = vst [vmem:[#allocation2 + $0x228] sm:$0xff] 0.0
          %360 = vst [vmem:[#allocation2 + $0x230] sm:$0xff] 0.0
          %361 = vst [vmem:[#allocation2 + $0x238] sm:$0xff] 0.0
          %362 = vst [vmem:[#allocation2 + $0x240] sm:$0xff] 0.0
          %363 = vst [vmem:[#allocation2 + $0x248] sm:$0xff] 0.0
          %364 = vst [vmem:[#allocation2 + $0x250] sm:$0xff] 0.0
          %365 = vst [vmem:[#allocation2 + $0x258] sm:$0xff] 0.0
          %366 = vst [vmem:[#allocation2 + $0x260] sm:$0xff] 0.0
          %367 = vst [vmem:[#allocation2 + $0x268] sm:$0xff] 0.0
          %368 = vst [vmem:[#allocation2 + $0x270] sm:$0xff] 0.0
          %369 = vst [vmem:[#allocation2 + $0x278] sm:$0xff] 0.0
          %370 = vst [vmem:[#allocation2 + $0x280] sm:$0xff] 0.0
          %371 = vst [vmem:[#allocation2 + $0x288] sm:$0xff] 0.0
          %372 = vst [vmem:[#allocation2 + $0x290] sm:$0xff] 0.0
          %373 = vst [vmem:[#allocation2 + $0x298] sm:$0xff] 0.0
          %374 = vst [vmem:[#allocation2 + $0x2a0] sm:$0xff] 0.0
          %375 = vst [vmem:[#allocation2 + $0x2a8] sm:$0xff] 0.0
          %376 = vst [vmem:[#allocation2 + $0x2b0] sm:$0xff] 0.0
          %377 = vst [vmem:[#allocation2 + $0x2b8] sm:$0xff] 0.0
          %378 = vst [vmem:[#allocation2 + $0x2c0] sm:$0xff] 0.0
          %379 = vst [vmem:[#allocation2 + $0x2c8] sm:$0xff] 0.0
          %380 = vst [vmem:[#allocation2 + $0x2d0] sm:$0xff] 0.0
          %381 = vst [vmem:[#allocation2 + $0x2d8] sm:$0xff] 0.0
          %382 = vst [vmem:[#allocation2 + $0x2e0] sm:$0xff] 0.0
          %383 = vst [vmem:[#allocation2 + $0x2e8] sm:$0xff] 0.0
          %384 = vst [vmem:[#allocation2 + $0x2f0] sm:$0xff] 0.0
          %385 = vst [vmem:[#allocation2 + $0x2f8] sm:$0xff] 0.0
          %386 = vst [vmem:[#allocation2 + $0x300] sm:$0xff] 0.0
          %387 = vst [vmem:[#allocation2 + $0x308] sm:$0xff] 0.0
          %388 = vst [vmem:[#allocation2 + $0x310] sm:$0xff] 0.0
          %389 = vst [vmem:[#allocation2 + $0x318] sm:$0xff] 0.0
          %390 = vst [vmem:[#allocation2 + $0x320] sm:$0xff] 0.0
          %391 = vst [vmem:[#allocation2 + $0x328] sm:$0xff] 0.0
          %392 = vst [vmem:[#allocation2 + $0x330] sm:$0xff] 0.0
          %393 = vst [vmem:[#allocation2 + $0x338] sm:$0xff] 0.0
          %394 = vst [vmem:[#allocation2 + $0x340] sm:$0xff] 0.0
          %395 = vst [vmem:[#allocation2 + $0x348] sm:$0xff] 0.0
          %396 = vst [vmem:[#allocation2 + $0x350] sm:$0xff] 0.0
          %397 = vst [vmem:[#allocation2 + $0x358] sm:$0xff] 0.0
          %398 = vst [vmem:[#allocation2 + $0x360] sm:$0xff] 0.0
          %399 = vst [vmem:[#allocation2 + $0x368] sm:$0xff] 0.0
          %400 = vst [vmem:[#allocation2 + $0x370] sm:$0xff] 0.0
          %401 = vst [vmem:[#allocation2 + $0x378] sm:$0xff] 0.0
          %402 = vst [vmem:[#allocation2 + $0x380] sm:$0xff] 0.0
          %403 = vst [vmem:[#allocation2 + $0x388] sm:$0xff] 0.0
          %404 = vst [vmem:[#allocation2 + $0x390] sm:$0xff] 0.0
          %405 = vst [vmem:[#allocation2 + $0x398] sm:$0xff] 0.0
          %406 = vst [vmem:[#allocation2 + $0x3a0] sm:$0xff] 0.0
          %407 = vst [vmem:[#allocation2 + $0x3a8] sm:$0xff] 0.0
          %408 = vst [vmem:[#allocation2 + $0x3b0] sm:$0xff] 0.0
          %409 = vst [vmem:[#allocation2 + $0x3b8] sm:$0xff] 0.0
          %410 = vst [vmem:[#allocation2 + $0x3c0] sm:$0xff] 0.0
          %411 = vst [vmem:[#allocation2 + $0x3c8] sm:$0xff] 0.0
          %412 = vst [vmem:[#allocation2 + $0x3d0] sm:$0xff] 0.0
          %413 = vst [vmem:[#allocation2 + $0x3d8] sm:$0xff] 0.0
          %414 = vst [vmem:[#allocation2 + $0x3e0] sm:$0xff] 0.0
          %415 = vst [vmem:[#allocation2 + $0x3e8] sm:$0xff] 0.0
          %416 = vst [vmem:[#allocation2 + $0x3f0] sm:$0xff] 0.0
          %417 = vst [vmem:[#allocation2 + $0x3f8] sm:$0xff] 0.0
        $region48: #{stem_forward.1} parent=31 // pred_fallthru
          _
        %v418 = vld [vmem:[#allocation2] sm:$0xff]
        %v419 = vld [vmem:[#allocation2 + $0x8] sm:$0xff]
        %v420 = vld [vmem:[#allocation2 + $0x10] sm:$0xff]
        %v421 = vld [vmem:[#allocation2 + $0x18] sm:$0xff]
        %v422 = vld [vmem:[#allocation2 + $0x20] sm:$0xff]
        %v423 = vld [vmem:[#allocation2 + $0x28] sm:$0xff]
        %v424 = vld [vmem:[#allocation2 + $0x30] sm:$0xff]
        %v425 = vld [vmem:[#allocation2 + $0x38] sm:$0xff]
        %v426 = vld [vmem:[#allocation2 + $0x40] sm:$0xff]
        %v427 = vld [vmem:[#allocation2 + $0x48] sm:$0xff]
        %v428 = vld [vmem:[#allocation2 + $0x50] sm:$0xff]
        %v429 = vld [vmem:[#allocation2 + $0x58] sm:$0xff]
        %v430 = vld [vmem:[#allocation2 + $0x60] sm:$0xff]
        %v431 = vld [vmem:[#allocation2 + $0x68] sm:$0xff]
        %v432 = vld [vmem:[#allocation2 + $0x70] sm:$0xff]
        %v433 = vld [vmem:[#allocation2 + $0x78] sm:$0xff]
        %v434 = vld [vmem:[#allocation2 + $0x80] sm:$0xff]
        %v435 = vld [vmem:[#allocation2 + $0x88] sm:$0xff]
        %v436 = vld [vmem:[#allocation2 + $0x90] sm:$0xff]
        %v437 = vld [vmem:[#allocation2 + $0x98] sm:$0xff]
        %v438 = vld [vmem:[#allocation2 + $0xa0] sm:$0xff]
        %v439 = vld [vmem:[#allocation2 + $0xa8] sm:$0xff]
        %v440 = vld [vmem:[#allocation2 + $0xb0] sm:$0xff]
        %v441 = vld [vmem:[#allocation2 + $0xb8] sm:$0xff]
        %v442 = vld [vmem:[#allocation2 + $0xc0] sm:$0xff]
        %v443 = vld [vmem:[#allocation2 + $0xc8] sm:$0xff]
        %v444 = vld [vmem:[#allocation2 + $0xd0] sm:$0xff]
        %v445 = vld [vmem:[#allocation2 + $0xd8] sm:$0xff]
        %v446 = vld [vmem:[#allocation2 + $0xe0] sm:$0xff]
        %v447 = vld [vmem:[#allocation2 + $0xe8] sm:$0xff]
        %v448 = vld [vmem:[#allocation2 + $0xf0] sm:$0xff]
        %v449 = vld [vmem:[#allocation2 + $0xf8] sm:$0xff]
        %v450 = vld [vmem:[#allocation2 + $0x100] sm:$0xff]
        %v451 = vld [vmem:[#allocation2 + $0x108] sm:$0xff]
        %v452 = vld [vmem:[#allocation2 + $0x110] sm:$0xff]
        %v453 = vld [vmem:[#allocation2 + $0x118] sm:$0xff]
        %v454 = vld [vmem:[#allocation2 + $0x120] sm:$0xff]
        %v455 = vld [vmem:[#allocation2 + $0x128] sm:$0xff]
        %v456 = vld [vmem:[#allocation2 + $0x130] sm:$0xff]
        %v457 = vld [vmem:[#allocation2 + $0x138] sm:$0xff]
        %v458 = vld [vmem:[#allocation2 + $0x140] sm:$0xff]
        %v459 = vld [vmem:[#allocation2 + $0x148] sm:$0xff]
        %v460 = vld [vmem:[#allocation2 + $0x150] sm:$0xff]
        %v461 = vld [vmem:[#allocation2 + $0x158] sm:$0xff]
        %v462 = vld [vmem:[#allocation2 + $0x160] sm:$0xff]
        %v463 = vld [vmem:[#allocation2 + $0x168] sm:$0xff]
        %v464 = vld [vmem:[#allocation2 + $0x170] sm:$0xff]
        %v465 = vld [vmem:[#allocation2 + $0x178] sm:$0xff]
        %v466 = vld [vmem:[#allocation2 + $0x180] sm:$0xff]
        %v467 = vld [vmem:[#allocation2 + $0x188] sm:$0xff]
        %v468 = vld [vmem:[#allocation2 + $0x190] sm:$0xff]
        %v469 = vld [vmem:[#allocation2 + $0x198] sm:$0xff]
        %v470 = vld [vmem:[#allocation2 + $0x1a0] sm:$0xff]
        %v471 = vld [vmem:[#allocation2 + $0x1a8] sm:$0xff]
        %v472 = vld [vmem:[#allocation2 + $0x1b0] sm:$0xff]
        %v473 = vld [vmem:[#allocation2 + $0x1b8] sm:$0xff]
        %v474 = vld [vmem:[#allocation2 + $0x1c0] sm:$0xff]
        %v475 = vld [vmem:[#allocation2 + $0x1c8] sm:$0xff]
        %v476 = vld [vmem:[#allocation2 + $0x1d0] sm:$0xff]
        %v477 = vld [vmem:[#allocation2 + $0x1d8] sm:$0xff]
        %v478 = vld [vmem:[#allocation2 + $0x1e0] sm:$0xff]
        %v479 = vld [vmem:[#allocation2 + $0x1e8] sm:$0xff]
        %v480 = vld [vmem:[#allocation2 + $0x1f0] sm:$0xff]
        %v481 = vld [vmem:[#allocation2 + $0x1f8] sm:$0xff]
        %v482 = vld [vmem:[#allocation2 + $0x200] sm:$0xff]
        %v483 = vld [vmem:[#allocation2 + $0x208] sm:$0xff]
        %v484 = vld [vmem:[#allocation2 + $0x210] sm:$0xff]
        %v485 = vld [vmem:[#allocation2 + $0x218] sm:$0xff]
        %v486 = vld [vmem:[#allocation2 + $0x220] sm:$0xff]
        %v487 = vld [vmem:[#allocation2 + $0x228] sm:$0xff]
        %v488 = vld [vmem:[#allocation2 + $0x230] sm:$0xff]
        %v489 = vld [vmem:[#allocation2 + $0x238] sm:$0xff]
        %v490 = vld [vmem:[#allocation2 + $0x240] sm:$0xff]
        %v491 = vld [vmem:[#allocation2 + $0x248] sm:$0xff]
        %v492 = vld [vmem:[#allocation2 + $0x250] sm:$0xff]
        %v493 = vld [vmem:[#allocation2 + $0x258] sm:$0xff]
        %v494 = vld [vmem:[#allocation2 + $0x260] sm:$0xff]
        %v495 = vld [vmem:[#allocation2 + $0x268] sm:$0xff]
        %v496 = vld [vmem:[#allocation2 + $0x270] sm:$0xff]
        %v497 = vld [vmem:[#allocation2 + $0x278] sm:$0xff]
        %v498 = vld [vmem:[#allocation2 + $0x280] sm:$0xff]
        %v499 = vld [vmem:[#allocation2 + $0x288] sm:$0xff]
        %v500 = vld [vmem:[#allocation2 + $0x290] sm:$0xff]
        %v501 = vld [vmem:[#allocation2 + $0x298] sm:$0xff]
        %v502 = vld [vmem:[#allocation2 + $0x2a0] sm:$0xff]
        %v503 = vld [vmem:[#allocation2 + $0x2a8] sm:$0xff]
        %v504 = vld [vmem:[#allocation2 + $0x2b0] sm:$0xff]
        %v505 = vld [vmem:[#allocation2 + $0x2b8] sm:$0xff]
        %v506 = vld [vmem:[#allocation2 + $0x2c0] sm:$0xff]
        %v507 = vld [vmem:[#allocation2 + $0x2c8] sm:$0xff]
        %v508 = vld [vmem:[#allocation2 + $0x2d0] sm:$0xff]
        %v509 = vld [vmem:[#allocation2 + $0x2d8] sm:$0xff]
        %v510 = vld [vmem:[#allocation2 + $0x2e0] sm:$0xff]
        %v511 = vld [vmem:[#allocation2 + $0x2e8] sm:$0xff]
        %v512 = vld [vmem:[#allocation2 + $0x2f0] sm:$0xff]
        %v513 = vld [vmem:[#allocation2 + $0x2f8] sm:$0xff]
        %v514 = vld [vmem:[#allocation2 + $0x300] sm:$0xff]
        %v515 = vld [vmem:[#allocation2 + $0x308] sm:$0xff]
        %v516 = vld [vmem:[#allocation2 + $0x310] sm:$0xff]
        %v517 = vld [vmem:[#allocation2 + $0x318] sm:$0xff]
        %v518 = vld [vmem:[#allocation2 + $0x320] sm:$0xff]
        %v519 = vld [vmem:[#allocation2 + $0x328] sm:$0xff]
        %v520 = vld [vmem:[#allocation2 + $0x330] sm:$0xff]
        %v521 = vld [vmem:[#allocation2 + $0x338] sm:$0xff]
        %v522 = vld [vmem:[#allocation2 + $0x340] sm:$0xff]
        %v523 = vld [vmem:[#allocation2 + $0x348] sm:$0xff]
        %v524 = vld [vmem:[#allocation2 + $0x350] sm:$0xff]
        %v525 = vld [vmem:[#allocation2 + $0x358] sm:$0xff]
        %v526 = vld [vmem:[#allocation2 + $0x360] sm:$0xff]
        %v527 = vld [vmem:[#allocation2 + $0x368] sm:$0xff]
        %v528 = vld [vmem:[#allocation2 + $0x370] sm:$0xff]
        %v529 = vld [vmem:[#allocation2 + $0x378] sm:$0xff]
        %v530 = vld [vmem:[#allocation2 + $0x380] sm:$0xff]
        %v531 = vld [vmem:[#allocation2 + $0x388] sm:$0xff]
        %v532 = vld [vmem:[#allocation2 + $0x390] sm:$0xff]
        %v533 = vld [vmem:[#allocation2 + $0x398] sm:$0xff]
        %v534 = vld [vmem:[#allocation2 + $0x3a0] sm:$0xff]
        %v535 = vld [vmem:[#allocation2 + $0x3a8] sm:$0xff]
        %v536 = vld [vmem:[#allocation2 + $0x3b0] sm:$0xff]
        %v537 = vld [vmem:[#allocation2 + $0x3b8] sm:$0xff]
        %v538 = vld [vmem:[#allocation2 + $0x3c0] sm:$0xff]
        %v539 = vld [vmem:[#allocation2 + $0x3c8] sm:$0xff]
        %v540 = vld [vmem:[#allocation2 + $0x3d0] sm:$0xff]
        %v541 = vld [vmem:[#allocation2 + $0x3d8] sm:$0xff]
        %v542 = vld [vmem:[#allocation2 + $0x3e0] sm:$0xff]
        %v543 = vld [vmem:[#allocation2 + $0x3e8] sm:$0xff]
        %v544 = vld [vmem:[#allocation2 + $0x3f0] sm:$0xff]
        %v545 = vld [vmem:[#allocation2 + $0x3f8] sm:$0xff]
        %v546 = vld [vmem:[%s246] sm:$0xf]
        %v547 = vld [vmem:[%s246 + $0x4] sm:$0xf]
        %v548 = vld [vmem:[%s246 + $0x8] sm:$0xf]
        %v549 = vld [vmem:[%s246 + $0xc] sm:$0xf]
        %v550 = vld [vmem:[%s246 + $0x10] sm:$0xf]
        %v551 = vld [vmem:[%s246 + $0x14] sm:$0xf]
        %v552 = vld [vmem:[%s246 + $0x18] sm:$0xf]
        %v553 = vld [vmem:[%s246 + $0x1c] sm:$0xf]
        %v554 = vld [vmem:[%s246 + $0x20] sm:$0xf]
        %v555 = vld [vmem:[%s246 + $0x24] sm:$0xf]
        %v556 = vld [vmem:[%s246 + $0x28] sm:$0xf]
        %v557 = vld [vmem:[%s246 + $0x2c] sm:$0xf]
        %v558 = vld [vmem:[%s246 + $0x30] sm:$0xf]
        %v559 = vld [vmem:[%s246 + $0x34] sm:$0xf]
        %v560 = vld [vmem:[%s246 + $0x38] sm:$0xf]
        %v561 = vld [vmem:[%s246 + $0x3c] sm:$0xf]
        %v562 = vld [vmem:[%s246 + $0x40] sm:$0xf]
        %v563 = vld [vmem:[%s246 + $0x44] sm:$0xf]
        %v564 = vld [vmem:[%s246 + $0x48] sm:$0xf]
        %v565 = vld [vmem:[%s246 + $0x4c] sm:$0xf]
        %v566 = vld [vmem:[%s246 + $0x50] sm:$0xf]
        %v567 = vld [vmem:[%s246 + $0x54] sm:$0xf]
        %v568 = vld [vmem:[%s246 + $0x58] sm:$0xf]
        %v569 = vld [vmem:[%s246 + $0x5c] sm:$0xf]
        %v570 = vld [vmem:[%s246 + $0x60] sm:$0xf]
        %v571 = vld [vmem:[%s246 + $0x64] sm:$0xf]
        %v572 = vld [vmem:[%s246 + $0x68] sm:$0xf]
        %v573 = vld [vmem:[%s246 + $0x6c] sm:$0xf]
        %v574 = vld [vmem:[%s246 + $0x70] sm:$0xf]
        %v575 = vld [vmem:[%s246 + $0x74] sm:$0xf]
        %v576 = vld [vmem:[%s246 + $0x78] sm:$0xf]
        %v577 = vld [vmem:[%s246 + $0x7c] sm:$0xf]
        %v578 = vld [vmem:[%s246 + $0x80] sm:$0xf]
        %v579 = vld [vmem:[%s246 + $0x84] sm:$0xf]
        %v580 = vld [vmem:[%s246 + $0x88] sm:$0xf]
        %v581 = vld [vmem:[%s246 + $0x8c] sm:$0xf]
        %v582 = vld [vmem:[%s246 + $0x90] sm:$0xf]
        %v583 = vld [vmem:[%s246 + $0x94] sm:$0xf]
        %v584 = vld [vmem:[%s246 + $0x98] sm:$0xf]
        %v585 = vld [vmem:[%s246 + $0x9c] sm:$0xf]
        %v586 = vld [vmem:[%s246 + $0xa0] sm:$0xf]
        %v587 = vld [vmem:[%s246 + $0xa4] sm:$0xf]
        %v588 = vld [vmem:[%s246 + $0xa8] sm:$0xf]
        %v589 = vld [vmem:[%s246 + $0xac] sm:$0xf]
        %v590 = vld [vmem:[%s246 + $0xb0] sm:$0xf]
        %v591 = vld [vmem:[%s246 + $0xb4] sm:$0xf]
        %v592 = vld [vmem:[%s246 + $0xb8] sm:$0xf]
        %v593 = vld [vmem:[%s246 + $0xbc] sm:$0xf]
        %v594 = vld [vmem:[%s246 + $0xc0] sm:$0xf]
        %v595 = vld [vmem:[%s246 + $0xc4] sm:$0xf]
        %v596 = vld [vmem:[%s246 + $0xc8] sm:$0xf]
        %v597 = vld [vmem:[%s246 + $0xcc] sm:$0xf]
        %v598 = vld [vmem:[%s246 + $0xd0] sm:$0xf]
        %v599 = vld [vmem:[%s246 + $0xd4] sm:$0xf]
        %v600 = vld [vmem:[%s246 + $0xd8] sm:$0xf]
        %v601 = vld [vmem:[%s246 + $0xdc] sm:$0xf]
        %v602 = vld [vmem:[%s246 + $0xe0] sm:$0xf]
        %v603 = vld [vmem:[%s246 + $0xe4] sm:$0xf]
        %v604 = vld [vmem:[%s246 + $0xe8] sm:$0xf]
        %v605 = vld [vmem:[%s246 + $0xec] sm:$0xf]
        %v606 = vld [vmem:[%s246 + $0xf0] sm:$0xf]
        %v607 = vld [vmem:[%s246 + $0xf4] sm:$0xf]
        %v608 = vld [vmem:[%s246 + $0xf8] sm:$0xf]
        %v609 = vld [vmem:[%s246 + $0xfc] sm:$0xf]
        %v610 = vld [vmem:[%s246 + $0x100] sm:$0xf]
        %v611 = vld [vmem:[%s246 + $0x104] sm:$0xf]
        %v612 = vld [vmem:[%s246 + $0x108] sm:$0xf]
        %v613 = vld [vmem:[%s246 + $0x10c] sm:$0xf]
        %v614 = vld [vmem:[%s246 + $0x110] sm:$0xf]
        %v615 = vld [vmem:[%s246 + $0x114] sm:$0xf]
        %v616 = vld [vmem:[%s246 + $0x118] sm:$0xf]
        %v617 = vld [vmem:[%s246 + $0x11c] sm:$0xf]
        %v618 = vld [vmem:[%s246 + $0x120] sm:$0xf]
        %v619 = vld [vmem:[%s246 + $0x124] sm:$0xf]
        %v620 = vld [vmem:[%s246 + $0x128] sm:$0xf]
        %v621 = vld [vmem:[%s246 + $0x12c] sm:$0xf]
        %v622 = vld [vmem:[%s246 + $0x130] sm:$0xf]
        %v623 = vld [vmem:[%s246 + $0x134] sm:$0xf]
        %v624 = vld [vmem:[%s246 + $0x138] sm:$0xf]
        %v625 = vld [vmem:[%s246 + $0x13c] sm:$0xf]
        %v626 = vld [vmem:[%s246 + $0x140] sm:$0xf]
        %v627 = vld [vmem:[%s246 + $0x144] sm:$0xf]
        %v628 = vld [vmem:[%s246 + $0x148] sm:$0xf]
        %v629 = vld [vmem:[%s246 + $0x14c] sm:$0xf]
        %v630 = vld [vmem:[%s246 + $0x150] sm:$0xf]
        %v631 = vld [vmem:[%s246 + $0x154] sm:$0xf]
        %v632 = vld [vmem:[%s246 + $0x158] sm:$0xf]
        %v633 = vld [vmem:[%s246 + $0x15c] sm:$0xf]
        %v634 = vld [vmem:[%s246 + $0x160] sm:$0xf]
        %v635 = vld [vmem:[%s246 + $0x164] sm:$0xf]
        %v636 = vld [vmem:[%s246 + $0x168] sm:$0xf]
        %v637 = vld [vmem:[%s246 + $0x16c] sm:$0xf]
        %v638 = vld [vmem:[%s246 + $0x170] sm:$0xf]
        %v639 = vld [vmem:[%s246 + $0x174] sm:$0xf]
        %v640 = vld [vmem:[%s246 + $0x178] sm:$0xf]
        %v641 = vld [vmem:[%s246 + $0x17c] sm:$0xf]
        %v642 = vld [vmem:[%s246 + $0x180] sm:$0xf]
        %v643 = vld [vmem:[%s246 + $0x184] sm:$0xf]
        %v644 = vld [vmem:[%s246 + $0x188] sm:$0xf]
        %v645 = vld [vmem:[%s246 + $0x18c] sm:$0xf]
        %v646 = vld [vmem:[%s246 + $0x190] sm:$0xf]
        %v647 = vld [vmem:[%s246 + $0x194] sm:$0xf]
        %v648 = vld [vmem:[%s246 + $0x198] sm:$0xf]
        %v649 = vld [vmem:[%s246 + $0x19c] sm:$0xf]
        %v650 = vld [vmem:[%s246 + $0x1a0] sm:$0xf]
        %v651 = vld [vmem:[%s246 + $0x1a4] sm:$0xf]
        %v652 = vld [vmem:[%s246 + $0x1a8] sm:$0xf]
        %v653 = vld [vmem:[%s246 + $0x1ac] sm:$0xf]
        %v654 = vld [vmem:[%s246 + $0x1b0] sm:$0xf]
        %v655 = vld [vmem:[%s246 + $0x1b4] sm:$0xf]
        %v656 = vld [vmem:[%s246 + $0x1b8] sm:$0xf]
        %v657 = vld [vmem:[%s246 + $0x1bc] sm:$0xf]
        %v658 = vld [vmem:[%s246 + $0x1c0] sm:$0xf]
        %v659 = vld [vmem:[%s246 + $0x1c4] sm:$0xf]
        %v660 = vld [vmem:[%s246 + $0x1c8] sm:$0xf]
        %v661 = vld [vmem:[%s246 + $0x1cc] sm:$0xf]
        %v662 = vld [vmem:[%s246 + $0x1d0] sm:$0xf]
        %v663 = vld [vmem:[%s246 + $0x1d4] sm:$0xf]
        %v664 = vld [vmem:[%s246 + $0x1d8] sm:$0xf]
        %v665 = vld [vmem:[%s246 + $0x1dc] sm:$0xf]
        %v666 = vld [vmem:[%s246 + $0x1e0] sm:$0xf]
        %v667 = vld [vmem:[%s246 + $0x1e4] sm:$0xf]
        %v668 = vld [vmem:[%s246 + $0x1e8] sm:$0xf]
        %v669 = vld [vmem:[%s246 + $0x1ec] sm:$0xf]
        %v670 = vld [vmem:[%s246 + $0x1f0] sm:$0xf]
        %v671 = vld [vmem:[%s246 + $0x1f4] sm:$0xf]
        %v672 = vld [vmem:[%s246 + $0x1f8] sm:$0xf]
        %v673 = vld [vmem:[%s246 + $0x1fc] sm:$0xf]
        %v674 = vld [vmem:[%s255] sm:$0xf]
        %v675 = vld [vmem:[%s255 + $0x4] sm:$0xf]
        %v676 = vld [vmem:[%s255 + $0x8] sm:$0xf]
        %v677 = vld [vmem:[%s255 + $0xc] sm:$0xf]
        %v678 = vld [vmem:[%s255 + $0x10] sm:$0xf]
        %v679 = vld [vmem:[%s255 + $0x14] sm:$0xf]
        %v680 = vld [vmem:[%s255 + $0x18] sm:$0xf]
        %v681 = vld [vmem:[%s255 + $0x1c] sm:$0xf]
        %v682 = vld [vmem:[%s255 + $0x20] sm:$0xf]
        %v683 = vld [vmem:[%s255 + $0x24] sm:$0xf]
        %v684 = vld [vmem:[%s255 + $0x28] sm:$0xf]
        %v685 = vld [vmem:[%s255 + $0x2c] sm:$0xf]
        %v686 = vld [vmem:[%s255 + $0x30] sm:$0xf]
        %v687 = vld [vmem:[%s255 + $0x34] sm:$0xf]
        %v688 = vld [vmem:[%s255 + $0x38] sm:$0xf]
        %v689 = vld [vmem:[%s255 + $0x3c] sm:$0xf]
        %v818 = vunpack.c.l.b16 %v546
        %v819 = vunpack.c.l.b16 %v547
        %v820 = vunpack.c.l.b16 %v548
        %v821 = vunpack.c.l.b16 %v549
        %v822 = vunpack.c.l.b16 %v550
        %v823 = vunpack.c.l.b16 %v551
        %v824 = vunpack.c.l.b16 %v552
        %v825 = vunpack.c.l.b16 %v553
        %v826 = vunpack.c.l.b16 %v554
        %v827 = vunpack.c.l.b16 %v555
        %v828 = vunpack.c.l.b16 %v556
        %v829 = vunpack.c.l.b16 %v557
        %v830 = vunpack.c.l.b16 %v558
        %v831 = vunpack.c.l.b16 %v559
        %v832 = vunpack.c.l.b16 %v560
        %v833 = vunpack.c.l.b16 %v561
        %v834 = vunpack.c.l.b16 %v562
        %v835 = vunpack.c.l.b16 %v563
        %v836 = vunpack.c.l.b16 %v564
        %v837 = vunpack.c.l.b16 %v565
        %v838 = vunpack.c.l.b16 %v566
        %v839 = vunpack.c.l.b16 %v567
        %v840 = vunpack.c.l.b16 %v568
        %v841 = vunpack.c.l.b16 %v569
        %v842 = vunpack.c.l.b16 %v570
        %v843 = vunpack.c.l.b16 %v571
        %v844 = vunpack.c.l.b16 %v572
        %v845 = vunpack.c.l.b16 %v573
        %v846 = vunpack.c.l.b16 %v574
        %v847 = vunpack.c.l.b16 %v575
        %v848 = vunpack.c.l.b16 %v576
        %v849 = vunpack.c.l.b16 %v577
        %v850 = vunpack.c.l.b16 %v578
        %v851 = vunpack.c.l.b16 %v579
        %v852 = vunpack.c.l.b16 %v580
        %v853 = vunpack.c.l.b16 %v581
        %v854 = vunpack.c.l.b16 %v582
        %v855 = vunpack.c.l.b16 %v583
        %v856 = vunpack.c.l.b16 %v584
        %v857 = vunpack.c.l.b16 %v585
        %v858 = vunpack.c.l.b16 %v586
        %v859 = vunpack.c.l.b16 %v587
        %v860 = vunpack.c.l.b16 %v588
        %v861 = vunpack.c.l.b16 %v589
        %v862 = vunpack.c.l.b16 %v590
        %v863 = vunpack.c.l.b16 %v591
        %v864 = vunpack.c.l.b16 %v592
        %v865 = vunpack.c.l.b16 %v593
        %v866 = vunpack.c.l.b16 %v594
        %v867 = vunpack.c.l.b16 %v595
        %v868 = vunpack.c.l.b16 %v596
        %v869 = vunpack.c.l.b16 %v597
        %v870 = vunpack.c.l.b16 %v598
        %v871 = vunpack.c.l.b16 %v599
        %v872 = vunpack.c.l.b16 %v600
        %v873 = vunpack.c.l.b16 %v601
        %v874 = vunpack.c.l.b16 %v602
        %v875 = vunpack.c.l.b16 %v603
        %v876 = vunpack.c.l.b16 %v604
        %v877 = vunpack.c.l.b16 %v605
        %v878 = vunpack.c.l.b16 %v606
        %v879 = vunpack.c.l.b16 %v607
        %v880 = vunpack.c.l.b16 %v608
        %v881 = vunpack.c.l.b16 %v609
        %v882 = vunpack.c.l.b16 %v610
        %v883 = vunpack.c.l.b16 %v611
        %v884 = vunpack.c.l.b16 %v612
        %v885 = vunpack.c.l.b16 %v613
        %v886 = vunpack.c.l.b16 %v614
        %v887 = vunpack.c.l.b16 %v615
        %v888 = vunpack.c.l.b16 %v616
        %v889 = vunpack.c.l.b16 %v617
        %v890 = vunpack.c.l.b16 %v618
        %v891 = vunpack.c.l.b16 %v619
        %v892 = vunpack.c.l.b16 %v620
        %v893 = vunpack.c.l.b16 %v621
        %v894 = vunpack.c.l.b16 %v622
        %v895 = vunpack.c.l.b16 %v623
        %v896 = vunpack.c.l.b16 %v624
        %v897 = vunpack.c.l.b16 %v625
        %v898 = vunpack.c.l.b16 %v626
        %v899 = vunpack.c.l.b16 %v627
        %v900 = vunpack.c.l.b16 %v628
        %v901 = vunpack.c.l.b16 %v629
        %v902 = vunpack.c.l.b16 %v630
        %v903 = vunpack.c.l.b16 %v631
        %v904 = vunpack.c.l.b16 %v632
        %v905 = vunpack.c.l.b16 %v633
        %v906 = vunpack.c.l.b16 %v634
        %v907 = vunpack.c.l.b16 %v635
        %v908 = vunpack.c.l.b16 %v636
        %v909 = vunpack.c.l.b16 %v637
        %v910 = vunpack.c.l.b16 %v638
        %v911 = vunpack.c.l.b16 %v639
        %v912 = vunpack.c.l.b16 %v640
        %v913 = vunpack.c.l.b16 %v641
        %v914 = vunpack.c.l.b16 %v642
        %v915 = vunpack.c.l.b16 %v643
        %v916 = vunpack.c.l.b16 %v644
        %v917 = vunpack.c.l.b16 %v645
        %v918 = vunpack.c.l.b16 %v646
        %v919 = vunpack.c.l.b16 %v647
        %v920 = vunpack.c.l.b16 %v648
        %v921 = vunpack.c.l.b16 %v649
        %v922 = vunpack.c.l.b16 %v650
        %v923 = vunpack.c.l.b16 %v651
        %v924 = vunpack.c.l.b16 %v652
        %v925 = vunpack.c.l.b16 %v653
        %v926 = vunpack.c.l.b16 %v654
        %v927 = vunpack.c.l.b16 %v655
        %v928 = vunpack.c.l.b16 %v656
        %v929 = vunpack.c.l.b16 %v657
        %v930 = vunpack.c.l.b16 %v658
        %v931 = vunpack.c.l.b16 %v659
        %v932 = vunpack.c.l.b16 %v660
        %v933 = vunpack.c.l.b16 %v661
        %v934 = vunpack.c.l.b16 %v662
        %v935 = vunpack.c.l.b16 %v663
        %v936 = vunpack.c.l.b16 %v664
        %v937 = vunpack.c.l.b16 %v665
        %v938 = vunpack.c.l.b16 %v666
        %v939 = vunpack.c.l.b16 %v667
        %v940 = vunpack.c.l.b16 %v668
        %v941 = vunpack.c.l.b16 %v669
        %v942 = vunpack.c.l.b16 %v670
        %v943 = vunpack.c.l.b16 %v671
        %v944 = vunpack.c.l.b16 %v672
        %v945 = vunpack.c.l.b16 %v673
        %v946 = vpack.c.b16 %v819, %v818
        %v947 = vpack.c.b16 %v821, %v820
        %v948 = vpack.c.b16 %v823, %v822
        %v949 = vpack.c.b16 %v825, %v824
        %v950 = vpack.c.b16 %v827, %v826
        %v951 = vpack.c.b16 %v829, %v828
        %v952 = vpack.c.b16 %v831, %v830
        %v953 = vpack.c.b16 %v833, %v832
        %v954 = vpack.c.b16 %v835, %v834
        %v955 = vpack.c.b16 %v837, %v836
        %v956 = vpack.c.b16 %v839, %v838
        %v957 = vpack.c.b16 %v841, %v840
        %v958 = vpack.c.b16 %v843, %v842
        %v959 = vpack.c.b16 %v845, %v844
        %v960 = vpack.c.b16 %v847, %v846
        %v961 = vpack.c.b16 %v849, %v848
        %v962 = vpack.c.b16 %v851, %v850
        %v963 = vpack.c.b16 %v853, %v852
        %v964 = vpack.c.b16 %v855, %v854
        %v965 = vpack.c.b16 %v857, %v856
        %v966 = vpack.c.b16 %v859, %v858
        %v967 = vpack.c.b16 %v861, %v860
        %v968 = vpack.c.b16 %v863, %v862
        %v969 = vpack.c.b16 %v865, %v864
        %v970 = vpack.c.b16 %v867, %v866
        %v971 = vpack.c.b16 %v869, %v868
        %v972 = vpack.c.b16 %v871, %v870
        %v973 = vpack.c.b16 %v873, %v872
        %v974 = vpack.c.b16 %v875, %v874
        %v975 = vpack.c.b16 %v877, %v876
        %v976 = vpack.c.b16 %v879, %v878
        %v977 = vpack.c.b16 %v881, %v880
        %v978 = vpack.c.b16 %v883, %v882
        %v979 = vpack.c.b16 %v885, %v884
        %v980 = vpack.c.b16 %v887, %v886
        %v981 = vpack.c.b16 %v889, %v888
        %v982 = vpack.c.b16 %v891, %v890
        %v983 = vpack.c.b16 %v893, %v892
        %v984 = vpack.c.b16 %v895, %v894
        %v985 = vpack.c.b16 %v897, %v896
        %v986 = vpack.c.b16 %v899, %v898
        %v987 = vpack.c.b16 %v901, %v900
        %v988 = vpack.c.b16 %v903, %v902
        %v989 = vpack.c.b16 %v905, %v904
        %v990 = vpack.c.b16 %v907, %v906
        %v991 = vpack.c.b16 %v909, %v908
        %v992 = vpack.c.b16 %v911, %v910
        %v993 = vpack.c.b16 %v913, %v912
        %v994 = vpack.c.b16 %v915, %v914
        %v995 = vpack.c.b16 %v917, %v916
        %v996 = vpack.c.b16 %v919, %v918
        %v997 = vpack.c.b16 %v921, %v920
        %v998 = vpack.c.b16 %v923, %v922
        %v999 = vpack.c.b16 %v925, %v924
        %v1000 = vpack.c.b16 %v927, %v926
        %v1001 = vpack.c.b16 %v929, %v928
        %v1002 = vpack.c.b16 %v931, %v930
        %v1003 = vpack.c.b16 %v933, %v932
        %v1004 = vpack.c.b16 %v935, %v934
        %v1005 = vpack.c.b16 %v937, %v936
        %v1006 = vpack.c.b16 %v939, %v938
        %v1007 = vpack.c.b16 %v941, %v940
        %v1008 = vpack.c.b16 %v943, %v942
        %v1009 = vpack.c.b16 %v945, %v944
        %v1090 = vunpack.c.l.b16 %v674
        %v1091 = vunpack.c.l.b16 %v675
        %v1092 = vunpack.c.l.b16 %v676
        %v1093 = vunpack.c.l.b16 %v677
        %v1094 = vunpack.c.l.b16 %v678
        %v1095 = vunpack.c.l.b16 %v679
        %v1096 = vunpack.c.l.b16 %v680
        %v1097 = vunpack.c.l.b16 %v681
        %v1098 = vunpack.c.l.b16 %v682
        %v1099 = vunpack.c.l.b16 %v683
        %v1100 = vunpack.c.l.b16 %v684
        %v1101 = vunpack.c.l.b16 %v685
        %v1102 = vunpack.c.l.b16 %v686
        %v1103 = vunpack.c.l.b16 %v687
        %v1104 = vunpack.c.l.b16 %v688
        %v1105 = vunpack.c.l.b16 %v689
        %v1106 = vpack.c.b16 %v1091, %v1090
        %v1107 = vpack.c.b16 %v1093, %v1092
        %v1108 = vpack.c.b16 %v1095, %v1094
        %v1109 = vpack.c.b16 %v1097, %v1096
        %v1110 = vpack.c.b16 %v1099, %v1098
        %v1111 = vpack.c.b16 %v1101, %v1100
        %v1112 = vpack.c.b16 %v1103, %v1102
        %v1113 = vpack.c.b16 %v1105, %v1104
        %1122 = vmatprep.subr.bf16.mxu0 0
        %1123 = vmatpush1.bf16.msra.mxu0 %v1106
        %1124 = vmatprep.subr.bf16.mxu0 0
        %1125 = vmatpush1.bf16.msra.mxu0 %v1107
        %1126 = vmatprep.subr.bf16.mxu0 0
        %1127 = vmatpush1.bf16.msra.mxu0 %v1108
        %1128 = vmatprep.subr.bf16.mxu0 0
        %1129 = vmatpush1.bf16.msra.mxu0 %v1109
        %1130 = vmatprep.subr.bf16.mxu0 0
        %1131 = vmatpush1.bf16.msra.mxu0 %v1110
        %1132 = vmatprep.subr.bf16.mxu0 0
        %1133 = vmatpush1.bf16.msra.mxu0 %v1111
        %1134 = vmatprep.subr.bf16.mxu0 0
        %1135 = vmatpush1.bf16.msra.mxu0 %v1112
        %1136 = vmatprep.subr.bf16.mxu0 0
        %1137 = vmatpush1.bf16.msra.mxu0 %v1113
        %1138 = vmatprep.subr.bf16.mxu0 0
        %1139 = vmatpush1.bf16.msra.mxu0 0
        %1140 = vmatprep.subr.bf16.mxu0 0
        %1141 = vmatpush1.bf16.msra.mxu0 0
        %1142 = vmatprep.subr.bf16.mxu0 0
        %1143 = vmatpush1.bf16.msra.mxu0 0
        %1144 = vmatprep.subr.bf16.mxu0 0
        %1145 = vmatpush1.bf16.msra.mxu0 0
        %1146 = vmatprep.subr.bf16.mxu0 0
        %1147 = vmatpush1.bf16.msra.mxu0 0
        %1148 = vmatprep.subr.bf16.mxu0 0
        %1149 = vmatpush1.bf16.msra.mxu0 0
        %1150 = vmatprep.subr.bf16.mxu0 0
        %1151 = vmatpush1.bf16.msra.mxu0 0
        %1152 = vmatprep.subr.bf16.mxu0 0
        %1153 = vmatpush1.bf16.msra.mxu0 0
        %1154 = vmatprep.mubr.bf16.mxu0 0
        %1155 = vmatmul.mubr.bf16.gmra.mrb[0].mxu0 %v946
        %v1156 = vpop.f32.mrb[0].mxu0
        %v1157 = vadd.f32 0.0, %v1156
        %v1158 = vpop.f32.mrb[0].mxu0
        %v1159 = vpop.f32.mrb[0].mxu0
        %v1160 = vadd.f32 0.0, %v1159
        %v1161 = vpop.f32.mrb[0].mxu0
        %1162 = vmatprep.mubr.bf16.mxu0 0
        %1163 = vmatmul.mubr.bf16.gmra.mrb[0].mxu0 %v947
        %v1164 = vpop.f32.mrb[0].mxu0
        %v1165 = vadd.f32 0.0, %v1164
        %v1166 = vpop.f32.mrb[0].mxu0
        %v1167 = vpop.f32.mrb[0].mxu0
        %v1168 = vadd.f32 0.0, %v1167
        %v1169 = vpop.f32.mrb[0].mxu0
        %1170 = vmatprep.mubr.bf16.mxu0 0
        %1171 = vmatmul.mubr.bf16.gmra.mrb[0].mxu0 %v948
        %v1172 = vpop.f32.mrb[0].mxu0
        %v1173 = vadd.f32 0.0, %v1172
        %v1174 = vpop.f32.mrb[0].mxu0
        %v1175 = vpop.f32.mrb[0].mxu0
        %v1176 = vadd.f32 0.0, %v1175
        %v1177 = vpop.f32.mrb[0].mxu0
        %1178 = vmatprep.mubr.bf16.mxu0 0
        %1179 = vmatmul.mubr.bf16.gmra.mrb[0].mxu0 %v949
        %v1180 = vpop.f32.mrb[0].mxu0
        %v1181 = vadd.f32 0.0, %v1180
        %v1182 = vpop.f32.mrb[0].mxu0
        %v1183 = vpop.f32.mrb[0].mxu0
        %v1184 = vadd.f32 0.0, %v1183
        %v1185 = vpop.f32.mrb[0].mxu0
        %1186 = vmatprep.mubr.bf16.mxu0 0
        %1187 = vmatmul.mubr.bf16.gmra.mrb[0].mxu0 %v950
        %v1188 = vpop.f32.mrb[0].mxu0
        %v1189 = vadd.f32 0.0, %v1188
        %v1190 = vpop.f32.mrb[0].mxu0
        %v1191 = vpop.f32.mrb[0].mxu0
        %v1192 = vadd.f32 0.0, %v1191
        %v1193 = vpop.f32.mrb[0].mxu0
        %1194 = vmatprep.mubr.bf16.mxu0 0
        %1195 = vmatmul.mubr.bf16.gmra.mrb[0].mxu0 %v951
        %v1196 = vpop.f32.mrb[0].mxu0
        %v1197 = vadd.f32 0.0, %v1196
        %v1198 = vpop.f32.mrb[0].mxu0
        %v1199 = vpop.f32.mrb[0].mxu0
        %v1200 = vadd.f32 0.0, %v1199
        %v1201 = vpop.f32.mrb[0].mxu0
        %1202 = vmatprep.mubr.bf16.mxu0 0
        %1203 = vmatmul.mubr.bf16.gmra.mrb[0].mxu0 %v952
        %v1204 = vpop.f32.mrb[0].mxu0
        %v1205 = vadd.f32 0.0, %v1204
        %v1206 = vpop.f32.mrb[0].mxu0
        %v1207 = vpop.f32.mrb[0].mxu0
        %v1208 = vadd.f32 0.0, %v1207
        %v1209 = vpop.f32.mrb[0].mxu0
        %1210 = vmatprep.mubr.bf16.mxu0 0
        %1211 = vmatmul.mubr.bf16.gmra.mrb[0].mxu0 %v953
        %v1212 = vpop.f32.mrb[0].mxu0
        %v1213 = vadd.f32 0.0, %v1212
        %v1214 = vpop.f32.mrb[0].mxu0
        %v1215 = vpop.f32.mrb[0].mxu0
        %v1216 = vadd.f32 0.0, %v1215
        %v1217 = vpop.f32.mrb[0].mxu0
        %1218 = vmatprep.mubr.bf16.mxu0 0
        %1219 = vmatmul.mubr.bf16.gmra.mrb[0].mxu0 %v954
        %v1220 = vpop.f32.mrb[0].mxu0
        %v1221 = vadd.f32 0.0, %v1220
        %v1222 = vpop.f32.mrb[0].mxu0
        %v1223 = vpop.f32.mrb[0].mxu0
        %v1224 = vadd.f32 0.0, %v1223
        %v1225 = vpop.f32.mrb[0].mxu0
        %1226 = vmatprep.mubr.bf16.mxu0 0
        %1227 = vmatmul.mubr.bf16.gmra.mrb[0].mxu0 %v955
        %v1228 = vpop.f32.mrb[0].mxu0
        %v1229 = vadd.f32 0.0, %v1228
        %v1230 = vpop.f32.mrb[0].mxu0
        %v1231 = vpop.f32.mrb[0].mxu0
        %v1232 = vadd.f32 0.0, %v1231
        %v1233 = vpop.f32.mrb[0].mxu0
        %1234 = vmatprep.mubr.bf16.mxu0 0
        %1235 = vmatmul.mubr.bf16.gmra.mrb[0].mxu0 %v956
        %v1236 = vpop.f32.mrb[0].mxu0
        %v1237 = vadd.f32 0.0, %v1236
        %v1238 = vpop.f32.mrb[0].mxu0
        %v1239 = vpop.f32.mrb[0].mxu0
        %v1240 = vadd.f32 0.0, %v1239
        %v1241 = vpop.f32.mrb[0].mxu0
        %1242 = vmatprep.mubr.bf16.mxu0 0
        %1243 = vmatmul.mubr.bf16.gmra.mrb[0].mxu0 %v957
        %v1244 = vpop.f32.mrb[0].mxu0
        %v1245 = vadd.f32 0.0, %v1244
        %v1246 = vpop.f32.mrb[0].mxu0
        %v1247 = vpop.f32.mrb[0].mxu0
        %v1248 = vadd.f32 0.0, %v1247
        %v1249 = vpop.f32.mrb[0].mxu0
        %1250 = vmatprep.mubr.bf16.mxu0 0
        %1251 = vmatmul.mubr.bf16.gmra.mrb[0].mxu0 %v958
        %v1252 = vpop.f32.mrb[0].mxu0
        %v1253 = vadd.f32 0.0, %v1252
        %v1254 = vpop.f32.mrb[0].mxu0
        %v1255 = vpop.f32.mrb[0].mxu0
        %v1256 = vadd.f32 0.0, %v1255
        %v1257 = vpop.f32.mrb[0].mxu0
        %1258 = vmatprep.mubr.bf16.mxu0 0
        %1259 = vmatmul.mubr.bf16.gmra.mrb[0].mxu0 %v959
        %v1260 = vpop.f32.mrb[0].mxu0
        %v1261 = vadd.f32 0.0, %v1260
        %v1262 = vpop.f32.mrb[0].mxu0
        %v1263 = vpop.f32.mrb[0].mxu0
        %v1264 = vadd.f32 0.0, %v1263
        %v1265 = vpop.f32.mrb[0].mxu0
        %1266 = vmatprep.mubr.bf16.mxu0 0
        %1267 = vmatmul.mubr.bf16.gmra.mrb[0].mxu0 %v960
        %v1268 = vpop.f32.mrb[0].mxu0
        %v1269 = vadd.f32 0.0, %v1268
        %v1270 = vpop.f32.mrb[0].mxu0
        %v1271 = vpop.f32.mrb[0].mxu0
        %v1272 = vadd.f32 0.0, %v1271
        %v1273 = vpop.f32.mrb[0].mxu0
        %1274 = vmatprep.mubr.bf16.mxu0 0
        %1275 = vmatmul.mubr.bf16.gmra.mrb[0].mxu0 %v961
        %v1276 = vpop.f32.mrb[0].mxu0
        %v1277 = vadd.f32 0.0, %v1276
        %v1278 = vpop.f32.mrb[0].mxu0
        %v1279 = vpop.f32.mrb[0].mxu0
        %v1280 = vadd.f32 0.0, %v1279
        %v1281 = vpop.f32.mrb[0].mxu0
        %1282 = vmatprep.mubr.bf16.mxu0 0
        %1283 = vmatmul.mubr.bf16.gmra.mrb[0].mxu0 %v962
        %v1284 = vpop.f32.mrb[0].mxu0
        %v1285 = vadd.f32 0.0, %v1284
        %v1286 = vpop.f32.mrb[0].mxu0
        %v1287 = vpop.f32.mrb[0].mxu0
        %v1288 = vadd.f32 0.0, %v1287
        %v1289 = vpop.f32.mrb[0].mxu0
        %1290 = vmatprep.mubr.bf16.mxu0 0
        %1291 = vmatmul.mubr.bf16.gmra.mrb[0].mxu0 %v963
        %v1292 = vpop.f32.mrb[0].mxu0
        %v1293 = vadd.f32 0.0, %v1292
        %v1294 = vpop.f32.mrb[0].mxu0
        %v1295 = vpop.f32.mrb[0].mxu0
        %v1296 = vadd.f32 0.0, %v1295
        %v1297 = vpop.f32.mrb[0].mxu0
        %1298 = vmatprep.mubr.bf16.mxu0 0
        %1299 = vmatmul.mubr.bf16.gmra.mrb[0].mxu0 %v964
        %v1300 = vpop.f32.mrb[0].mxu0
        %v1301 = vadd.f32 0.0, %v1300
        %v1302 = vpop.f32.mrb[0].mxu0
        %v1303 = vpop.f32.mrb[0].mxu0
        %v1304 = vadd.f32 0.0, %v1303
        %v1305 = vpop.f32.mrb[0].mxu0
        %1306 = vmatprep.mubr.bf16.mxu0 0
        %1307 = vmatmul.mubr.bf16.gmra.mrb[0].mxu0 %v965
        %v1308 = vpop.f32.mrb[0].mxu0
        %v1309 = vadd.f32 0.0, %v1308
        %v1310 = vpop.f32.mrb[0].mxu0
        %v1311 = vpop.f32.mrb[0].mxu0
        %v1312 = vadd.f32 0.0, %v1311
        %v1313 = vpop.f32.mrb[0].mxu0
        %1314 = vmatprep.mubr.bf16.mxu0 0
        %1315 = vmatmul.mubr.bf16.gmra.mrb[0].mxu0 %v966
        %v1316 = vpop.f32.mrb[0].mxu0
        %v1317 = vadd.f32 0.0, %v1316
        %v1318 = vpop.f32.mrb[0].mxu0
        %v1319 = vpop.f32.mrb[0].mxu0
        %v1320 = vadd.f32 0.0, %v1319
        %v1321 = vpop.f32.mrb[0].mxu0
        %1322 = vmatprep.mubr.bf16.mxu0 0
        %1323 = vmatmul.mubr.bf16.gmra.mrb[0].mxu0 %v967
        %v1324 = vpop.f32.mrb[0].mxu0
        %v1325 = vadd.f32 0.0, %v1324
        %v1326 = vpop.f32.mrb[0].mxu0
        %v1327 = vpop.f32.mrb[0].mxu0
        %v1328 = vadd.f32 0.0, %v1327
        %v1329 = vpop.f32.mrb[0].mxu0
        %1330 = vmatprep.mubr.bf16.mxu0 0
        %1331 = vmatmul.mubr.bf16.gmra.mrb[0].mxu0 %v968
        %v1332 = vpop.f32.mrb[0].mxu0
        %v1333 = vadd.f32 0.0, %v1332
        %v1334 = vpop.f32.mrb[0].mxu0
        %v1335 = vpop.f32.mrb[0].mxu0
        %v1336 = vadd.f32 0.0, %v1335
        %v1337 = vpop.f32.mrb[0].mxu0
        %1338 = vmatprep.mubr.bf16.mxu0 0
        %1339 = vmatmul.mubr.bf16.gmra.mrb[0].mxu0 %v969
        %v1340 = vpop.f32.mrb[0].mxu0
        %v1341 = vadd.f32 0.0, %v1340
        %v1342 = vpop.f32.mrb[0].mxu0
        %v1343 = vpop.f32.mrb[0].mxu0
        %v1344 = vadd.f32 0.0, %v1343
        %v1345 = vpop.f32.mrb[0].mxu0
        %1346 = vmatprep.mubr.bf16.mxu0 0
        %1347 = vmatmul.mubr.bf16.gmra.mrb[0].mxu0 %v970
        %v1348 = vpop.f32.mrb[0].mxu0
        %v1349 = vadd.f32 0.0, %v1348
        %v1350 = vpop.f32.mrb[0].mxu0
        %v1351 = vpop.f32.mrb[0].mxu0
        %v1352 = vadd.f32 0.0, %v1351
        %v1353 = vpop.f32.mrb[0].mxu0
        %1354 = vmatprep.mubr.bf16.mxu0 0
        %1355 = vmatmul.mubr.bf16.gmra.mrb[0].mxu0 %v971
        %v1356 = vpop.f32.mrb[0].mxu0
        %v1357 = vadd.f32 0.0, %v1356
        %v1358 = vpop.f32.mrb[0].mxu0
        %v1359 = vpop.f32.mrb[0].mxu0
        %v1360 = vadd.f32 0.0, %v1359
        %v1361 = vpop.f32.mrb[0].mxu0
        %1362 = vmatprep.mubr.bf16.mxu0 0
        %1363 = vmatmul.mubr.bf16.gmra.mrb[0].mxu0 %v972
        %v1364 = vpop.f32.mrb[0].mxu0
        %v1365 = vadd.f32 0.0, %v1364
        %v1366 = vpop.f32.mrb[0].mxu0
        %v1367 = vpop.f32.mrb[0].mxu0
        %v1368 = vadd.f32 0.0, %v1367
        %v1369 = vpop.f32.mrb[0].mxu0
        %1370 = vmatprep.mubr.bf16.mxu0 0
        %1371 = vmatmul.mubr.bf16.gmra.mrb[0].mxu0 %v973
        %v1372 = vpop.f32.mrb[0].mxu0
        %v1373 = vadd.f32 0.0, %v1372
        %v1374 = vpop.f32.mrb[0].mxu0
        %v1375 = vpop.f32.mrb[0].mxu0
        %v1376 = vadd.f32 0.0, %v1375
        %v1377 = vpop.f32.mrb[0].mxu0
        %1378 = vmatprep.mubr.bf16.mxu0 0
        %1379 = vmatmul.mubr.bf16.gmra.mrb[0].mxu0 %v974
        %v1380 = vpop.f32.mrb[0].mxu0
        %v1381 = vadd.f32 0.0, %v1380
        %v1382 = vpop.f32.mrb[0].mxu0
        %v1383 = vpop.f32.mrb[0].mxu0
        %v1384 = vadd.f32 0.0, %v1383
        %v1385 = vpop.f32.mrb[0].mxu0
        %1386 = vmatprep.mubr.bf16.mxu0 0
        %1387 = vmatmul.mubr.bf16.gmra.mrb[0].mxu0 %v975
        %v1388 = vpop.f32.mrb[0].mxu0
        %v1389 = vadd.f32 0.0, %v1388
        %v1390 = vpop.f32.mrb[0].mxu0
        %v1391 = vpop.f32.mrb[0].mxu0
        %v1392 = vadd.f32 0.0, %v1391
        %v1393 = vpop.f32.mrb[0].mxu0
        %1394 = vmatprep.mubr.bf16.mxu0 0
        %1395 = vmatmul.mubr.bf16.gmra.mrb[0].mxu0 %v976
        %v1396 = vpop.f32.mrb[0].mxu0
        %v1397 = vadd.f32 0.0, %v1396
        %v1398 = vpop.f32.mrb[0].mxu0
        %v1399 = vpop.f32.mrb[0].mxu0
        %v1400 = vadd.f32 0.0, %v1399
        %v1401 = vpop.f32.mrb[0].mxu0
        %1402 = vmatprep.mubr.bf16.mxu0 0
        %1403 = vmatmul.mubr.bf16.gmra.mrb[0].mxu0 %v977
        %v1404 = vpop.f32.mrb[0].mxu0
        %v1405 = vadd.f32 0.0, %v1404
        %v1406 = vpop.f32.mrb[0].mxu0
        %v1407 = vpop.f32.mrb[0].mxu0
        %v1408 = vadd.f32 0.0, %v1407
        %v1409 = vpop.f32.mrb[0].mxu0
        %1410 = vmatprep.mubr.bf16.mxu0 0
        %1411 = vmatmul.mubr.bf16.gmra.mrb[0].mxu0 %v978
        %v1412 = vpop.f32.mrb[0].mxu0
        %v1413 = vadd.f32 0.0, %v1412
        %v1414 = vpop.f32.mrb[0].mxu0
        %v1415 = vpop.f32.mrb[0].mxu0
        %v1416 = vadd.f32 0.0, %v1415
        %v1417 = vpop.f32.mrb[0].mxu0
        %1418 = vmatprep.mubr.bf16.mxu0 0
        %1419 = vmatmul.mubr.bf16.gmra.mrb[0].mxu0 %v979
        %v1420 = vpop.f32.mrb[0].mxu0
        %v1421 = vadd.f32 0.0, %v1420
        %v1422 = vpop.f32.mrb[0].mxu0
        %v1423 = vpop.f32.mrb[0].mxu0
        %v1424 = vadd.f32 0.0, %v1423
        %v1425 = vpop.f32.mrb[0].mxu0
        %1426 = vmatprep.mubr.bf16.mxu0 0
        %1427 = vmatmul.mubr.bf16.gmra.mrb[0].mxu0 %v980
        %v1428 = vpop.f32.mrb[0].mxu0
        %v1429 = vadd.f32 0.0, %v1428
        %v1430 = vpop.f32.mrb[0].mxu0
        %v1431 = vpop.f32.mrb[0].mxu0
        %v1432 = vadd.f32 0.0, %v1431
        %v1433 = vpop.f32.mrb[0].mxu0
        %1434 = vmatprep.mubr.bf16.mxu0 0
        %1435 = vmatmul.mubr.bf16.gmra.mrb[0].mxu0 %v981
        %v1436 = vpop.f32.mrb[0].mxu0
        %v1437 = vadd.f32 0.0, %v1436
        %v1438 = vpop.f32.mrb[0].mxu0
        %v1439 = vpop.f32.mrb[0].mxu0
        %v1440 = vadd.f32 0.0, %v1439
        %v1441 = vpop.f32.mrb[0].mxu0
        %1442 = vmatprep.mubr.bf16.mxu0 0
        %1443 = vmatmul.mubr.bf16.gmra.mrb[0].mxu0 %v982
        %v1444 = vpop.f32.mrb[0].mxu0
        %v1445 = vadd.f32 0.0, %v1444
        %v1446 = vpop.f32.mrb[0].mxu0
        %v1447 = vpop.f32.mrb[0].mxu0
        %v1448 = vadd.f32 0.0, %v1447
        %v1449 = vpop.f32.mrb[0].mxu0
        %1450 = vmatprep.mubr.bf16.mxu0 0
        %1451 = vmatmul.mubr.bf16.gmra.mrb[0].mxu0 %v983
        %v1452 = vpop.f32.mrb[0].mxu0
        %v1453 = vadd.f32 0.0, %v1452
        %v1454 = vpop.f32.mrb[0].mxu0
        %v1455 = vpop.f32.mrb[0].mxu0
        %v1456 = vadd.f32 0.0, %v1455
        %v1457 = vpop.f32.mrb[0].mxu0
        %1458 = vmatprep.mubr.bf16.mxu0 0
        %1459 = vmatmul.mubr.bf16.gmra.mrb[0].mxu0 %v984
        %v1460 = vpop.f32.mrb[0].mxu0
        %v1461 = vadd.f32 0.0, %v1460
        %v1462 = vpop.f32.mrb[0].mxu0
        %v1463 = vpop.f32.mrb[0].mxu0
        %v1464 = vadd.f32 0.0, %v1463
        %v1465 = vpop.f32.mrb[0].mxu0
        %1466 = vmatprep.mubr.bf16.mxu0 0
        %1467 = vmatmul.mubr.bf16.gmra.mrb[0].mxu0 %v985
        %v1468 = vpop.f32.mrb[0].mxu0
        %v1469 = vadd.f32 0.0, %v1468
        %v1470 = vpop.f32.mrb[0].mxu0
        %v1471 = vpop.f32.mrb[0].mxu0
        %v1472 = vadd.f32 0.0, %v1471
        %v1473 = vpop.f32.mrb[0].mxu0
        %1474 = vmatprep.mubr.bf16.mxu0 0
        %1475 = vmatmul.mubr.bf16.gmra.mrb[0].mxu0 %v986
        %v1476 = vpop.f32.mrb[0].mxu0
        %v1477 = vadd.f32 0.0, %v1476
        %v1478 = vpop.f32.mrb[0].mxu0
        %v1479 = vpop.f32.mrb[0].mxu0
        %v1480 = vadd.f32 0.0, %v1479
        %v1481 = vpop.f32.mrb[0].mxu0
        %1482 = vmatprep.mubr.bf16.mxu0 0
        %1483 = vmatmul.mubr.bf16.gmra.mrb[0].mxu0 %v987
        %v1484 = vpop.f32.mrb[0].mxu0
        %v1485 = vadd.f32 0.0, %v1484
        %v1486 = vpop.f32.mrb[0].mxu0
        %v1487 = vpop.f32.mrb[0].mxu0
        %v1488 = vadd.f32 0.0, %v1487
        %v1489 = vpop.f32.mrb[0].mxu0
        %1490 = vmatprep.mubr.bf16.mxu0 0
        %1491 = vmatmul.mubr.bf16.gmra.mrb[0].mxu0 %v988
        %v1492 = vpop.f32.mrb[0].mxu0
        %v1493 = vadd.f32 0.0, %v1492
        %v1494 = vpop.f32.mrb[0].mxu0
        %v1495 = vpop.f32.mrb[0].mxu0
        %v1496 = vadd.f32 0.0, %v1495
        %v1497 = vpop.f32.mrb[0].mxu0
        %1498 = vmatprep.mubr.bf16.mxu0 0
        %1499 = vmatmul.mubr.bf16.gmra.mrb[0].mxu0 %v989
        %v1500 = vpop.f32.mrb[0].mxu0
        %v1501 = vadd.f32 0.0, %v1500
        %v1502 = vpop.f32.mrb[0].mxu0
        %v1503 = vpop.f32.mrb[0].mxu0
        %v1504 = vadd.f32 0.0, %v1503
        %v1505 = vpop.f32.mrb[0].mxu0
        %1506 = vmatprep.mubr.bf16.mxu0 0
        %1507 = vmatmul.mubr.bf16.gmra.mrb[0].mxu0 %v990
        %v1508 = vpop.f32.mrb[0].mxu0
        %v1509 = vadd.f32 0.0, %v1508
        %v1510 = vpop.f32.mrb[0].mxu0
        %v1511 = vpop.f32.mrb[0].mxu0
        %v1512 = vadd.f32 0.0, %v1511
        %v1513 = vpop.f32.mrb[0].mxu0
        %1514 = vmatprep.mubr.bf16.mxu0 0
        %1515 = vmatmul.mubr.bf16.gmra.mrb[0].mxu0 %v991
        %v1516 = vpop.f32.mrb[0].mxu0
        %v1517 = vadd.f32 0.0, %v1516
        %v1518 = vpop.f32.mrb[0].mxu0
        %v1519 = vpop.f32.mrb[0].mxu0
        %v1520 = vadd.f32 0.0, %v1519
        %v1521 = vpop.f32.mrb[0].mxu0
        %1522 = vmatprep.mubr.bf16.mxu0 0
        %1523 = vmatmul.mubr.bf16.gmra.mrb[0].mxu0 %v992
        %v1524 = vpop.f32.mrb[0].mxu0
        %v1525 = vadd.f32 0.0, %v1524
        %v1526 = vpop.f32.mrb[0].mxu0
        %v1527 = vpop.f32.mrb[0].mxu0
        %v1528 = vadd.f32 0.0, %v1527
        %v1529 = vpop.f32.mrb[0].mxu0
        %1530 = vmatprep.mubr.bf16.mxu0 0
        %1531 = vmatmul.mubr.bf16.gmra.mrb[0].mxu0 %v993
        %v1532 = vpop.f32.mrb[0].mxu0
        %v1533 = vadd.f32 0.0, %v1532
        %v1534 = vpop.f32.mrb[0].mxu0
        %v1535 = vpop.f32.mrb[0].mxu0
        %v1536 = vadd.f32 0.0, %v1535
        %v1537 = vpop.f32.mrb[0].mxu0
        %1538 = vmatprep.mubr.bf16.mxu0 0
        %1539 = vmatmul.mubr.bf16.gmra.mrb[0].mxu0 %v994
        %v1540 = vpop.f32.mrb[0].mxu0
        %v1541 = vadd.f32 0.0, %v1540
        %v1542 = vpop.f32.mrb[0].mxu0
        %v1543 = vpop.f32.mrb[0].mxu0
        %v1544 = vadd.f32 0.0, %v1543
        %v1545 = vpop.f32.mrb[0].mxu0
        %1546 = vmatprep.mubr.bf16.mxu0 0
        %1547 = vmatmul.mubr.bf16.gmra.mrb[0].mxu0 %v995
        %v1548 = vpop.f32.mrb[0].mxu0
        %v1549 = vadd.f32 0.0, %v1548
        %v1550 = vpop.f32.mrb[0].mxu0
        %v1551 = vpop.f32.mrb[0].mxu0
        %v1552 = vadd.f32 0.0, %v1551
        %v1553 = vpop.f32.mrb[0].mxu0
        %1554 = vmatprep.mubr.bf16.mxu0 0
        %1555 = vmatmul.mubr.bf16.gmra.mrb[0].mxu0 %v996
        %v1556 = vpop.f32.mrb[0].mxu0
        %v1557 = vadd.f32 0.0, %v1556
        %v1558 = vpop.f32.mrb[0].mxu0
        %v1559 = vpop.f32.mrb[0].mxu0
        %v1560 = vadd.f32 0.0, %v1559
        %v1561 = vpop.f32.mrb[0].mxu0
        %1562 = vmatprep.mubr.bf16.mxu0 0
        %1563 = vmatmul.mubr.bf16.gmra.mrb[0].mxu0 %v997
        %v1564 = vpop.f32.mrb[0].mxu0
        %v1565 = vadd.f32 0.0, %v1564
        %v1566 = vpop.f32.mrb[0].mxu0
        %v1567 = vpop.f32.mrb[0].mxu0
        %v1568 = vadd.f32 0.0, %v1567
        %v1569 = vpop.f32.mrb[0].mxu0
        %1570 = vmatprep.mubr.bf16.mxu0 0
        %1571 = vmatmul.mubr.bf16.gmra.mrb[0].mxu0 %v998
        %v1572 = vpop.f32.mrb[0].mxu0
        %v1573 = vadd.f32 0.0, %v1572
        %v1574 = vpop.f32.mrb[0].mxu0
        %v1575 = vpop.f32.mrb[0].mxu0
        %v1576 = vadd.f32 0.0, %v1575
        %v1577 = vpop.f32.mrb[0].mxu0
        %1578 = vmatprep.mubr.bf16.mxu0 0
        %1579 = vmatmul.mubr.bf16.gmra.mrb[0].mxu0 %v999
        %v1580 = vpop.f32.mrb[0].mxu0
        %v1581 = vadd.f32 0.0, %v1580
        %v1582 = vpop.f32.mrb[0].mxu0
        %v1583 = vpop.f32.mrb[0].mxu0
        %v1584 = vadd.f32 0.0, %v1583
        %v1585 = vpop.f32.mrb[0].mxu0
        %1586 = vmatprep.mubr.bf16.mxu0 0
        %1587 = vmatmul.mubr.bf16.gmra.mrb[0].mxu0 %v1000
        %v1588 = vpop.f32.mrb[0].mxu0
        %v1589 = vadd.f32 0.0, %v1588
        %v1590 = vpop.f32.mrb[0].mxu0
        %v1591 = vpop.f32.mrb[0].mxu0
        %v1592 = vadd.f32 0.0, %v1591
        %v1593 = vpop.f32.mrb[0].mxu0
        %1594 = vmatprep.mubr.bf16.mxu0 0
        %1595 = vmatmul.mubr.bf16.gmra.mrb[0].mxu0 %v1001
        %v1596 = vpop.f32.mrb[0].mxu0
        %v1597 = vadd.f32 0.0, %v1596
        %v1598 = vpop.f32.mrb[0].mxu0
        %v1599 = vpop.f32.mrb[0].mxu0
        %v1600 = vadd.f32 0.0, %v1599
        %v1601 = vpop.f32.mrb[0].mxu0
        %1602 = vmatprep.mubr.bf16.mxu0 0
        %1603 = vmatmul.mubr.bf16.gmra.mrb[0].mxu0 %v1002
        %v1604 = vpop.f32.mrb[0].mxu0
        %v1605 = vadd.f32 0.0, %v1604
        %v1606 = vpop.f32.mrb[0].mxu0
        %v1607 = vpop.f32.mrb[0].mxu0
        %v1608 = vadd.f32 0.0, %v1607
        %v1609 = vpop.f32.mrb[0].mxu0
        %1610 = vmatprep.mubr.bf16.mxu0 0
        %1611 = vmatmul.mubr.bf16.gmra.mrb[0].mxu0 %v1003
        %v1612 = vpop.f32.mrb[0].mxu0
        %v1613 = vadd.f32 0.0, %v1612
        %v1614 = vpop.f32.mrb[0].mxu0
        %v1615 = vpop.f32.mrb[0].mxu0
        %v1616 = vadd.f32 0.0, %v1615
        %v1617 = vpop.f32.mrb[0].mxu0
        %1618 = vmatprep.mubr.bf16.mxu0 0
        %1619 = vmatmul.mubr.bf16.gmra.mrb[0].mxu0 %v1004
        %v1620 = vpop.f32.mrb[0].mxu0
        %v1621 = vadd.f32 0.0, %v1620
        %v1622 = vpop.f32.mrb[0].mxu0
        %v1623 = vpop.f32.mrb[0].mxu0
        %v1624 = vadd.f32 0.0, %v1623
        %v1625 = vpop.f32.mrb[0].mxu0
        %1626 = vmatprep.mubr.bf16.mxu0 0
        %1627 = vmatmul.mubr.bf16.gmra.mrb[0].mxu0 %v1005
        %v1628 = vpop.f32.mrb[0].mxu0
        %v1629 = vadd.f32 0.0, %v1628
        %v1630 = vpop.f32.mrb[0].mxu0
        %v1631 = vpop.f32.mrb[0].mxu0
        %v1632 = vadd.f32 0.0, %v1631
        %v1633 = vpop.f32.mrb[0].mxu0
        %1634 = vmatprep.mubr.bf16.mxu0 0
        %1635 = vmatmul.mubr.bf16.gmra.mrb[0].mxu0 %v1006
        %v1636 = vpop.f32.mrb[0].mxu0
        %v1637 = vadd.f32 0.0, %v1636
        %v1638 = vpop.f32.mrb[0].mxu0
        %v1639 = vpop.f32.mrb[0].mxu0
        %v1640 = vadd.f32 0.0, %v1639
        %v1641 = vpop.f32.mrb[0].mxu0
        %1642 = vmatprep.mubr.bf16.mxu0 0
        %1643 = vmatmul.mubr.bf16.gmra.mrb[0].mxu0 %v1007
        %v1644 = vpop.f32.mrb[0].mxu0
        %v1645 = vadd.f32 0.0, %v1644
        %v1646 = vpop.f32.mrb[0].mxu0
        %v1647 = vpop.f32.mrb[0].mxu0
        %v1648 = vadd.f32 0.0, %v1647
        %v1649 = vpop.f32.mrb[0].mxu0
        %1650 = vmatprep.mubr.bf16.mxu0 0
        %1651 = vmatmul.mubr.bf16.gmra.mrb[0].mxu0 %v1008
        %v1652 = vpop.f32.mrb[0].mxu0
        %v1653 = vadd.f32 0.0, %v1652
        %v1654 = vpop.f32.mrb[0].mxu0
        %v1655 = vpop.f32.mrb[0].mxu0
        %v1656 = vadd.f32 0.0, %v1655
        %v1657 = vpop.f32.mrb[0].mxu0
        %1658 = vmatprep.mubr.bf16.mxu0 0
        %1659 = vmatmul.mubr.bf16.gmra.mrb[0].mxu0 %v1009
        %v1660 = vpop.f32.mrb[0].mxu0
        %v1661 = vadd.f32 0.0, %v1660
        %v1662 = vpop.f32.mrb[0].mxu0
        %v1663 = vpop.f32.mrb[0].mxu0
        %v1664 = vadd.f32 0.0, %v1663
        %v1665 = vpop.f32.mrb[0].mxu0
        %1666 = vdwg.mxu0
        %v1667 = vadd.f32 %v418, %v1157
        %v1668 = vadd.f32 %v419, %v1160
        %v1669 = vadd.f32 %v420, %v1165
        %v1670 = vadd.f32 %v421, %v1168
        %v1671 = vadd.f32 %v422, %v1173
        %v1672 = vadd.f32 %v423, %v1176
        %v1673 = vadd.f32 %v424, %v1181
        %v1674 = vadd.f32 %v425, %v1184
        %v1675 = vadd.f32 %v426, %v1189
        %v1676 = vadd.f32 %v427, %v1192
        %v1677 = vadd.f32 %v428, %v1197
        %v1678 = vadd.f32 %v429, %v1200
        %v1679 = vadd.f32 %v430, %v1205
        %v1680 = vadd.f32 %v431, %v1208
        %v1681 = vadd.f32 %v432, %v1213
        %v1682 = vadd.f32 %v433, %v1216
        %v1683 = vadd.f32 %v434, %v1221
        %v1684 = vadd.f32 %v435, %v1224
        %v1685 = vadd.f32 %v436, %v1229
        %v1686 = vadd.f32 %v437, %v1232
        %v1687 = vadd.f32 %v438, %v1237
        %v1688 = vadd.f32 %v439, %v1240
        %v1689 = vadd.f32 %v440, %v1245
        %v1690 = vadd.f32 %v441, %v1248
        %v1691 = vadd.f32 %v442, %v1253
        %v1692 = vadd.f32 %v443, %v1256
        %v1693 = vadd.f32 %v444, %v1261
        %v1694 = vadd.f32 %v445, %v1264
        %v1695 = vadd.f32 %v446, %v1269
        %v1696 = vadd.f32 %v447, %v1272
        %v1697 = vadd.f32 %v448, %v1277
        %v1698 = vadd.f32 %v449, %v1280
        %v1699 = vadd.f32 %v450, %v1285
        %v1700 = vadd.f32 %v451, %v1288
        %v1701 = vadd.f32 %v452, %v1293
        %v1702 = vadd.f32 %v453, %v1296
        %v1703 = vadd.f32 %v454, %v1301
        %v1704 = vadd.f32 %v455, %v1304
        %v1705 = vadd.f32 %v456, %v1309
        %v1706 = vadd.f32 %v457, %v1312
        %v1707 = vadd.f32 %v458, %v1317
        %v1708 = vadd.f32 %v459, %v1320
        %v1709 = vadd.f32 %v460, %v1325
        %v1710 = vadd.f32 %v461, %v1328
        %v1711 = vadd.f32 %v462, %v1333
        %v1712 = vadd.f32 %v463, %v1336
        %v1713 = vadd.f32 %v464, %v1341
        %v1714 = vadd.f32 %v465, %v1344
        %v1715 = vadd.f32 %v466, %v1349
        %v1716 = vadd.f32 %v467, %v1352
        %v1717 = vadd.f32 %v468, %v1357
        %v1718 = vadd.f32 %v469, %v1360
        %v1719 = vadd.f32 %v470, %v1365
        %v1720 = vadd.f32 %v471, %v1368
        %v1721 = vadd.f32 %v472, %v1373
        %v1722 = vadd.f32 %v473, %v1376
        %v1723 = vadd.f32 %v474, %v1381
        %v1724 = vadd.f32 %v475, %v1384
        %v1725 = vadd.f32 %v476, %v1389
        %v1726 = vadd.f32 %v477, %v1392
        %v1727 = vadd.f32 %v478, %v1397
        %v1728 = vadd.f32 %v479, %v1400
        %v1729 = vadd.f32 %v480, %v1405
        %v1730 = vadd.f32 %v481, %v1408
        %v1731 = vadd.f32 %v482, %v1413
        %v1732 = vadd.f32 %v483, %v1416
        %v1733 = vadd.f32 %v484, %v1421
        %v1734 = vadd.f32 %v485, %v1424
        %v1735 = vadd.f32 %v486, %v1429
        %v1736 = vadd.f32 %v487, %v1432
        %v1737 = vadd.f32 %v488, %v1437
        %v1738 = vadd.f32 %v489, %v1440
        %v1739 = vadd.f32 %v490, %v1445
        %v1740 = vadd.f32 %v491, %v1448
        %v1741 = vadd.f32 %v492, %v1453
        %v1742 = vadd.f32 %v493, %v1456
        %v1743 = vadd.f32 %v494, %v1461
        %v1744 = vadd.f32 %v495, %v1464
        %v1745 = vadd.f32 %v496, %v1469
        %v1746 = vadd.f32 %v497, %v1472
        %v1747 = vadd.f32 %v498, %v1477
        %v1748 = vadd.f32 %v499, %v1480
        %v1749 = vadd.f32 %v500, %v1485
        %v1750 = vadd.f32 %v501, %v1488
        %v1751 = vadd.f32 %v502, %v1493
        %v1752 = vadd.f32 %v503, %v1496
        %v1753 = vadd.f32 %v504, %v1501
        %v1754 = vadd.f32 %v505, %v1504
        %v1755 = vadd.f32 %v506, %v1509
        %v1756 = vadd.f32 %v507, %v1512
        %v1757 = vadd.f32 %v508, %v1517
        %v1758 = vadd.f32 %v509, %v1520
        %v1759 = vadd.f32 %v510, %v1525
        %v1760 = vadd.f32 %v511, %v1528
        %v1761 = vadd.f32 %v512, %v1533
        %v1762 = vadd.f32 %v513, %v1536
        %v1763 = vadd.f32 %v514, %v1541
        %v1764 = vadd.f32 %v515, %v1544
        %v1765 = vadd.f32 %v516, %v1549
        %v1766 = vadd.f32 %v517, %v1552
        %v1767 = vadd.f32 %v518, %v1557
        %v1768 = vadd.f32 %v519, %v1560
        %v1769 = vadd.f32 %v520, %v1565
        %v1770 = vadd.f32 %v521, %v1568
        %v1771 = vadd.f32 %v522, %v1573
        %v1772 = vadd.f32 %v523, %v1576
        %v1773 = vadd.f32 %v524, %v1581
        %v1774 = vadd.f32 %v525, %v1584
        %v1775 = vadd.f32 %v526, %v1589
        %v1776 = vadd.f32 %v527, %v1592
        %v1777 = vadd.f32 %v528, %v1597
        %v1778 = vadd.f32 %v529, %v1600
        %v1779 = vadd.f32 %v530, %v1605
        %v1780 = vadd.f32 %v531, %v1608
        %v1781 = vadd.f32 %v532, %v1613
        %v1782 = vadd.f32 %v533, %v1616
        %v1783 = vadd.f32 %v534, %v1621
        %v1784 = vadd.f32 %v535, %v1624
        %v1785 = vadd.f32 %v536, %v1629
        %v1786 = vadd.f32 %v537, %v1632
        %v1787 = vadd.f32 %v538, %v1637
        %v1788 = vadd.f32 %v539, %v1640
        %v1789 = vadd.f32 %v540, %v1645
        %v1790 = vadd.f32 %v541, %v1648
        %v1791 = vadd.f32 %v542, %v1653
        %v1792 = vadd.f32 %v543, %v1656
        %v1793 = vadd.f32 %v544, %v1661
        %v1794 = vadd.f32 %v545, %v1664
        %1795 = vst [vmem:[#allocation2] sm:$0xff] %v1667
        %1796 = vst [vmem:[#allocation2 + $0x8] sm:$0xff] %v1668
        %1797 = vst [vmem:[#allocation2 + $0x10] sm:$0xff] %v1669
        %1798 = vst [vmem:[#allocation2 + $0x18] sm:$0xff] %v1670
        %1799 = vst [vmem:[#allocation2 + $0x20] sm:$0xff] %v1671
        %1800 = vst [vmem:[#allocation2 + $0x28] sm:$0xff] %v1672
        %1801 = vst [vmem:[#allocation2 + $0x30] sm:$0xff] %v1673
        %1802 = vst [vmem:[#allocation2 + $0x38] sm:$0xff] %v1674
        %1803 = vst [vmem:[#allocation2 + $0x40] sm:$0xff] %v1675
        %1804 = vst [vmem:[#allocation2 + $0x48] sm:$0xff] %v1676
        %1805 = vst [vmem:[#allocation2 + $0x50] sm:$0xff] %v1677
        %1806 = vst [vmem:[#allocation2 + $0x58] sm:$0xff] %v1678
        %1807 = vst [vmem:[#allocation2 + $0x60] sm:$0xff] %v1679
        %1808 = vst [vmem:[#allocation2 + $0x68] sm:$0xff] %v1680
        %1809 = vst [vmem:[#allocation2 + $0x70] sm:$0xff] %v1681
        %1810 = vst [vmem:[#allocation2 + $0x78] sm:$0xff] %v1682
        %1811 = vst [vmem:[#allocation2 + $0x80] sm:$0xff] %v1683
        %1812 = vst [vmem:[#allocation2 + $0x88] sm:$0xff] %v1684
        %1813 = vst [vmem:[#allocation2 + $0x90] sm:$0xff] %v1685
        %1814 = vst [vmem:[#allocation2 + $0x98] sm:$0xff] %v1686
        %1815 = vst [vmem:[#allocation2 + $0xa0] sm:$0xff] %v1687
        %1816 = vst [vmem:[#allocation2 + $0xa8] sm:$0xff] %v1688
        %1817 = vst [vmem:[#allocation2 + $0xb0] sm:$0xff] %v1689
        %1818 = vst [vmem:[#allocation2 + $0xb8] sm:$0xff] %v1690
        %1819 = vst [vmem:[#allocation2 + $0xc0] sm:$0xff] %v1691
        %1820 = vst [vmem:[#allocation2 + $0xc8] sm:$0xff] %v1692
        %1821 = vst [vmem:[#allocation2 + $0xd0] sm:$0xff] %v1693
        %1822 = vst [vmem:[#allocation2 + $0xd8] sm:$0xff] %v1694
        %1823 = vst [vmem:[#allocation2 + $0xe0] sm:$0xff] %v1695
        %1824 = vst [vmem:[#allocation2 + $0xe8] sm:$0xff] %v1696
        %1825 = vst [vmem:[#allocation2 + $0xf0] sm:$0xff] %v1697
        %1826 = vst [vmem:[#allocation2 + $0xf8] sm:$0xff] %v1698
        %1827 = vst [vmem:[#allocation2 + $0x100] sm:$0xff] %v1699
        %1828 = vst [vmem:[#allocation2 + $0x108] sm:$0xff] %v1700
        %1829 = vst [vmem:[#allocation2 + $0x110] sm:$0xff] %v1701
        %1830 = vst [vmem:[#allocation2 + $0x118] sm:$0xff] %v1702
        %1831 = vst [vmem:[#allocation2 + $0x120] sm:$0xff] %v1703
        %1832 = vst [vmem:[#allocation2 + $0x128] sm:$0xff] %v1704
        %1833 = vst [vmem:[#allocation2 + $0x130] sm:$0xff] %v1705
        %1834 = vst [vmem:[#allocation2 + $0x138] sm:$0xff] %v1706
        %1835 = vst [vmem:[#allocation2 + $0x140] sm:$0xff] %v1707
        %1836 = vst [vmem:[#allocation2 + $0x148] sm:$0xff] %v1708
        %1837 = vst [vmem:[#allocation2 + $0x150] sm:$0xff] %v1709
        %1838 = vst [vmem:[#allocation2 + $0x158] sm:$0xff] %v1710
        %1839 = vst [vmem:[#allocation2 + $0x160] sm:$0xff] %v1711
        %1840 = vst [vmem:[#allocation2 + $0x168] sm:$0xff] %v1712
        %1841 = vst [vmem:[#allocation2 + $0x170] sm:$0xff] %v1713
        %1842 = vst [vmem:[#allocation2 + $0x178] sm:$0xff] %v1714
        %1843 = vst [vmem:[#allocation2 + $0x180] sm:$0xff] %v1715
        %1844 = vst [vmem:[#allocation2 + $0x188] sm:$0xff] %v1716
        %1845 = vst [vmem:[#allocation2 + $0x190] sm:$0xff] %v1717
        %1846 = vst [vmem:[#allocation2 + $0x198] sm:$0xff] %v1718
        %1847 = vst [vmem:[#allocation2 + $0x1a0] sm:$0xff] %v1719
        %1848 = vst [vmem:[#allocation2 + $0x1a8] sm:$0xff] %v1720
        %1849 = vst [vmem:[#allocation2 + $0x1b0] sm:$0xff] %v1721
        %1850 = vst [vmem:[#allocation2 + $0x1b8] sm:$0xff] %v1722
        %1851 = vst [vmem:[#allocation2 + $0x1c0] sm:$0xff] %v1723
        %1852 = vst [vmem:[#allocation2 + $0x1c8] sm:$0xff] %v1724
        %1853 = vst [vmem:[#allocation2 + $0x1d0] sm:$0xff] %v1725
        %1854 = vst [vmem:[#allocation2 + $0x1d8] sm:$0xff] %v1726
        %1855 = vst [vmem:[#allocation2 + $0x1e0] sm:$0xff] %v1727
        %1856 = vst [vmem:[#allocation2 + $0x1e8] sm:$0xff] %v1728
        %1857 = vst [vmem:[#allocation2 + $0x1f0] sm:$0xff] %v1729
        %1858 = vst [vmem:[#allocation2 + $0x1f8] sm:$0xff] %v1730
        %1859 = vst [vmem:[#allocation2 + $0x200] sm:$0xff] %v1731
        %1860 = vst [vmem:[#allocation2 + $0x208] sm:$0xff] %v1732
        %1861 = vst [vmem:[#allocation2 + $0x210] sm:$0xff] %v1733
        %1862 = vst [vmem:[#allocation2 + $0x218] sm:$0xff] %v1734
        %1863 = vst [vmem:[#allocation2 + $0x220] sm:$0xff] %v1735
        %1864 = vst [vmem:[#allocation2 + $0x228] sm:$0xff] %v1736
        %1865 = vst [vmem:[#allocation2 + $0x230] sm:$0xff] %v1737
        %1866 = vst [vmem:[#allocation2 + $0x238] sm:$0xff] %v1738
        %1867 = vst [vmem:[#allocation2 + $0x240] sm:$0xff] %v1739
        %1868 = vst [vmem:[#allocation2 + $0x248] sm:$0xff] %v1740
        %1869 = vst [vmem:[#allocation2 + $0x250] sm:$0xff] %v1741
        %1870 = vst [vmem:[#allocation2 + $0x258] sm:$0xff] %v1742
        %1871 = vst [vmem:[#allocation2 + $0x260] sm:$0xff] %v1743
        %1872 = vst [vmem:[#allocation2 + $0x268] sm:$0xff] %v1744
        %1873 = vst [vmem:[#allocation2 + $0x270] sm:$0xff] %v1745
        %1874 = vst [vmem:[#allocation2 + $0x278] sm:$0xff] %v1746
        %1875 = vst [vmem:[#allocation2 + $0x280] sm:$0xff] %v1747
        %1876 = vst [vmem:[#allocation2 + $0x288] sm:$0xff] %v1748
        %1877 = vst [vmem:[#allocation2 + $0x290] sm:$0xff] %v1749
        %1878 = vst [vmem:[#allocation2 + $0x298] sm:$0xff] %v1750
        %1879 = vst [vmem:[#allocation2 + $0x2a0] sm:$0xff] %v1751
        %1880 = vst [vmem:[#allocation2 + $0x2a8] sm:$0xff] %v1752
        %1881 = vst [vmem:[#allocation2 + $0x2b0] sm:$0xff] %v1753
        %1882 = vst [vmem:[#allocation2 + $0x2b8] sm:$0xff] %v1754
        %1883 = vst [vmem:[#allocation2 + $0x2c0] sm:$0xff] %v1755
        %1884 = vst [vmem:[#allocation2 + $0x2c8] sm:$0xff] %v1756
        %1885 = vst [vmem:[#allocation2 + $0x2d0] sm:$0xff] %v1757
        %1886 = vst [vmem:[#allocation2 + $0x2d8] sm:$0xff] %v1758
        %1887 = vst [vmem:[#allocation2 + $0x2e0] sm:$0xff] %v1759
        %1888 = vst [vmem:[#allocation2 + $0x2e8] sm:$0xff] %v1760
        %1889 = vst [vmem:[#allocation2 + $0x2f0] sm:$0xff] %v1761
        %1890 = vst [vmem:[#allocation2 + $0x2f8] sm:$0xff] %v1762
        %1891 = vst [vmem:[#allocation2 + $0x300] sm:$0xff] %v1763
        %1892 = vst [vmem:[#allocation2 + $0x308] sm:$0xff] %v1764
        %1893 = vst [vmem:[#allocation2 + $0x310] sm:$0xff] %v1765
        %1894 = vst [vmem:[#allocation2 + $0x318] sm:$0xff] %v1766
        %1895 = vst [vmem:[#allocation2 + $0x320] sm:$0xff] %v1767
        %1896 = vst [vmem:[#allocation2 + $0x328] sm:$0xff] %v1768
        %1897 = vst [vmem:[#allocation2 + $0x330] sm:$0xff] %v1769
        %1898 = vst [vmem:[#allocation2 + $0x338] sm:$0xff] %v1770
        %1899 = vst [vmem:[#allocation2 + $0x340] sm:$0xff] %v1771
        %1900 = vst [vmem:[#allocation2 + $0x348] sm:$0xff] %v1772
        %1901 = vst [vmem:[#allocation2 + $0x350] sm:$0xff] %v1773
        %1902 = vst [vmem:[#allocation2 + $0x358] sm:$0xff] %v1774
        %1903 = vst [vmem:[#allocation2 + $0x360] sm:$0xff] %v1775
        %1904 = vst [vmem:[#allocation2 + $0x368] sm:$0xff] %v1776
        %1905 = vst [vmem:[#allocation2 + $0x370] sm:$0xff] %v1777
        %1906 = vst [vmem:[#allocation2 + $0x378] sm:$0xff] %v1778
        %1907 = vst [vmem:[#allocation2 + $0x380] sm:$0xff] %v1779
        %1908 = vst [vmem:[#allocation2 + $0x388] sm:$0xff] %v1780
        %1909 = vst [vmem:[#allocation2 + $0x390] sm:$0xff] %v1781
        %1910 = vst [vmem:[#allocation2 + $0x398] sm:$0xff] %v1782
        %1911 = vst [vmem:[#allocation2 + $0x3a0] sm:$0xff] %v1783
        %1912 = vst [vmem:[#allocation2 + $0x3a8] sm:$0xff] %v1784
        %1913 = vst [vmem:[#allocation2 + $0x3b0] sm:$0xff] %v1785
        %1914 = vst [vmem:[#allocation2 + $0x3b8] sm:$0xff] %v1786
        %1915 = vst [vmem:[#allocation2 + $0x3c0] sm:$0xff] %v1787
        %1916 = vst [vmem:[#allocation2 + $0x3c8] sm:$0xff] %v1788
        %1917 = vst [vmem:[#allocation2 + $0x3d0] sm:$0xff] %v1789
        %1918 = vst [vmem:[#allocation2 + $0x3d8] sm:$0xff] %v1790
        %1919 = vst [vmem:[#allocation2 + $0x3e0] sm:$0xff] %v1791
        %1920 = vst [vmem:[#allocation2 + $0x3e8] sm:$0xff] %v1792
        %1921 = vst [vmem:[#allocation2 + $0x3f0] sm:$0xff] %v1793
        %1922 = vst [vmem:[#allocation2 + $0x3f8] sm:$0xff] %v1794
        %p1923 = scmp.eq.s32.totalorder %s30, 1
        // Predicated region
        $region49: #{stem_forward.1} parent=31 // pred_check
          %p1924 = pneg %p1923
        $region50: #{stem_forward.1} parent=31 // pred_check_branch
          %1926 = sbr.rel (%p1924) target = $region52
        $region51: #{stem_forward.1} parent=31 // pred_region
          %v1927 = vld [vmem:[#allocation2] sm:$0xff]
          %v1928 = vld [vmem:[#allocation2 + $0x8] sm:$0xff]
          %v1929 = vld [vmem:[#allocation2 + $0x10] sm:$0xff]
          %v1930 = vld [vmem:[#allocation2 + $0x18] sm:$0xff]
          %v1931 = vld [vmem:[#allocation2 + $0x20] sm:$0xff]
          %v1932 = vld [vmem:[#allocation2 + $0x28] sm:$0xff]
          %v1933 = vld [vmem:[#allocation2 + $0x30] sm:$0xff]
          %v1934 = vld [vmem:[#allocation2 + $0x38] sm:$0xff]
          %v1935 = vld [vmem:[#allocation2 + $0x40] sm:$0xff]
          %v1936 = vld [vmem:[#allocation2 + $0x48] sm:$0xff]
          %v1937 = vld [vmem:[#allocation2 + $0x50] sm:$0xff]
          %v1938 = vld [vmem:[#allocation2 + $0x58] sm:$0xff]
          %v1939 = vld [vmem:[#allocation2 + $0x60] sm:$0xff]
          %v1940 = vld [vmem:[#allocation2 + $0x68] sm:$0xff]
          %v1941 = vld [vmem:[#allocation2 + $0x70] sm:$0xff]
          %v1942 = vld [vmem:[#allocation2 + $0x78] sm:$0xff]
          %v1943 = vld [vmem:[#allocation2 + $0x80] sm:$0xff]
          %v1944 = vld [vmem:[#allocation2 + $0x88] sm:$0xff]
          %v1945 = vld [vmem:[#allocation2 + $0x90] sm:$0xff]
          %v1946 = vld [vmem:[#allocation2 + $0x98] sm:$0xff]
          %v1947 = vld [vmem:[#allocation2 + $0xa0] sm:$0xff]
          %v1948 = vld [vmem:[#allocation2 + $0xa8] sm:$0xff]
          %v1949 = vld [vmem:[#allocation2 + $0xb0] sm:$0xff]
          %v1950 = vld [vmem:[#allocation2 + $0xb8] sm:$0xff]
          %v1951 = vld [vmem:[#allocation2 + $0xc0] sm:$0xff]
          %v1952 = vld [vmem:[#allocation2 + $0xc8] sm:$0xff]
          %v1953 = vld [vmem:[#allocation2 + $0xd0] sm:$0xff]
          %v1954 = vld [vmem:[#allocation2 + $0xd8] sm:$0xff]
          %v1955 = vld [vmem:[#allocation2 + $0xe0] sm:$0xff]
          %v1956 = vld [vmem:[#allocation2 + $0xe8] sm:$0xff]
          %v1957 = vld [vmem:[#allocation2 + $0xf0] sm:$0xff]
          %v1958 = vld [vmem:[#allocation2 + $0xf8] sm:$0xff]
          %v1959 = vld [vmem:[#allocation2 + $0x100] sm:$0xff]
          %v1960 = vld [vmem:[#allocation2 + $0x108] sm:$0xff]
          %v1961 = vld [vmem:[#allocation2 + $0x110] sm:$0xff]
          %v1962 = vld [vmem:[#allocation2 + $0x118] sm:$0xff]
          %v1963 = vld [vmem:[#allocation2 + $0x120] sm:$0xff]
          %v1964 = vld [vmem:[#allocation2 + $0x128] sm:$0xff]
          %v1965 = vld [vmem:[#allocation2 + $0x130] sm:$0xff]
          %v1966 = vld [vmem:[#allocation2 + $0x138] sm:$0xff]
          %v1967 = vld [vmem:[#allocation2 + $0x140] sm:$0xff]
          %v1968 = vld [vmem:[#allocation2 + $0x148] sm:$0xff]
          %v1969 = vld [vmem:[#allocation2 + $0x150] sm:$0xff]
          %v1970 = vld [vmem:[#allocation2 + $0x158] sm:$0xff]
          %v1971 = vld [vmem:[#allocation2 + $0x160] sm:$0xff]
          %v1972 = vld [vmem:[#allocation2 + $0x168] sm:$0xff]
          %v1973 = vld [vmem:[#allocation2 + $0x170] sm:$0xff]
          %v1974 = vld [vmem:[#allocation2 + $0x178] sm:$0xff]
          %v1975 = vld [vmem:[#allocation2 + $0x180] sm:$0xff]
          %v1976 = vld [vmem:[#allocation2 + $0x188] sm:$0xff]
          %v1977 = vld [vmem:[#allocation2 + $0x190] sm:$0xff]
          %v1978 = vld [vmem:[#allocation2 + $0x198] sm:$0xff]
          %v1979 = vld [vmem:[#allocation2 + $0x1a0] sm:$0xff]
          %v1980 = vld [vmem:[#allocation2 + $0x1a8] sm:$0xff]
          %v1981 = vld [vmem:[#allocation2 + $0x1b0] sm:$0xff]
          %v1982 = vld [vmem:[#allocation2 + $0x1b8] sm:$0xff]
          %v1983 = vld [vmem:[#allocation2 + $0x1c0] sm:$0xff]
          %v1984 = vld [vmem:[#allocation2 + $0x1c8] sm:$0xff]
          %v1985 = vld [vmem:[#allocation2 + $0x1d0] sm:$0xff]
          %v1986 = vld [vmem:[#allocation2 + $0x1d8] sm:$0xff]
          %v1987 = vld [vmem:[#allocation2 + $0x1e0] sm:$0xff]
          %v1988 = vld [vmem:[#allocation2 + $0x1e8] sm:$0xff]
          %v1989 = vld [vmem:[#allocation2 + $0x1f0] sm:$0xff]
          %v1990 = vld [vmem:[#allocation2 + $0x1f8] sm:$0xff]
          %v1991 = vld [vmem:[#allocation2 + $0x200] sm:$0xff]
          %v1992 = vld [vmem:[#allocation2 + $0x208] sm:$0xff]
          %v1993 = vld [vmem:[#allocation2 + $0x210] sm:$0xff]
          %v1994 = vld [vmem:[#allocation2 + $0x218] sm:$0xff]
          %v1995 = vld [vmem:[#allocation2 + $0x220] sm:$0xff]
          %v1996 = vld [vmem:[#allocation2 + $0x228] sm:$0xff]
          %v1997 = vld [vmem:[#allocation2 + $0x230] sm:$0xff]
          %v1998 = vld [vmem:[#allocation2 + $0x238] sm:$0xff]
          %v1999 = vld [vmem:[#allocation2 + $0x240] sm:$0xff]
          %v2000 = vld [vmem:[#allocation2 + $0x248] sm:$0xff]
          %v2001 = vld [vmem:[#allocation2 + $0x250] sm:$0xff]
          %v2002 = vld [vmem:[#allocation2 + $0x258] sm:$0xff]
          %v2003 = vld [vmem:[#allocation2 + $0x260] sm:$0xff]
          %v2004 = vld [vmem:[#allocation2 + $0x268] sm:$0xff]
          %v2005 = vld [vmem:[#allocation2 + $0x270] sm:$0xff]
          %v2006 = vld [vmem:[#allocation2 + $0x278] sm:$0xff]
          %v2007 = vld [vmem:[#allocation2 + $0x280] sm:$0xff]
          %v2008 = vld [vmem:[#allocation2 + $0x288] sm:$0xff]
          %v2009 = vld [vmem:[#allocation2 + $0x290] sm:$0xff]
          %v2010 = vld [vmem:[#allocation2 + $0x298] sm:$0xff]
          %v2011 = vld [vmem:[#allocation2 + $0x2a0] sm:$0xff]
          %v2012 = vld [vmem:[#allocation2 + $0x2a8] sm:$0xff]
          %v2013 = vld [vmem:[#allocation2 + $0x2b0] sm:$0xff]
          %v2014 = vld [vmem:[#allocation2 + $0x2b8] sm:$0xff]
          %v2015 = vld [vmem:[#allocation2 + $0x2c0] sm:$0xff]
          %v2016 = vld [vmem:[#allocation2 + $0x2c8] sm:$0xff]
          %v2017 = vld [vmem:[#allocation2 + $0x2d0] sm:$0xff]
          %v2018 = vld [vmem:[#allocation2 + $0x2d8] sm:$0xff]
          %v2019 = vld [vmem:[#allocation2 + $0x2e0] sm:$0xff]
          %v2020 = vld [vmem:[#allocation2 + $0x2e8] sm:$0xff]
          %v2021 = vld [vmem:[#allocation2 + $0x2f0] sm:$0xff]
          %v2022 = vld [vmem:[#allocation2 + $0x2f8] sm:$0xff]
          %v2023 = vld [vmem:[#allocation2 + $0x300] sm:$0xff]
          %v2024 = vld [vmem:[#allocation2 + $0x308] sm:$0xff]
          %v2025 = vld [vmem:[#allocation2 + $0x310] sm:$0xff]
          %v2026 = vld [vmem:[#allocation2 + $0x318] sm:$0xff]
          %v2027 = vld [vmem:[#allocation2 + $0x320] sm:$0xff]
          %v2028 = vld [vmem:[#allocation2 + $0x328] sm:$0xff]
          %v2029 = vld [vmem:[#allocation2 + $0x330] sm:$0xff]
          %v2030 = vld [vmem:[#allocation2 + $0x338] sm:$0xff]
          %v2031 = vld [vmem:[#allocation2 + $0x340] sm:$0xff]
          %v2032 = vld [vmem:[#allocation2 + $0x348] sm:$0xff]
          %v2033 = vld [vmem:[#allocation2 + $0x350] sm:$0xff]
          %v2034 = vld [vmem:[#allocation2 + $0x358] sm:$0xff]
          %v2035 = vld [vmem:[#allocation2 + $0x360] sm:$0xff]
          %v2036 = vld [vmem:[#allocation2 + $0x368] sm:$0xff]
          %v2037 = vld [vmem:[#allocation2 + $0x370] sm:$0xff]
          %v2038 = vld [vmem:[#allocation2 + $0x378] sm:$0xff]
          %v2039 = vld [vmem:[#allocation2 + $0x380] sm:$0xff]
          %v2040 = vld [vmem:[#allocation2 + $0x388] sm:$0xff]
          %v2041 = vld [vmem:[#allocation2 + $0x390] sm:$0xff]
          %v2042 = vld [vmem:[#allocation2 + $0x398] sm:$0xff]
          %v2043 = vld [vmem:[#allocation2 + $0x3a0] sm:$0xff]
          %v2044 = vld [vmem:[#allocation2 + $0x3a8] sm:$0xff]
          %v2045 = vld [vmem:[#allocation2 + $0x3b0] sm:$0xff]
          %v2046 = vld [vmem:[#allocation2 + $0x3b8] sm:$0xff]
          %v2047 = vld [vmem:[#allocation2 + $0x3c0] sm:$0xff]
          %v2048 = vld [vmem:[#allocation2 + $0x3c8] sm:$0xff]
          %v2049 = vld [vmem:[#allocation2 + $0x3d0] sm:$0xff]
          %v2050 = vld [vmem:[#allocation2 + $0x3d8] sm:$0xff]
          %v2051 = vld [vmem:[#allocation2 + $0x3e0] sm:$0xff]
          %v2052 = vld [vmem:[#allocation2 + $0x3e8] sm:$0xff]
          %v2053 = vld [vmem:[#allocation2 + $0x3f0] sm:$0xff]
          %v2054 = vld [vmem:[#allocation2 + $0x3f8] sm:$0xff]
          %v2055 = vld [vmem:[#allocation8] sm:$0x1]
          %v2057 = vlaneseq
          %v2058 = vshrl.u32 %v2057, 7
          %v2059 = vsub.s32 0, %v2058
          %v2060 = vrot.slane %v2055, %v2059
          %v2062 = vadd.f32 %v1927, %v2060
          %v2063 = vadd.f32 %v1928, %v2060
          %v2064 = vadd.f32 %v1929, %v2060
          %v2065 = vadd.f32 %v1930, %v2060
          %v2066 = vadd.f32 %v1931, %v2060
          %v2067 = vadd.f32 %v1932, %v2060
          %v2068 = vadd.f32 %v1933, %v2060
          %v2069 = vadd.f32 %v1934, %v2060
          %v2070 = vadd.f32 %v1935, %v2060
          %v2071 = vadd.f32 %v1936, %v2060
          %v2072 = vadd.f32 %v1937, %v2060
          %v2073 = vadd.f32 %v1938, %v2060
          %v2074 = vadd.f32 %v1939, %v2060
          %v2075 = vadd.f32 %v1940, %v2060
          %v2076 = vadd.f32 %v1941, %v2060
          %v2077 = vadd.f32 %v1942, %v2060
          %v2078 = vadd.f32 %v1943, %v2060
          %v2079 = vadd.f32 %v1944, %v2060
          %v2080 = vadd.f32 %v1945, %v2060
          %v2081 = vadd.f32 %v1946, %v2060
          %v2082 = vadd.f32 %v1947, %v2060
          %v2083 = vadd.f32 %v1948, %v2060
          %v2084 = vadd.f32 %v1949, %v2060
          %v2085 = vadd.f32 %v1950, %v2060
          %v2086 = vadd.f32 %v1951, %v2060
          %v2087 = vadd.f32 %v1952, %v2060
          %v2088 = vadd.f32 %v1953, %v2060
          %v2089 = vadd.f32 %v1954, %v2060
          %v2090 = vadd.f32 %v1955, %v2060
          %v2091 = vadd.f32 %v1956, %v2060
          %v2092 = vadd.f32 %v1957, %v2060
          %v2093 = vadd.f32 %v1958, %v2060
          %v2094 = vadd.f32 %v1959, %v2060
          %v2095 = vadd.f32 %v1960, %v2060
          %v2096 = vadd.f32 %v1961, %v2060
          %v2097 = vadd.f32 %v1962, %v2060
          %v2098 = vadd.f32 %v1963, %v2060
          %v2099 = vadd.f32 %v1964, %v2060
          %v2100 = vadd.f32 %v1965, %v2060
          %v2101 = vadd.f32 %v1966, %v2060
          %v2102 = vadd.f32 %v1967, %v2060
          %v2103 = vadd.f32 %v1968, %v2060
          %v2104 = vadd.f32 %v1969, %v2060
          %v2105 = vadd.f32 %v1970, %v2060
          %v2106 = vadd.f32 %v1971, %v2060
          %v2107 = vadd.f32 %v1972, %v2060
          %v2108 = vadd.f32 %v1973, %v2060
          %v2109 = vadd.f32 %v1974, %v2060
          %v2110 = vadd.f32 %v1975, %v2060
          %v2111 = vadd.f32 %v1976, %v2060
          %v2112 = vadd.f32 %v1977, %v2060
          %v2113 = vadd.f32 %v1978, %v2060
          %v2114 = vadd.f32 %v1979, %v2060
          %v2115 = vadd.f32 %v1980, %v2060
          %v2116 = vadd.f32 %v1981, %v2060
          %v2117 = vadd.f32 %v1982, %v2060
          %v2118 = vadd.f32 %v1983, %v2060
          %v2119 = vadd.f32 %v1984, %v2060
          %v2120 = vadd.f32 %v1985, %v2060
          %v2121 = vadd.f32 %v1986, %v2060
          %v2122 = vadd.f32 %v1987, %v2060
          %v2123 = vadd.f32 %v1988, %v2060
          %v2124 = vadd.f32 %v1989, %v2060
          %v2125 = vadd.f32 %v1990, %v2060
          %v2126 = vadd.f32 %v1991, %v2060
          %v2127 = vadd.f32 %v1992, %v2060
          %v2128 = vadd.f32 %v1993, %v2060
          %v2129 = vadd.f32 %v1994, %v2060
          %v2130 = vadd.f32 %v1995, %v2060
          %v2131 = vadd.f32 %v1996, %v2060
          %v2132 = vadd.f32 %v1997, %v2060
          %v2133 = vadd.f32 %v1998, %v2060
          %v2134 = vadd.f32 %v1999, %v2060
          %v2135 = vadd.f32 %v2000, %v2060
          %v2136 = vadd.f32 %v2001, %v2060
          %v2137 = vadd.f32 %v2002, %v2060
          %v2138 = vadd.f32 %v2003, %v2060
          %v2139 = vadd.f32 %v2004, %v2060
          %v2140 = vadd.f32 %v2005, %v2060
          %v2141 = vadd.f32 %v2006, %v2060
          %v2142 = vadd.f32 %v2007, %v2060
          %v2143 = vadd.f32 %v2008, %v2060
          %v2144 = vadd.f32 %v2009, %v2060
          %v2145 = vadd.f32 %v2010, %v2060
          %v2146 = vadd.f32 %v2011, %v2060
          %v2147 = vadd.f32 %v2012, %v2060
          %v2148 = vadd.f32 %v2013, %v2060
          %v2149 = vadd.f32 %v2014, %v2060
          %v2150 = vadd.f32 %v2015, %v2060
          %v2151 = vadd.f32 %v2016, %v2060
          %v2152 = vadd.f32 %v2017, %v2060
          %v2153 = vadd.f32 %v2018, %v2060
          %v2154 = vadd.f32 %v2019, %v2060
          %v2155 = vadd.f32 %v2020, %v2060
          %v2156 = vadd.f32 %v2021, %v2060
          %v2157 = vadd.f32 %v2022, %v2060
          %v2158 = vadd.f32 %v2023, %v2060
          %v2159 = vadd.f32 %v2024, %v2060
          %v2160 = vadd.f32 %v2025, %v2060
          %v2161 = vadd.f32 %v2026, %v2060
          %v2162 = vadd.f32 %v2027, %v2060
          %v2163 = vadd.f32 %v2028, %v2060
          %v2164 = vadd.f32 %v2029, %v2060
          %v2165 = vadd.f32 %v2030, %v2060
          %v2166 = vadd.f32 %v2031, %v2060
          %v2167 = vadd.f32 %v2032, %v2060
          %v2168 = vadd.f32 %v2033, %v2060
          %v2169 = vadd.f32 %v2034, %v2060
          %v2170 = vadd.f32 %v2035, %v2060
          %v2171 = vadd.f32 %v2036, %v2060
          %v2172 = vadd.f32 %v2037, %v2060
          %v2173 = vadd.f32 %v2038, %v2060
          %v2174 = vadd.f32 %v2039, %v2060
          %v2175 = vadd.f32 %v2040, %v2060
          %v2176 = vadd.f32 %v2041, %v2060
          %v2177 = vadd.f32 %v2042, %v2060
          %v2178 = vadd.f32 %v2043, %v2060
          %v2179 = vadd.f32 %v2044, %v2060
          %v2180 = vadd.f32 %v2045, %v2060
          %v2181 = vadd.f32 %v2046, %v2060
          %v2182 = vadd.f32 %v2047, %v2060
          %v2183 = vadd.f32 %v2048, %v2060
          %v2184 = vadd.f32 %v2049, %v2060
          %v2185 = vadd.f32 %v2050, %v2060
          %v2186 = vadd.f32 %v2051, %v2060
          %v2187 = vadd.f32 %v2052, %v2060
          %v2188 = vadd.f32 %v2053, %v2060
          %v2189 = vadd.f32 %v2054, %v2060
          %v2190 = vmax.f32 %v2062, 0.0
          %v2191 = vmax.f32 %v2063, 0.0
          %v2192 = vmax.f32 %v2064, 0.0
          %v2193 = vmax.f32 %v2065, 0.0
          %v2194 = vmax.f32 %v2066, 0.0
          %v2195 = vmax.f32 %v2067, 0.0
          %v2196 = vmax.f32 %v2068, 0.0
          %v2197 = vmax.f32 %v2069, 0.0
          %v2198 = vmax.f32 %v2070, 0.0
          %v2199 = vmax.f32 %v2071, 0.0
          %v2200 = vmax.f32 %v2072, 0.0
          %v2201 = vmax.f32 %v2073, 0.0
          %v2202 = vmax.f32 %v2074, 0.0
          %v2203 = vmax.f32 %v2075, 0.0
          %v2204 = vmax.f32 %v2076, 0.0
          %v2205 = vmax.f32 %v2077, 0.0
          %v2206 = vmax.f32 %v2078, 0.0
          %v2207 = vmax.f32 %v2079, 0.0
          %v2208 = vmax.f32 %v2080, 0.0
          %v2209 = vmax.f32 %v2081, 0.0
          %v2210 = vmax.f32 %v2082, 0.0
          %v2211 = vmax.f32 %v2083, 0.0
          %v2212 = vmax.f32 %v2084, 0.0
          %v2213 = vmax.f32 %v2085, 0.0
          %v2214 = vmax.f32 %v2086, 0.0
          %v2215 = vmax.f32 %v2087, 0.0
          %v2216 = vmax.f32 %v2088, 0.0
          %v2217 = vmax.f32 %v2089, 0.0
          %v2218 = vmax.f32 %v2090, 0.0
          %v2219 = vmax.f32 %v2091, 0.0
          %v2220 = vmax.f32 %v2092, 0.0
          %v2221 = vmax.f32 %v2093, 0.0
          %v2222 = vmax.f32 %v2094, 0.0
          %v2223 = vmax.f32 %v2095, 0.0
          %v2224 = vmax.f32 %v2096, 0.0
          %v2225 = vmax.f32 %v2097, 0.0
          %v2226 = vmax.f32 %v2098, 0.0
          %v2227 = vmax.f32 %v2099, 0.0
          %v2228 = vmax.f32 %v2100, 0.0
          %v2229 = vmax.f32 %v2101, 0.0
          %v2230 = vmax.f32 %v2102, 0.0
          %v2231 = vmax.f32 %v2103, 0.0
          %v2232 = vmax.f32 %v2104, 0.0
          %v2233 = vmax.f32 %v2105, 0.0
          %v2234 = vmax.f32 %v2106, 0.0
          %v2235 = vmax.f32 %v2107, 0.0
          %v2236 = vmax.f32 %v2108, 0.0
          %v2237 = vmax.f32 %v2109, 0.0
          %v2238 = vmax.f32 %v2110, 0.0
          %v2239 = vmax.f32 %v2111, 0.0
          %v2240 = vmax.f32 %v2112, 0.0
          %v2241 = vmax.f32 %v2113, 0.0
          %v2242 = vmax.f32 %v2114, 0.0
          %v2243 = vmax.f32 %v2115, 0.0
          %v2244 = vmax.f32 %v2116, 0.0
          %v2245 = vmax.f32 %v2117, 0.0
          %v2246 = vmax.f32 %v2118, 0.0
          %v2247 = vmax.f32 %v2119, 0.0
          %v2248 = vmax.f32 %v2120, 0.0
          %v2249 = vmax.f32 %v2121, 0.0
          %v2250 = vmax.f32 %v2122, 0.0
          %v2251 = vmax.f32 %v2123, 0.0
          %v2252 = vmax.f32 %v2124, 0.0
          %v2253 = vmax.f32 %v2125, 0.0
          %v2254 = vmax.f32 %v2126, 0.0
          %v2255 = vmax.f32 %v2127, 0.0
          %v2256 = vmax.f32 %v2128, 0.0
          %v2257 = vmax.f32 %v2129, 0.0
          %v2258 = vmax.f32 %v2130, 0.0
          %v2259 = vmax.f32 %v2131, 0.0
          %v2260 = vmax.f32 %v2132, 0.0
          %v2261 = vmax.f32 %v2133, 0.0
          %v2262 = vmax.f32 %v2134, 0.0
          %v2263 = vmax.f32 %v2135, 0.0
          %v2264 = vmax.f32 %v2136, 0.0
          %v2265 = vmax.f32 %v2137, 0.0
          %v2266 = vmax.f32 %v2138, 0.0
          %v2267 = vmax.f32 %v2139, 0.0
          %v2268 = vmax.f32 %v2140, 0.0
          %v2269 = vmax.f32 %v2141, 0.0
          %v2270 = vmax.f32 %v2142, 0.0
          %v2271 = vmax.f32 %v2143, 0.0
          %v2272 = vmax.f32 %v2144, 0.0
          %v2273 = vmax.f32 %v2145, 0.0
          %v2274 = vmax.f32 %v2146, 0.0
          %v2275 = vmax.f32 %v2147, 0.0
          %v2276 = vmax.f32 %v2148, 0.0
          %v2277 = vmax.f32 %v2149, 0.0
          %v2278 = vmax.f32 %v2150, 0.0
          %v2279 = vmax.f32 %v2151, 0.0
          %v2280 = vmax.f32 %v2152, 0.0
          %v2281 = vmax.f32 %v2153, 0.0
          %v2282 = vmax.f32 %v2154, 0.0
          %v2283 = vmax.f32 %v2155, 0.0
          %v2284 = vmax.f32 %v2156, 0.0
          %v2285 = vmax.f32 %v2157, 0.0
          %v2286 = vmax.f32 %v2158, 0.0
          %v2287 = vmax.f32 %v2159, 0.0
          %v2288 = vmax.f32 %v2160, 0.0
          %v2289 = vmax.f32 %v2161, 0.0
          %v2290 = vmax.f32 %v2162, 0.0
          %v2291 = vmax.f32 %v2163, 0.0
          %v2292 = vmax.f32 %v2164, 0.0
          %v2293 = vmax.f32 %v2165, 0.0
          %v2294 = vmax.f32 %v2166, 0.0
          %v2295 = vmax.f32 %v2167, 0.0
          %v2296 = vmax.f32 %v2168, 0.0
          %v2297 = vmax.f32 %v2169, 0.0
          %v2298 = vmax.f32 %v2170, 0.0
          %v2299 = vmax.f32 %v2171, 0.0
          %v2300 = vmax.f32 %v2172, 0.0
          %v2301 = vmax.f32 %v2173, 0.0
          %v2302 = vmax.f32 %v2174, 0.0
          %v2303 = vmax.f32 %v2175, 0.0
          %v2304 = vmax.f32 %v2176, 0.0
          %v2305 = vmax.f32 %v2177, 0.0
          %v2306 = vmax.f32 %v2178, 0.0
          %v2307 = vmax.f32 %v2179, 0.0
          %v2308 = vmax.f32 %v2180, 0.0
          %v2309 = vmax.f32 %v2181, 0.0
          %v2310 = vmax.f32 %v2182, 0.0
          %v2311 = vmax.f32 %v2183, 0.0
          %v2312 = vmax.f32 %v2184, 0.0
          %v2313 = vmax.f32 %v2185, 0.0
          %v2314 = vmax.f32 %v2186, 0.0
          %v2315 = vmax.f32 %v2187, 0.0
          %v2316 = vmax.f32 %v2188, 0.0
          %v2317 = vmax.f32 %v2189, 0.0
          %v2318 = vpack.c.bf16 %v2191, %v2190
          %v2319 = vpack.c.bf16 %v2193, %v2192
          %v2320 = vpack.c.bf16 %v2195, %v2194
          %v2321 = vpack.c.bf16 %v2197, %v2196
          %v2322 = vpack.c.bf16 %v2199, %v2198
          %v2323 = vpack.c.bf16 %v2201, %v2200
          %v2324 = vpack.c.bf16 %v2203, %v2202
          %v2325 = vpack.c.bf16 %v2205, %v2204
          %v2326 = vpack.c.bf16 %v2207, %v2206
          %v2327 = vpack.c.bf16 %v2209, %v2208
          %v2328 = vpack.c.bf16 %v2211, %v2210
          %v2329 = vpack.c.bf16 %v2213, %v2212
          %v2330 = vpack.c.bf16 %v2215, %v2214
          %v2331 = vpack.c.bf16 %v2217, %v2216
          %v2332 = vpack.c.bf16 %v2219, %v2218
          %v2333 = vpack.c.bf16 %v2221, %v2220
          %v2334 = vpack.c.bf16 %v2223, %v2222
          %v2335 = vpack.c.bf16 %v2225, %v2224
          %v2336 = vpack.c.bf16 %v2227, %v2226
          %v2337 = vpack.c.bf16 %v2229, %v2228
          %v2338 = vpack.c.bf16 %v2231, %v2230
          %v2339 = vpack.c.bf16 %v2233, %v2232
          %v2340 = vpack.c.bf16 %v2235, %v2234
          %v2341 = vpack.c.bf16 %v2237, %v2236
          %v2342 = vpack.c.bf16 %v2239, %v2238
          %v2343 = vpack.c.bf16 %v2241, %v2240
          %v2344 = vpack.c.bf16 %v2243, %v2242
          %v2345 = vpack.c.bf16 %v2245, %v2244
          %v2346 = vpack.c.bf16 %v2247, %v2246
          %v2347 = vpack.c.bf16 %v2249, %v2248
          %v2348 = vpack.c.bf16 %v2251, %v2250
          %v2349 = vpack.c.bf16 %v2253, %v2252
          %v2350 = vpack.c.bf16 %v2255, %v2254
          %v2351 = vpack.c.bf16 %v2257, %v2256
          %v2352 = vpack.c.bf16 %v2259, %v2258
          %v2353 = vpack.c.bf16 %v2261, %v2260
          %v2354 = vpack.c.bf16 %v2263, %v2262
          %v2355 = vpack.c.bf16 %v2265, %v2264
          %v2356 = vpack.c.bf16 %v2267, %v2266
          %v2357 = vpack.c.bf16 %v2269, %v2268
          %v2358 = vpack.c.bf16 %v2271, %v2270
          %v2359 = vpack.c.bf16 %v2273, %v2272
          %v2360 = vpack.c.bf16 %v2275, %v2274
          %v2361 = vpack.c.bf16 %v2277, %v2276
          %v2362 = vpack.c.bf16 %v2279, %v2278
          %v2363 = vpack.c.bf16 %v2281, %v2280
          %v2364 = vpack.c.bf16 %v2283, %v2282
          %v2365 = vpack.c.bf16 %v2285, %v2284
          %v2366 = vpack.c.bf16 %v2287, %v2286
          %v2367 = vpack.c.bf16 %v2289, %v2288
          %v2368 = vpack.c.bf16 %v2291, %v2290
          %v2369 = vpack.c.bf16 %v2293, %v2292
          %v2370 = vpack.c.bf16 %v2295, %v2294
          %v2371 = vpack.c.bf16 %v2297, %v2296
          %v2372 = vpack.c.bf16 %v2299, %v2298
          %v2373 = vpack.c.bf16 %v2301, %v2300
          %v2374 = vpack.c.bf16 %v2303, %v2302
          %v2375 = vpack.c.bf16 %v2305, %v2304
          %v2376 = vpack.c.bf16 %v2307, %v2306
          %v2377 = vpack.c.bf16 %v2309, %v2308
          %v2378 = vpack.c.bf16 %v2311, %v2310
          %v2379 = vpack.c.bf16 %v2313, %v2312
          %v2380 = vpack.c.bf16 %v2315, %v2314
          %v2381 = vpack.c.bf16 %v2317, %v2316
          %v2446 = vunpack.c.l.b16 %v2318
          %v2447 = vunpack.c.h.b16 %v2318
          %v2448 = vunpack.c.l.b16 %v2319
          %v2449 = vunpack.c.h.b16 %v2319
          %v2450 = vunpack.c.l.b16 %v2320
          %v2451 = vunpack.c.h.b16 %v2320
          %v2452 = vunpack.c.l.b16 %v2321
          %v2453 = vunpack.c.h.b16 %v2321
          %v2454 = vunpack.c.l.b16 %v2322
          %v2455 = vunpack.c.h.b16 %v2322
          %v2456 = vunpack.c.l.b16 %v2323
          %v2457 = vunpack.c.h.b16 %v2323
          %v2458 = vunpack.c.l.b16 %v2324
          %v2459 = vunpack.c.h.b16 %v2324
          %v2460 = vunpack.c.l.b16 %v2325
          %v2461 = vunpack.c.h.b16 %v2325
          %v2462 = vunpack.c.l.b16 %v2326
          %v2463 = vunpack.c.h.b16 %v2326
          %v2464 = vunpack.c.l.b16 %v2327
          %v2465 = vunpack.c.h.b16 %v2327
          %v2466 = vunpack.c.l.b16 %v2328
          %v2467 = vunpack.c.h.b16 %v2328
          %v2468 = vunpack.c.l.b16 %v2329
          %v2469 = vunpack.c.h.b16 %v2329
          %v2470 = vunpack.c.l.b16 %v2330
          %v2471 = vunpack.c.h.b16 %v2330
          %v2472 = vunpack.c.l.b16 %v2331
          %v2473 = vunpack.c.h.b16 %v2331
          %v2474 = vunpack.c.l.b16 %v2332
          %v2475 = vunpack.c.h.b16 %v2332
          %v2476 = vunpack.c.l.b16 %v2333
          %v2477 = vunpack.c.h.b16 %v2333
          %v2478 = vunpack.c.l.b16 %v2334
          %v2479 = vunpack.c.h.b16 %v2334
          %v2480 = vunpack.c.l.b16 %v2335
          %v2481 = vunpack.c.h.b16 %v2335
          %v2482 = vunpack.c.l.b16 %v2336
          %v2483 = vunpack.c.h.b16 %v2336
          %v2484 = vunpack.c.l.b16 %v2337
          %v2485 = vunpack.c.h.b16 %v2337
          %v2486 = vunpack.c.l.b16 %v2338
          %v2487 = vunpack.c.h.b16 %v2338
          %v2488 = vunpack.c.l.b16 %v2339
          %v2489 = vunpack.c.h.b16 %v2339
          %v2490 = vunpack.c.l.b16 %v2340
          %v2491 = vunpack.c.h.b16 %v2340
          %v2492 = vunpack.c.l.b16 %v2341
          %v2493 = vunpack.c.h.b16 %v2341
          %v2494 = vunpack.c.l.b16 %v2342
          %v2495 = vunpack.c.h.b16 %v2342
          %v2496 = vunpack.c.l.b16 %v2343
          %v2497 = vunpack.c.h.b16 %v2343
          %v2498 = vunpack.c.l.b16 %v2344
          %v2499 = vunpack.c.h.b16 %v2344
          %v2500 = vunpack.c.l.b16 %v2345
          %v2501 = vunpack.c.h.b16 %v2345
          %v2502 = vunpack.c.l.b16 %v2346
          %v2503 = vunpack.c.h.b16 %v2346
          %v2504 = vunpack.c.l.b16 %v2347
          %v2505 = vunpack.c.h.b16 %v2347
          %v2506 = vunpack.c.l.b16 %v2348
          %v2507 = vunpack.c.h.b16 %v2348
          %v2508 = vunpack.c.l.b16 %v2349
          %v2509 = vunpack.c.h.b16 %v2349
          %v2510 = vunpack.c.l.b16 %v2350
          %v2511 = vunpack.c.h.b16 %v2350
          %v2512 = vunpack.c.l.b16 %v2351
          %v2513 = vunpack.c.h.b16 %v2351
          %v2514 = vunpack.c.l.b16 %v2352
          %v2515 = vunpack.c.h.b16 %v2352
          %v2516 = vunpack.c.l.b16 %v2353
          %v2517 = vunpack.c.h.b16 %v2353
          %v2518 = vunpack.c.l.b16 %v2354
          %v2519 = vunpack.c.h.b16 %v2354
          %v2520 = vunpack.c.l.b16 %v2355
          %v2521 = vunpack.c.h.b16 %v2355
          %v2522 = vunpack.c.l.b16 %v2356
          %v2523 = vunpack.c.h.b16 %v2356
          %v2524 = vunpack.c.l.b16 %v2357
          %v2525 = vunpack.c.h.b16 %v2357
          %v2526 = vunpack.c.l.b16 %v2358
          %v2527 = vunpack.c.h.b16 %v2358
          %v2528 = vunpack.c.l.b16 %v2359
          %v2529 = vunpack.c.h.b16 %v2359
          %v2530 = vunpack.c.l.b16 %v2360
          %v2531 = vunpack.c.h.b16 %v2360
          %v2532 = vunpack.c.l.b16 %v2361
          %v2533 = vunpack.c.h.b16 %v2361
          %v2534 = vunpack.c.l.b16 %v2362
          %v2535 = vunpack.c.h.b16 %v2362
          %v2536 = vunpack.c.l.b16 %v2363
          %v2537 = vunpack.c.h.b16 %v2363
          %v2538 = vunpack.c.l.b16 %v2364
          %v2539 = vunpack.c.h.b16 %v2364
          %v2540 = vunpack.c.l.b16 %v2365
          %v2541 = vunpack.c.h.b16 %v2365
          %v2542 = vunpack.c.l.b16 %v2366
          %v2543 = vunpack.c.h.b16 %v2366
          %v2544 = vunpack.c.l.b16 %v2367
          %v2545 = vunpack.c.h.b16 %v2367
          %v2546 = vunpack.c.l.b16 %v2368
          %v2547 = vunpack.c.h.b16 %v2368
          %v2548 = vunpack.c.l.b16 %v2369
          %v2549 = vunpack.c.h.b16 %v2369
          %v2550 = vunpack.c.l.b16 %v2370
          %v2551 = vunpack.c.h.b16 %v2370
          %v2552 = vunpack.c.l.b16 %v2371
          %v2553 = vunpack.c.h.b16 %v2371
          %v2554 = vunpack.c.l.b16 %v2372
          %v2555 = vunpack.c.h.b16 %v2372
          %v2556 = vunpack.c.l.b16 %v2373
          %v2557 = vunpack.c.h.b16 %v2373
          %v2558 = vunpack.c.l.b16 %v2374
          %v2559 = vunpack.c.h.b16 %v2374
          %v2560 = vunpack.c.l.b16 %v2375
          %v2561 = vunpack.c.h.b16 %v2375
          %v2562 = vunpack.c.l.b16 %v2376
          %v2563 = vunpack.c.h.b16 %v2376
          %v2564 = vunpack.c.l.b16 %v2377
          %v2565 = vunpack.c.h.b16 %v2377
          %v2566 = vunpack.c.l.b16 %v2378
          %v2567 = vunpack.c.h.b16 %v2378
          %v2568 = vunpack.c.l.b16 %v2379
          %v2569 = vunpack.c.h.b16 %v2379
          %v2570 = vunpack.c.l.b16 %v2380
          %v2571 = vunpack.c.h.b16 %v2380
          %v2572 = vunpack.c.l.b16 %v2381
          %v2573 = vunpack.c.h.b16 %v2381
          %v2574 = vpack.c.b16 %v2446, %v2446
          %v2575 = vpack.c.b16 %v2447, %v2447
          %v2576 = vpack.c.b16 %v2448, %v2448
          %v2577 = vpack.c.b16 %v2449, %v2449
          %v2578 = vpack.c.b16 %v2450, %v2450
          %v2579 = vpack.c.b16 %v2451, %v2451
          %v2580 = vpack.c.b16 %v2452, %v2452
          %v2581 = vpack.c.b16 %v2453, %v2453
          %v2582 = vpack.c.b16 %v2454, %v2454
          %v2583 = vpack.c.b16 %v2455, %v2455
          %v2584 = vpack.c.b16 %v2456, %v2456
          %v2585 = vpack.c.b16 %v2457, %v2457
          %v2586 = vpack.c.b16 %v2458, %v2458
          %v2587 = vpack.c.b16 %v2459, %v2459
          %v2588 = vpack.c.b16 %v2460, %v2460
          %v2589 = vpack.c.b16 %v2461, %v2461
          %v2590 = vpack.c.b16 %v2462, %v2462
          %v2591 = vpack.c.b16 %v2463, %v2463
          %v2592 = vpack.c.b16 %v2464, %v2464
          %v2593 = vpack.c.b16 %v2465, %v2465
          %v2594 = vpack.c.b16 %v2466, %v2466
          %v2595 = vpack.c.b16 %v2467, %v2467
          %v2596 = vpack.c.b16 %v2468, %v2468
          %v2597 = vpack.c.b16 %v2469, %v2469
          %v2598 = vpack.c.b16 %v2470, %v2470
          %v2599 = vpack.c.b16 %v2471, %v2471
          %v2600 = vpack.c.b16 %v2472, %v2472
          %v2601 = vpack.c.b16 %v2473, %v2473
          %v2602 = vpack.c.b16 %v2474, %v2474
          %v2603 = vpack.c.b16 %v2475, %v2475
          %v2604 = vpack.c.b16 %v2476, %v2476
          %v2605 = vpack.c.b16 %v2477, %v2477
          %v2606 = vpack.c.b16 %v2478, %v2478
          %v2607 = vpack.c.b16 %v2479, %v2479
          %v2608 = vpack.c.b16 %v2480, %v2480
          %v2609 = vpack.c.b16 %v2481, %v2481
          %v2610 = vpack.c.b16 %v2482, %v2482
          %v2611 = vpack.c.b16 %v2483, %v2483
          %v2612 = vpack.c.b16 %v2484, %v2484
          %v2613 = vpack.c.b16 %v2485, %v2485
          %v2614 = vpack.c.b16 %v2486, %v2486
          %v2615 = vpack.c.b16 %v2487, %v2487
          %v2616 = vpack.c.b16 %v2488, %v2488
          %v2617 = vpack.c.b16 %v2489, %v2489
          %v2618 = vpack.c.b16 %v2490, %v2490
          %v2619 = vpack.c.b16 %v2491, %v2491
          %v2620 = vpack.c.b16 %v2492, %v2492
          %v2621 = vpack.c.b16 %v2493, %v2493
          %v2622 = vpack.c.b16 %v2494, %v2494
          %v2623 = vpack.c.b16 %v2495, %v2495
          %v2624 = vpack.c.b16 %v2496, %v2496
          %v2625 = vpack.c.b16 %v2497, %v2497
          %v2626 = vpack.c.b16 %v2498, %v2498
          %v2627 = vpack.c.b16 %v2499, %v2499
          %v2628 = vpack.c.b16 %v2500, %v2500
          %v2629 = vpack.c.b16 %v2501, %v2501
          %v2630 = vpack.c.b16 %v2502, %v2502
          %v2631 = vpack.c.b16 %v2503, %v2503
          %v2632 = vpack.c.b16 %v2504, %v2504
          %v2633 = vpack.c.b16 %v2505, %v2505
          %v2634 = vpack.c.b16 %v2506, %v2506
          %v2635 = vpack.c.b16 %v2507, %v2507
          %v2636 = vpack.c.b16 %v2508, %v2508
          %v2637 = vpack.c.b16 %v2509, %v2509
          %v2638 = vpack.c.b16 %v2510, %v2510
          %v2639 = vpack.c.b16 %v2511, %v2511
          %v2640 = vpack.c.b16 %v2512, %v2512
          %v2641 = vpack.c.b16 %v2513, %v2513
          %v2642 = vpack.c.b16 %v2514, %v2514
          %v2643 = vpack.c.b16 %v2515, %v2515
          %v2644 = vpack.c.b16 %v2516, %v2516
          %v2645 = vpack.c.b16 %v2517, %v2517
          %v2646 = vpack.c.b16 %v2518, %v2518
          %v2647 = vpack.c.b16 %v2519, %v2519
          %v2648 = vpack.c.b16 %v2520, %v2520
          %v2649 = vpack.c.b16 %v2521, %v2521
          %v2650 = vpack.c.b16 %v2522, %v2522
          %v2651 = vpack.c.b16 %v2523, %v2523
          %v2652 = vpack.c.b16 %v2524, %v2524
          %v2653 = vpack.c.b16 %v2525, %v2525
          %v2654 = vpack.c.b16 %v2526, %v2526
          %v2655 = vpack.c.b16 %v2527, %v2527
          %v2656 = vpack.c.b16 %v2528, %v2528
          %v2657 = vpack.c.b16 %v2529, %v2529
          %v2658 = vpack.c.b16 %v2530, %v2530
          %v2659 = vpack.c.b16 %v2531, %v2531
          %v2660 = vpack.c.b16 %v2532, %v2532
          %v2661 = vpack.c.b16 %v2533, %v2533
          %v2662 = vpack.c.b16 %v2534, %v2534
          %v2663 = vpack.c.b16 %v2535, %v2535
          %v2664 = vpack.c.b16 %v2536, %v2536
          %v2665 = vpack.c.b16 %v2537, %v2537
          %v2666 = vpack.c.b16 %v2538, %v2538
          %v2667 = vpack.c.b16 %v2539, %v2539
          %v2668 = vpack.c.b16 %v2540, %v2540
          %v2669 = vpack.c.b16 %v2541, %v2541
          %v2670 = vpack.c.b16 %v2542, %v2542
          %v2671 = vpack.c.b16 %v2543, %v2543
          %v2672 = vpack.c.b16 %v2544, %v2544
          %v2673 = vpack.c.b16 %v2545, %v2545
          %v2674 = vpack.c.b16 %v2546, %v2546
          %v2675 = vpack.c.b16 %v2547, %v2547
          %v2676 = vpack.c.b16 %v2548, %v2548
          %v2677 = vpack.c.b16 %v2549, %v2549
          %v2678 = vpack.c.b16 %v2550, %v2550
          %v2679 = vpack.c.b16 %v2551, %v2551
          %v2680 = vpack.c.b16 %v2552, %v2552
          %v2681 = vpack.c.b16 %v2553, %v2553
          %v2682 = vpack.c.b16 %v2554, %v2554
          %v2683 = vpack.c.b16 %v2555, %v2555
          %v2684 = vpack.c.b16 %v2556, %v2556
          %v2685 = vpack.c.b16 %v2557, %v2557
          %v2686 = vpack.c.b16 %v2558, %v2558
          %v2687 = vpack.c.b16 %v2559, %v2559
          %v2688 = vpack.c.b16 %v2560, %v2560
          %v2689 = vpack.c.b16 %v2561, %v2561
          %v2690 = vpack.c.b16 %v2562, %v2562
          %v2691 = vpack.c.b16 %v2563, %v2563
          %v2692 = vpack.c.b16 %v2564, %v2564
          %v2693 = vpack.c.b16 %v2565, %v2565
          %v2694 = vpack.c.b16 %v2566, %v2566
          %v2695 = vpack.c.b16 %v2567, %v2567
          %v2696 = vpack.c.b16 %v2568, %v2568
          %v2697 = vpack.c.b16 %v2569, %v2569
          %v2698 = vpack.c.b16 %v2570, %v2570
          %v2699 = vpack.c.b16 %v2571, %v2571
          %v2700 = vpack.c.b16 %v2572, %v2572
          %v2701 = vpack.c.b16 %v2573, %v2573
          %2830 = vst [vmem:[#allocation9] sm:$0xf] %v2574
          %2831 = vst [vmem:[#allocation9 + $0x4] sm:$0xf] %v2575
          %2832 = vst [vmem:[#allocation9 + $0x8] sm:$0xf] %v2576
          %2833 = vst [vmem:[#allocation9 + $0xc] sm:$0xf] %v2577
          %2834 = vst [vmem:[#allocation9 + $0x10] sm:$0xf] %v2578
          %2835 = vst [vmem:[#allocation9 + $0x14] sm:$0xf] %v2579
          %2836 = vst [vmem:[#allocation9 + $0x18] sm:$0xf] %v2580
          %2837 = vst [vmem:[#allocation9 + $0x1c] sm:$0xf] %v2581
          %2838 = vst [vmem:[#allocation9 + $0x20] sm:$0xf] %v2582
          %2839 = vst [vmem:[#allocation9 + $0x24] sm:$0xf] %v2583
          %2840 = vst [vmem:[#allocation9 + $0x28] sm:$0xf] %v2584
          %2841 = vst [vmem:[#allocation9 + $0x2c] sm:$0xf] %v2585
          %2842 = vst [vmem:[#allocation9 + $0x30] sm:$0xf] %v2586
          %2843 = vst [vmem:[#allocation9 + $0x34] sm:$0xf] %v2587
          %2844 = vst [vmem:[#allocation9 + $0x38] sm:$0xf] %v2588
          %2845 = vst [vmem:[#allocation9 + $0x3c] sm:$0xf] %v2589
          %2846 = vst [vmem:[#allocation9 + $0x40] sm:$0xf] %v2590
          %2847 = vst [vmem:[#allocation9 + $0x44] sm:$0xf] %v2591
          %2848 = vst [vmem:[#allocation9 + $0x48] sm:$0xf] %v2592
          %2849 = vst [vmem:[#allocation9 + $0x4c] sm:$0xf] %v2593
          %2850 = vst [vmem:[#allocation9 + $0x50] sm:$0xf] %v2594
          %2851 = vst [vmem:[#allocation9 + $0x54] sm:$0xf] %v2595
          %2852 = vst [vmem:[#allocation9 + $0x58] sm:$0xf] %v2596
          %2853 = vst [vmem:[#allocation9 + $0x5c] sm:$0xf] %v2597
          %2854 = vst [vmem:[#allocation9 + $0x60] sm:$0xf] %v2598
          %2855 = vst [vmem:[#allocation9 + $0x64] sm:$0xf] %v2599
          %2856 = vst [vmem:[#allocation9 + $0x68] sm:$0xf] %v2600
          %2857 = vst [vmem:[#allocation9 + $0x6c] sm:$0xf] %v2601
          %2858 = vst [vmem:[#allocation9 + $0x70] sm:$0xf] %v2602
          %2859 = vst [vmem:[#allocation9 + $0x74] sm:$0xf] %v2603
          %2860 = vst [vmem:[#allocation9 + $0x78] sm:$0xf] %v2604
          %2861 = vst [vmem:[#allocation9 + $0x7c] sm:$0xf] %v2605
          %2862 = vst [vmem:[#allocation9 + $0x80] sm:$0xf] %v2606
          %2863 = vst [vmem:[#allocation9 + $0x84] sm:$0xf] %v2607
          %2864 = vst [vmem:[#allocation9 + $0x88] sm:$0xf] %v2608
          %2865 = vst [vmem:[#allocation9 + $0x8c] sm:$0xf] %v2609
          %2866 = vst [vmem:[#allocation9 + $0x90] sm:$0xf] %v2610
          %2867 = vst [vmem:[#allocation9 + $0x94] sm:$0xf] %v2611
          %2868 = vst [vmem:[#allocation9 + $0x98] sm:$0xf] %v2612
          %2869 = vst [vmem:[#allocation9 + $0x9c] sm:$0xf] %v2613
          %2870 = vst [vmem:[#allocation9 + $0xa0] sm:$0xf] %v2614
          %2871 = vst [vmem:[#allocation9 + $0xa4] sm:$0xf] %v2615
          %2872 = vst [vmem:[#allocation9 + $0xa8] sm:$0xf] %v2616
          %2873 = vst [vmem:[#allocation9 + $0xac] sm:$0xf] %v2617
          %2874 = vst [vmem:[#allocation9 + $0xb0] sm:$0xf] %v2618
          %2875 = vst [vmem:[#allocation9 + $0xb4] sm:$0xf] %v2619
          %2876 = vst [vmem:[#allocation9 + $0xb8] sm:$0xf] %v2620
          %2877 = vst [vmem:[#allocation9 + $0xbc] sm:$0xf] %v2621
          %2878 = vst [vmem:[#allocation9 + $0xc0] sm:$0xf] %v2622
          %2879 = vst [vmem:[#allocation9 + $0xc4] sm:$0xf] %v2623
          %2880 = vst [vmem:[#allocation9 + $0xc8] sm:$0xf] %v2624
          %2881 = vst [vmem:[#allocation9 + $0xcc] sm:$0xf] %v2625
          %2882 = vst [vmem:[#allocation9 + $0xd0] sm:$0xf] %v2626
          %2883 = vst [vmem:[#allocation9 + $0xd4] sm:$0xf] %v2627
          %2884 = vst [vmem:[#allocation9 + $0xd8] sm:$0xf] %v2628
          %2885 = vst [vmem:[#allocation9 + $0xdc] sm:$0xf] %v2629
          %2886 = vst [vmem:[#allocation9 + $0xe0] sm:$0xf] %v2630
          %2887 = vst [vmem:[#allocation9 + $0xe4] sm:$0xf] %v2631
          %2888 = vst [vmem:[#allocation9 + $0xe8] sm:$0xf] %v2632
          %2889 = vst [vmem:[#allocation9 + $0xec] sm:$0xf] %v2633
          %2890 = vst [vmem:[#allocation9 + $0xf0] sm:$0xf] %v2634
          %2891 = vst [vmem:[#allocation9 + $0xf4] sm:$0xf] %v2635
          %2892 = vst [vmem:[#allocation9 + $0xf8] sm:$0xf] %v2636
          %2893 = vst [vmem:[#allocation9 + $0xfc] sm:$0xf] %v2637
          %2894 = vst [vmem:[#allocation9 + $0x100] sm:$0xf] %v2638
          %2895 = vst [vmem:[#allocation9 + $0x104] sm:$0xf] %v2639
          %2896 = vst [vmem:[#allocation9 + $0x108] sm:$0xf] %v2640
          %2897 = vst [vmem:[#allocation9 + $0x10c] sm:$0xf] %v2641
          %2898 = vst [vmem:[#allocation9 + $0x110] sm:$0xf] %v2642
          %2899 = vst [vmem:[#allocation9 + $0x114] sm:$0xf] %v2643
          %2900 = vst [vmem:[#allocation9 + $0x118] sm:$0xf] %v2644
          %2901 = vst [vmem:[#allocation9 + $0x11c] sm:$0xf] %v2645
          %2902 = vst [vmem:[#allocation9 + $0x120] sm:$0xf] %v2646
          %2903 = vst [vmem:[#allocation9 + $0x124] sm:$0xf] %v2647
          %2904 = vst [vmem:[#allocation9 + $0x128] sm:$0xf] %v2648
          %2905 = vst [vmem:[#allocation9 + $0x12c] sm:$0xf] %v2649
          %2906 = vst [vmem:[#allocation9 + $0x130] sm:$0xf] %v2650
          %2907 = vst [vmem:[#allocation9 + $0x134] sm:$0xf] %v2651
          %2908 = vst [vmem:[#allocation9 + $0x138] sm:$0xf] %v2652
          %2909 = vst [vmem:[#allocation9 + $0x13c] sm:$0xf] %v2653
          %2910 = vst [vmem:[#allocation9 + $0x140] sm:$0xf] %v2654
          %2911 = vst [vmem:[#allocation9 + $0x144] sm:$0xf] %v2655
          %2912 = vst [vmem:[#allocation9 + $0x148] sm:$0xf] %v2656
          %2913 = vst [vmem:[#allocation9 + $0x14c] sm:$0xf] %v2657
          %2914 = vst [vmem:[#allocation9 + $0x150] sm:$0xf] %v2658
          %2915 = vst [vmem:[#allocation9 + $0x154] sm:$0xf] %v2659
          %2916 = vst [vmem:[#allocation9 + $0x158] sm:$0xf] %v2660
          %2917 = vst [vmem:[#allocation9 + $0x15c] sm:$0xf] %v2661
          %2918 = vst [vmem:[#allocation9 + $0x160] sm:$0xf] %v2662
          %2919 = vst [vmem:[#allocation9 + $0x164] sm:$0xf] %v2663
          %2920 = vst [vmem:[#allocation9 + $0x168] sm:$0xf] %v2664
          %2921 = vst [vmem:[#allocation9 + $0x16c] sm:$0xf] %v2665
          %2922 = vst [vmem:[#allocation9 + $0x170] sm:$0xf] %v2666
          %2923 = vst [vmem:[#allocation9 + $0x174] sm:$0xf] %v2667
          %2924 = vst [vmem:[#allocation9 + $0x178] sm:$0xf] %v2668
          %2925 = vst [vmem:[#allocation9 + $0x17c] sm:$0xf] %v2669
          %2926 = vst [vmem:[#allocation9 + $0x180] sm:$0xf] %v2670
          %2927 = vst [vmem:[#allocation9 + $0x184] sm:$0xf] %v2671
          %2928 = vst [vmem:[#allocation9 + $0x188] sm:$0xf] %v2672
          %2929 = vst [vmem:[#allocation9 + $0x18c] sm:$0xf] %v2673
          %2930 = vst [vmem:[#allocation9 + $0x190] sm:$0xf] %v2674
          %2931 = vst [vmem:[#allocation9 + $0x194] sm:$0xf] %v2675
          %2932 = vst [vmem:[#allocation9 + $0x198] sm:$0xf] %v2676
          %2933 = vst [vmem:[#allocation9 + $0x19c] sm:$0xf] %v2677
          %2934 = vst [vmem:[#allocation9 + $0x1a0] sm:$0xf] %v2678
          %2935 = vst [vmem:[#allocation9 + $0x1a4] sm:$0xf] %v2679
          %2936 = vst [vmem:[#allocation9 + $0x1a8] sm:$0xf] %v2680
          %2937 = vst [vmem:[#allocation9 + $0x1ac] sm:$0xf] %v2681
          %2938 = vst [vmem:[#allocation9 + $0x1b0] sm:$0xf] %v2682
          %2939 = vst [vmem:[#allocation9 + $0x1b4] sm:$0xf] %v2683
          %2940 = vst [vmem:[#allocation9 + $0x1b8] sm:$0xf] %v2684
          %2941 = vst [vmem:[#allocation9 + $0x1bc] sm:$0xf] %v2685
          %2942 = vst [vmem:[#allocation9 + $0x1c0] sm:$0xf] %v2686
          %2943 = vst [vmem:[#allocation9 + $0x1c4] sm:$0xf] %v2687
          %2944 = vst [vmem:[#allocation9 + $0x1c8] sm:$0xf] %v2688
          %2945 = vst [vmem:[#allocation9 + $0x1cc] sm:$0xf] %v2689
          %2946 = vst [vmem:[#allocation9 + $0x1d0] sm:$0xf] %v2690
          %2947 = vst [vmem:[#allocation9 + $0x1d4] sm:$0xf] %v2691
          %2948 = vst [vmem:[#allocation9 + $0x1d8] sm:$0xf] %v2692
          %2949 = vst [vmem:[#allocation9 + $0x1dc] sm:$0xf] %v2693
          %2950 = vst [vmem:[#allocation9 + $0x1e0] sm:$0xf] %v2694
          %2951 = vst [vmem:[#allocation9 + $0x1e4] sm:$0xf] %v2695
          %2952 = vst [vmem:[#allocation9 + $0x1e8] sm:$0xf] %v2696
          %2953 = vst [vmem:[#allocation9 + $0x1ec] sm:$0xf] %v2697
          %2954 = vst [vmem:[#allocation9 + $0x1f0] sm:$0xf] %v2698
          %2955 = vst [vmem:[#allocation9 + $0x1f4] sm:$0xf] %v2699
          %2956 = vst [vmem:[#allocation9 + $0x1f8] sm:$0xf] %v2700
          %2957 = vst [vmem:[#allocation9 + $0x1fc] sm:$0xf] %v2701
        $region52: #{stem_forward.1} parent=31 // pred_fallthru
          _
        // Predicated region
        $region53: #{stem_forward.1} parent=31 // pred_check
          %p2958 = pneg %p153
        $region54: #{stem_forward.1} parent=31 // pred_check_branch
          %2960 = sbr.rel (%p2958) target = $region56
        $region55: #{stem_forward.1} parent=31 // pred_region
          %s2961 = smul.u32 128, %s28
          %s2963 = ssub.s32 8192, 8192
          %2964 = vsyncadd [#allocation5], %s2963
          %s2965 = sadd.s32 %s29, %s2961
          %s2966 = smul.addr %s27, 128
          %s2967 = sadd.s32 %s2965, %s2966
          %s2968 = smul.addr %s2967, 64
          %s2969 = scalar_lea.hbm %s3, %s2968
          %s2970 = sshll.u32 [#allocation9], 4
          %s2971 = int_to_ptr.vmem [resolvable:$true] %s2970
          %2976 = dma.vmem_to_hbm [thread:$0]  %s2971, 8192, %s2969, [#allocation5], 64, 64, 4
        $region56: #{stem_forward.1} parent=31 // pred_fallthru
          _
        // Predicated region
        $region57: #{stem_forward.1} parent=31 // pred_check
          %p2977 = pneg %p153
        $region58: #{stem_forward.1} parent=31 // pred_check_branch
          %2979 = sbr.rel (%p2977) target = $region60
        $region59: #{stem_forward.1} parent=31 // pred_region
          %2980 = dma.done [#allocation5], 8192
        $region60: #{stem_forward.1} parent=31 // pred_fallthru
          _
      $region32: #{stem_forward.1} parent=5 // pred_fallthru
        _
      %p2981 = scmp.le.s32.totalorder 2, %s16
      // Predicated region
      $region61: #{stem_forward.1} parent=5 // pred_check
        %p2982 = pneg %p2981
      $region62: #{stem_forward.1} parent=5 // pred_check_branch
        %2984 = sbr.rel (%p2982) target = $region64
      $region63: #{stem_forward.1} parent=5 // pred_region
        %s2985 = ssub.s32 %s16, 2
      $region64: #{stem_forward.1} parent=5 // pred_fallthru
        _
    $region6: #{stem_forward.1} parent=1 // loop_footer
      %s20 = sadd.s32 1, %s16
    $region7: #{stem_forward.1} parent=1 // loop_footer_branch
      %15 = sbr.rel target = $region3
    $region8: #{stem_forward.1} parent=1 // loop_exit
      _
    %2986 = vsyncpa [#allocation4], 1
    %s2987 = scalar_lea.sflag [#allocation4], 1
    %2988 = vsyncpa %s2987, 1
    %2989 = vsyncpa [#allocation7], 1
    %s2990 = scalar_lea.sflag [#allocation7], 1
    %2991 = vsyncpa %s2990, 1
    %2992 = vsyncpa [#allocation5], 1
    %s2993 = scalar_lea.sflag [#allocation5], 1
    %2994 = vsyncpa %s2993, 1

</llo_original>
